<compile_context>
chip_gen: v7x
topology: tpu7x:2x2x1
jax: 0.10.0
libtpu: 0.0.40
codegen_flags: <defaults>
</compile_context>

<pallas_src>
import jax
import jax.numpy as jnp
import numpy as np
from jax import lax
from jax.experimental import pallas as pl
from jax.experimental.pallas import tpu as pltpu


def decoder_kernel(gi_e_ref, h0_ref, gic0_ref, encp_ref, encc_ref,
                   w_hh_ref, b_hh_ref, hs_ref):
    B, H = h0_ref.shape
    max_len = gi_e_ref.shape[0]

    # Hoist loop-invariant loads / broadcasts out of the decode loop
    # (JAX does not CSE broadcast_in_dim inside the loop body).
    enc_p = encp_ref[...]                                     # (B, T, H)
    enc_c = encc_ref[...]                                     # (B, T, 3H)
    w_hh = w_hh_ref[...]                                      # (H, 3H)
    b_hh = jnp.broadcast_to(b_hh_ref[...], (B, 3 * H))        # (B, 3H)

    def step(k, carry):
        h, gi_c = carry                                       # (B, H), (B, 3H)

        # --- GRU cell (PyTorch gate order r, z, n) ---
        # gi_e already contains embedded @ W_ih_e + b_ih (precomputed gather);
        # gi_c is the (already-projected) context contribution ctx @ W_ih_c.
        gi = gi_e_ref[k] + gi_c                               # (B, 3H)
        # Only per-step MXU op; depends only on previous h -> hides under the
        # attention chain of the previous unrolled step.
        gh = jnp.dot(h, w_hh,
                     preferred_element_type=jnp.float32,
                     precision=lax.Precision.DEFAULT) + b_hh  # (B, 3H)

        # Fused r/z sigmoid: one EUP pass over the packed 2H slice.
        rz = jax.nn.sigmoid(gi[:, :2 * H] + gh[:, :2 * H])    # (B, 2H)
        r = rz[:, :H]
        z = rz[:, H:]
        n = jnp.tanh(gi[:, 2 * H:] + r * gh[:, 2 * H:])
        h_new = n + z * (h - n)                               # (B, H)

        hs_ref[k] = h_new                                     # off the critical path

        # --- Attention, method='general' (projection pre-hoisted) ---
        # energy[b,t] = enc_proj[b,t,:] . h_new[b,:]
        energy = jnp.sum(enc_p * h_new[:, None, :], axis=-1)  # (B, T)
        energy = energy - jnp.max(energy, axis=-1, keepdims=True)
        e = jnp.exp(energy)
        inv = pl.reciprocal(jnp.sum(e, axis=-1, keepdims=True), approx=True)
        alpha = e * inv                                       # (B, T)
        # Carry the projected context directly (exact by linearity):
        gi_c_new = jnp.sum(alpha[:, :, None] * enc_c, axis=1)  # (B, 3H)

        return (h_new, gi_c_new)

    lax.fori_loop(0, max_len, step, (h0_ref[...], gic0_ref[...]), unroll=True)
    # TODO(synk): final (h, gi_c) carry is discarded; greedy/beam decode would
    # need the final hidden state + per-step argmax feedback (not ported).


def attention_decoder_forward(tokens, h0, ctx0, enc, params, max_len):
    """Returns scores of shape (max_len, B, output_size)."""
    B, H = h0.shape
    _, T, _ = enc.shape
    O = params["w_lin"].shape[1]

    # fix_embedding = eye(vocab) -> one_hot(tokens) @ W_ih_e == row gather.
    # Fold the input bias b_ih in as well (carry-independent).
    gi_e = jnp.take(params["w_ih_e"], tokens, axis=0) + params["b_ih"]  # (B, L, 3H)
    gi_e = jnp.transpose(gi_e, (1, 0, 2))                               # (L, B, 3H)

    # Algebraic hoists (exact): take both per-step matmuls off the chain.
    enc_proj = jnp.einsum("btd,ed->bte", enc, params["w_attn"])  # (B, T, H)
    enc_c = jnp.einsum("btd,de->bte", enc, params["w_ih_c"])     # (B, T, 3H)
    gi_c0 = ctx0 @ params["w_ih_c"]                              # (B, 3H)

    grid_spec = pltpu.PrefetchScalarGridSpec(
        num_scalar_prefetch=0,
        grid=(1,),  # single invocation; the decode loop lives inside the kernel
        in_specs=[
            pl.BlockSpec((max_len, B, 3 * H), lambda i: (0, 0, 0)),  # gi_e
            pl.BlockSpec((B, H), lambda i: (0, 0)),                  # h0
            pl.BlockSpec((B, 3 * H), lambda i: (0, 0)),              # gi_c0
            pl.BlockSpec((B, T, H), lambda i: (0, 0, 0)),            # enc_proj
            pl.BlockSpec((B, T, 3 * H), lambda i: (0, 0, 0)),        # enc_c
            pl.BlockSpec((H, 3 * H), lambda i: (0, 0)),              # w_hh
            pl.BlockSpec((1, 3 * H), lambda i: (0, 0)),              # b_hh
        ],
        out_specs=pl.BlockSpec((max_len, B, H), lambda i: (0, 0, 0)),
    )

    h_stack = pl.pallas_call(
        decoder_kernel,
        out_shape=jax.ShapeDtypeStruct((max_len, B, H), jnp.float32),
        grid_spec=grid_spec,
        compiler_params=pltpu.CompilerParams(
            dimension_semantics=("arbitrary",)),
    )(gi_e, h0, gi_c0, enc_proj, enc_c, params["w_hh"], params["b_hh"])

    # Output Linear applied once, outside the recurrence.
    scores = h_stack @ params["w_lin"] + params["b_lin"]     # (L, B, O)
    return scores


def reference_forward(tokens, h0, ctx0, enc, params, max_len):
    """Pure-JAX reference mirroring the PyTorch forward (exact softmax)."""
    V = params["w_ih_e"].shape[0]
    H = h0.shape[1]
    embedded = jax.nn.one_hot(tokens, V, dtype=jnp.float32)
    h, ctx = h0, ctx0
    scores = []
    for k in range(max_len):
        gi = (embedded[:, k] @ params["w_ih_e"] + ctx @ params["w_ih_c"]
              + params["b_ih"])
        gh = h @ params["w_hh"] + params["b_hh"]
        r = jax.nn.sigmoid(gi[:, :H] + gh[:, :H])
        z = jax.nn.sigmoid(gi[:, H:2 * H] + gh[:, H:2 * H])
        n = jnp.tanh(gi[:, 2 * H:] + r * gh[:, 2 * H:])
        h = (1.0 - z) * n + z * h
        score = h @ params["w_lin"] + params["b_lin"]
        scores.append(score)
        u = h @ params["w_attn"]
        energy = jnp.einsum("btd,bd->bt", enc, u)
        alpha = jax.nn.softmax(energy, axis=-1)
        ctx = jnp.einsum("bt,btd->bd", alpha, enc)
    return jnp.stack(scores, axis=0)


if __name__ == "__main__":
    # Small shapes consistent with the module's forward.
    B, V, H, O, T, MAX_LEN = 8, 16, 32, 16, 8, 6

    key = jax.random.PRNGKey(0)
    ks = jax.random.split(key, 12)

    # Deterministic parameter init (PyTorch-style uniform(-1/sqrt(H), 1/sqrt(H))).
    bound = 1.0 / np.sqrt(H)
    u = lambda k, shape: jax.random.uniform(k, shape, jnp.float32, -bound, bound)

    # nn.GRU weight_ih_l0: (3H, V+H) -> split and transpose for right-multiply.
    w_ih = u(ks[0], (3 * H, V + H))
    params = {
        "w_ih_e": jnp.transpose(w_ih[:, :V]),          # (V, 3H)
        "w_ih_c": jnp.transpose(w_ih[:, V:]),          # (H, 3H)
        "w_hh":   jnp.transpose(u(ks[1], (3 * H, H))), # (H, 3H)
        "b_ih":   u(ks[2], (1, 3 * H)),
        "b_hh":   u(ks[3], (1, 3 * H)),
        "w_lin":  jnp.transpose(u(ks[4], (O, H))),     # (H, O)
        "b_lin":  u(ks[5], (1, O)),
        # Attention 'general' weight; energy uses h @ w_attn (see kernel/reference).
        "w_attn": u(ks[6], (H, H)),                    # (H, H)
    }

    tokens = jax.random.randint(ks[7], (B, MAX_LEN), 0, V, dtype=jnp.int32)
    h0 = jax.random.normal(ks[8], (B, H), jnp.float32)    # GRU hidden (num_layers=1 squeezed)
    ctx0 = jax.random.normal(ks[9], (B, H), jnp.float32)
    enc = jax.random.normal(ks[10], (B, T, H), jnp.float32)

    scores = attention_decoder_forward(tokens, h0, ctx0, enc, params, MAX_LEN)
    scores = jax.block_until_ready(scores)

    ref = reference_forward(tokens, h0, ctx0, enc, params, MAX_LEN)
    # Tolerance: softmax denom uses pl.reciprocal(approx=True) and matmuls use
    # single-pass MXU precision; compounding over MAX_LEN=6 steps stays < 5e-3.
    np.testing.assert_allclose(np.asarray(scores), np.asarray(ref),
                               rtol=5e-3, atol=5e-3)

    # TODO(synk): greedy_search_decode / beam_search_decode (argmax-driven token
    # feedback + Python-side Beam bookkeeping) are not ported; only forward() is.
    print("KERNEL_OK")
</pallas_src>

<mosaic_0001>
module attributes {stable_mosaic.version = 11 : i64} {
  func.func @decoder_kernel(%arg0: i32, %arg1: memref<6x8x96xf32, #tpu.memory_space<vmem>>, %arg2: memref<8x32xf32, #tpu.memory_space<vmem>>, %arg3: memref<8x96xf32, #tpu.memory_space<vmem>>, %arg4: memref<8x8x32xf32, #tpu.memory_space<vmem>>, %arg5: memref<8x8x96xf32, #tpu.memory_space<vmem>>, %arg6: memref<32x96xf32, #tpu.memory_space<vmem>>, %arg7: memref<1x96xf32, #tpu.memory_space<vmem>>, %arg8: memref<6x8x32xf32, #tpu.memory_space<vmem>>) attributes {dimension_semantics = [#tpu.dimension_semantics<arbitrary>], iteration_bounds = array<i64: 1>, scalar_prefetch = 0 : i64, scratch_operands = 0 : i64, tpu.core_type = #tpu.core_type<tc>, window_params = [{pipeline_mode = #tpu.pipeline_mode<synchronous>, transform_indices = @transform_0, window_bounds = array<i64: 6, 8, 96>}, {pipeline_mode = #tpu.pipeline_mode<synchronous>, transform_indices = @transform_1, window_bounds = array<i64: 8, 32>}, {pipeline_mode = #tpu.pipeline_mode<synchronous>, transform_indices = @transform_2, window_bounds = array<i64: 8, 96>}, {pipeline_mode = #tpu.pipeline_mode<synchronous>, transform_indices = @transform_3, window_bounds = array<i64: 8, 8, 32>}, {pipeline_mode = #tpu.pipeline_mode<synchronous>, transform_indices = @transform_4, window_bounds = array<i64: 8, 8, 96>}, {pipeline_mode = #tpu.pipeline_mode<synchronous>, transform_indices = @transform_5, window_bounds = array<i64: 32, 96>}, {pipeline_mode = #tpu.pipeline_mode<synchronous>, transform_indices = @transform_6, window_bounds = array<i64: 1, 96>}, {pipeline_mode = #tpu.pipeline_mode<synchronous>, transform_indices = @transform_7, window_bounds = array<i64: 6, 8, 32>}]} {
    %c0 = arith.constant 0 : index
    %c0_0 = arith.constant 0 : index
    %c0_1 = arith.constant 0 : index
    %0 = vector.load %arg4[%c0, %c0_0, %c0_1] : memref<8x8x32xf32, #tpu.memory_space<vmem>>, vector<8x8x32xf32>
    %c0_2 = arith.constant 0 : index
    %c0_3 = arith.constant 0 : index
    %c0_4 = arith.constant 0 : index
    %1 = vector.load %arg5[%c0_2, %c0_3, %c0_4] : memref<8x8x96xf32, #tpu.memory_space<vmem>>, vector<8x8x96xf32>
    %c0_5 = arith.constant 0 : index
    %c0_6 = arith.constant 0 : index
    %2 = vector.load %arg6[%c0_5, %c0_6] : memref<32x96xf32, #tpu.memory_space<vmem>>, vector<32x96xf32>
    %c0_7 = arith.constant 0 : index
    %c0_8 = arith.constant 0 : index
    %3 = vector.load %arg7[%c0_7, %c0_8] : memref<1x96xf32, #tpu.memory_space<vmem>>, vector<1x96xf32>
    %4 = vector.shape_cast %3 : vector<1x96xf32> to vector<1x96xf32>
    %5 = vector.broadcast %4 : vector<1x96xf32> to vector<8x96xf32>
    %c0_9 = arith.constant 0 : index
    %c0_10 = arith.constant 0 : index
    %6 = vector.load %arg2[%c0_9, %c0_10] : memref<8x32xf32, #tpu.memory_space<vmem>>, vector<8x32xf32>
    %c0_11 = arith.constant 0 : index
    %c0_12 = arith.constant 0 : index
    %7 = vector.load %arg3[%c0_11, %c0_12] : memref<8x96xf32, #tpu.memory_space<vmem>>, vector<8x96xf32>
    %c0_i32 = arith.constant 0 : i32
    %8 = arith.index_cast %c0_i32 : i32 to index
    %c0_13 = arith.constant 0 : index
    %c0_14 = arith.constant 0 : index
    %9 = vector.load %arg1[%8, %c0_13, %c0_14] : memref<6x8x96xf32, #tpu.memory_space<vmem>>, vector<1x8x96xf32>
    %10 = vector.shape_cast %9 : vector<1x8x96xf32> to vector<8x96xf32>
    %11 = arith.addf %10, %7 : vector<8x96xf32>
    %cst = arith.constant dense<0.000000e+00> : vector<8x96xf32>
    %12 = tpu.matmul %6, %2, %cst {dimension_numbers = #tpu.dot_dimension_numbers<[1], [0], [0], [1], [0, 0, 1, 1], [], []>} : vector<8x32xf32>, vector<32x96xf32>, vector<8x96xf32> -> vector<8x96xf32>
    %13 = arith.addf %12, %5 : vector<8x96xf32>
    %14 = vector.extract_strided_slice %11 {offsets = [0, 0], sizes = [8, 64], strides = [1, 1]} : vector<8x96xf32> to vector<8x64xf32>
    %15 = vector.extract_strided_slice %13 {offsets = [0, 0], sizes = [8, 64], strides = [1, 1]} : vector<8x96xf32> to vector<8x64xf32>
    %16 = arith.addf %14, %15 : vector<8x64xf32>
    %17 = arith.negf %16 : vector<8x64xf32>
    %18 = math.exp %17 : vector<8x64xf32>
    %cst_15 = arith.constant 1.000000e+00 : f32
    %19 = vector.broadcast %cst_15 : f32 to vector<8x64xf32>
    %20 = arith.addf %19, %18 : vector<8x64xf32>
    %21 = arith.divf %19, %20 : vector<8x64xf32>
    %22 = vector.extract_strided_slice %21 {offsets = [0, 0], sizes = [8, 32], strides = [1, 1]} : vector<8x64xf32> to vector<8x32xf32>
    %23 = vector.extract_strided_slice %21 {offsets = [0, 32], sizes = [8, 32], strides = [1, 1]} : vector<8x64xf32> to vector<8x32xf32>
    %24 = vector.extract_strided_slice %11 {offsets = [0, 64], sizes = [8, 32], strides = [1, 1]} : vector<8x96xf32> to vector<8x32xf32>
    %25 = vector.extract_strided_slice %13 {offsets = [0, 64], sizes = [8, 32], strides = [1, 1]} : vector<8x96xf32> to vector<8x32xf32>
    %26 = arith.mulf %22, %25 : vector<8x32xf32>
    %27 = arith.addf %24, %26 : vector<8x32xf32>
    %28 = math.tanh %27 : vector<8x32xf32>
    %29 = arith.subf %6, %28 : vector<8x32xf32>
    %30 = arith.mulf %23, %29 : vector<8x32xf32>
    %31 = arith.addf %28, %30 : vector<8x32xf32>
    %32 = arith.index_cast %c0_i32 : i32 to index
    %c0_16 = arith.constant 0 : index
    %c0_17 = arith.constant 0 : index
    %33 = vector.load %arg8[%32, %c0_16, %c0_17] : memref<6x8x32xf32, #tpu.memory_space<vmem>>, vector<1x8x32xf32>
    %34 = vector.shape_cast %33 : vector<1x8x32xf32> to vector<8x32xf32>
    %35 = vector.shape_cast %31 : vector<8x32xf32> to vector<1x8x32xf32>
    tpu.vector_store %arg8[%32, %c0_16, %c0_17], %35 {strides = array<i32>} : memref<6x8x32xf32, #tpu.memory_space<vmem>>, vector<1x8x32xf32>,
    %36 = vector.shape_cast %31 : vector<8x32xf32> to vector<8x1x32xf32>
    %37 = vector.broadcast %36 : vector<8x1x32xf32> to vector<8x8x32xf32>
    %38 = arith.mulf %0, %37 : vector<8x8x32xf32>
    %cst_18 = arith.constant dense<0.000000e+00> : vector<8x8xf32>
    %39 = vector.multi_reduction <add>, %38, %cst_18 [2] : vector<8x8x32xf32> to vector<8x8xf32>
    %cst_19 = arith.constant dense<0xFF800000> : vector<8xf32>
    %40 = vector.multi_reduction <maximumf>, %39, %cst_19 [1] : vector<8x8xf32> to vector<8xf32>
    %41 = vector.shape_cast %40 : vector<8xf32> to vector<8x1xf32>
    %42 = vector.broadcast %41 : vector<8x1xf32> to vector<8x8xf32>
    %43 = arith.subf %39, %42 : vector<8x8xf32>
    %44 = math.exp %43 : vector<8x8xf32>
    %cst_20 = arith.constant dense<0.000000e+00> : vector<8xf32>
    %45 = vector.multi_reduction <add>, %44, %cst_20 [1] : vector<8x8xf32> to vector<8xf32>
    %46 = vector.shape_cast %45 : vector<8xf32> to vector<8x1xf32>
    %47 = tpu.reciprocal %46 {approx = true} : vector<8x1xf32> -> vector<8x1xf32>
    %48 = vector.broadcast %47 : vector<8x1xf32> to vector<8x8xf32>
    %49 = arith.mulf %44, %48 : vector<8x8xf32>
    %50 = vector.shape_cast %49 : vector<8x8xf32> to vector<8x8x1xf32>
    %51 = vector.broadcast %50 : vector<8x8x1xf32> to vector<8x8x96xf32>
    %52 = arith.mulf %51, %1 : vector<8x8x96xf32>
    %cst_21 = arith.constant dense<0.000000e+00> : vector<8x96xf32>
    %53 = vector.multi_reduction <add>, %52, %cst_21 [1] : vector<8x8x96xf32> to vector<8x96xf32>
    %c1_i32 = arith.constant 1 : i32
    %54 = arith.index_cast %c1_i32 : i32 to index
    %c0_22 = arith.constant 0 : index
    %c0_23 = arith.constant 0 : index
    %55 = vector.load %arg1[%54, %c0_22, %c0_23] : memref<6x8x96xf32, #tpu.memory_space<vmem>>, vector<1x8x96xf32>
    %56 = vector.shape_cast %55 : vector<1x8x96xf32> to vector<8x96xf32>
    %57 = arith.addf %56, %53 : vector<8x96xf32>
    %cst_24 = arith.constant dense<0.000000e+00> : vector<8x96xf32>
    %58 = tpu.matmul %31, %2, %cst_24 {dimension_numbers = #tpu.dot_dimension_numbers<[1], [0], [0], [1], [0, 0, 1, 1], [], []>} : vector<8x32xf32>, vector<32x96xf32>, vector<8x96xf32> -> vector<8x96xf32>
    %59 = arith.addf %58, %5 : vector<8x96xf32>
    %60 = vector.extract_strided_slice %57 {offsets = [0, 0], sizes = [8, 64], strides = [1, 1]} : vector<8x96xf32> to vector<8x64xf32>
    %61 = vector.extract_strided_slice %59 {offsets = [0, 0], sizes = [8, 64], strides = [1, 1]} : vector<8x96xf32> to vector<8x64xf32>
    %62 = arith.addf %60, %61 : vector<8x64xf32>
    %63 = arith.negf %62 : vector<8x64xf32>
    %64 = math.exp %63 : vector<8x64xf32>
    %cst_25 = arith.constant 1.000000e+00 : f32
    %65 = vector.broadcast %cst_25 : f32 to vector<8x64xf32>
    %66 = arith.addf %65, %64 : vector<8x64xf32>
    %67 = arith.divf %65, %66 : vector<8x64xf32>
    %68 = vector.extract_strided_slice %67 {offsets = [0, 0], sizes = [8, 32], strides = [1, 1]} : vector<8x64xf32> to vector<8x32xf32>
    %69 = vector.extract_strided_slice %67 {offsets = [0, 32], sizes = [8, 32], strides = [1, 1]} : vector<8x64xf32> to vector<8x32xf32>
    %70 = vector.extract_strided_slice %57 {offsets = [0, 64], sizes = [8, 32], strides = [1, 1]} : vector<8x96xf32> to vector<8x32xf32>
    %71 = vector.extract_strided_slice %59 {offsets = [0, 64], sizes = [8, 32], strides = [1, 1]} : vector<8x96xf32> to vector<8x32xf32>
    %72 = arith.mulf %68, %71 : vector<8x32xf32>
    %73 = arith.addf %70, %72 : vector<8x32xf32>
    %74 = math.tanh %73 : vector<8x32xf32>
    %75 = arith.subf %31, %74 : vector<8x32xf32>
    %76 = arith.mulf %69, %75 : vector<8x32xf32>
    %77 = arith.addf %74, %76 : vector<8x32xf32>
    %78 = arith.index_cast %c1_i32 : i32 to index
    %c0_26 = arith.constant 0 : index
    %c0_27 = arith.constant 0 : index
    %79 = vector.load %arg8[%78, %c0_26, %c0_27] : memref<6x8x32xf32, #tpu.memory_space<vmem>>, vector<1x8x32xf32>
    %80 = vector.shape_cast %79 : vector<1x8x32xf32> to vector<8x32xf32>
    %81 = vector.shape_cast %77 : vector<8x32xf32> to vector<1x8x32xf32>
    tpu.vector_store %arg8[%78, %c0_26, %c0_27], %81 {strides = array<i32>} : memref<6x8x32xf32, #tpu.memory_space<vmem>>, vector<1x8x32xf32>,
    %82 = vector.shape_cast %77 : vector<8x32xf32> to vector<8x1x32xf32>
    %83 = vector.broadcast %82 : vector<8x1x32xf32> to vector<8x8x32xf32>
    %84 = arith.mulf %0, %83 : vector<8x8x32xf32>
    %cst_28 = arith.constant dense<0.000000e+00> : vector<8x8xf32>
    %85 = vector.multi_reduction <add>, %84, %cst_28 [2] : vector<8x8x32xf32> to vector<8x8xf32>
    %cst_29 = arith.constant dense<0xFF800000> : vector<8xf32>
    %86 = vector.multi_reduction <maximumf>, %85, %cst_29 [1] : vector<8x8xf32> to vector<8xf32>
    %87 = vector.shape_cast %86 : vector<8xf32> to vector<8x1xf32>
    %88 = vector.broadcast %87 : vector<8x1xf32> to vector<8x8xf32>
    %89 = arith.subf %85, %88 : vector<8x8xf32>
    %90 = math.exp %89 : vector<8x8xf32>
    %cst_30 = arith.constant dense<0.000000e+00> : vector<8xf32>
    %91 = vector.multi_reduction <add>, %90, %cst_30 [1] : vector<8x8xf32> to vector<8xf32>
    %92 = vector.shape_cast %91 : vector<8xf32> to vector<8x1xf32>
    %93 = tpu.reciprocal %92 {approx = true} : vector<8x1xf32> -> vector<8x1xf32>
    %94 = vector.broadcast %93 : vector<8x1xf32> to vector<8x8xf32>
    %95 = arith.mulf %90, %94 : vector<8x8xf32>
    %96 = vector.shape_cast %95 : vector<8x8xf32> to vector<8x8x1xf32>
    %97 = vector.broadcast %96 : vector<8x8x1xf32> to vector<8x8x96xf32>
    %98 = arith.mulf %97, %1 : vector<8x8x96xf32>
    %cst_31 = arith.constant dense<0.000000e+00> : vector<8x96xf32>
    %99 = vector.multi_reduction <add>, %98, %cst_31 [1] : vector<8x8x96xf32> to vector<8x96xf32>
    %c2_i32 = arith.constant 2 : i32
    %100 = arith.index_cast %c2_i32 : i32 to index
    %c0_32 = arith.constant 0 : index
    %c0_33 = arith.constant 0 : index
    %101 = vector.load %arg1[%100, %c0_32, %c0_33] : memref<6x8x96xf32, #tpu.memory_space<vmem>>, vector<1x8x96xf32>
    %102 = vector.shape_cast %101 : vector<1x8x96xf32> to vector<8x96xf32>
    %103 = arith.addf %102, %99 : vector<8x96xf32>
    %cst_34 = arith.constant dense<0.000000e+00> : vector<8x96xf32>
    %104 = tpu.matmul %77, %2, %cst_34 {dimension_numbers = #tpu.dot_dimension_numbers<[1], [0], [0], [1], [0, 0, 1, 1], [], []>} : vector<8x32xf32>, vector<32x96xf32>, vector<8x96xf32> -> vector<8x96xf32>
    %105 = arith.addf %104, %5 : vector<8x96xf32>
    %106 = vector.extract_strided_slice %103 {offsets = [0, 0], sizes = [8, 64], strides = [1, 1]} : vector<8x96xf32> to vector<8x64xf32>
    %107 = vector.extract_strided_slice %105 {offsets = [0, 0], sizes = [8, 64], strides = [1, 1]} : vector<8x96xf32> to vector<8x64xf32>
    %108 = arith.addf %106, %107 : vector<8x64xf32>
    %109 = arith.negf %108 : vector<8x64xf32>
    %110 = math.exp %109 : vector<8x64xf32>
    %cst_35 = arith.constant 1.000000e+00 : f32
    %111 = vector.broadcast %cst_35 : f32 to vector<8x64xf32>
    %112 = arith.addf %111, %110 : vector<8x64xf32>
    %113 = arith.divf %111, %112 : vector<8x64xf32>
    %114 = vector.extract_strided_slice %113 {offsets = [0, 0], sizes = [8, 32], strides = [1, 1]} : vector<8x64xf32> to vector<8x32xf32>
    %115 = vector.extract_strided_slice %113 {offsets = [0, 32], sizes = [8, 32], strides = [1, 1]} : vector<8x64xf32> to vector<8x32xf32>
    %116 = vector.extract_strided_slice %103 {offsets = [0, 64], sizes = [8, 32], strides = [1, 1]} : vector<8x96xf32> to vector<8x32xf32>
    %117 = vector.extract_strided_slice %105 {offsets = [0, 64], sizes = [8, 32], strides = [1, 1]} : vector<8x96xf32> to vector<8x32xf32>
    %118 = arith.mulf %114, %117 : vector<8x32xf32>
    %119 = arith.addf %116, %118 : vector<8x32xf32>
    %120 = math.tanh %119 : vector<8x32xf32>
    %121 = arith.subf %77, %120 : vector<8x32xf32>
    %122 = arith.mulf %115, %121 : vector<8x32xf32>
    %123 = arith.addf %120, %122 : vector<8x32xf32>
    %124 = arith.index_cast %c2_i32 : i32 to index
    %c0_36 = arith.constant 0 : index
    %c0_37 = arith.constant 0 : index
    %125 = vector.load %arg8[%124, %c0_36, %c0_37] : memref<6x8x32xf32, #tpu.memory_space<vmem>>, vector<1x8x32xf32>
    %126 = vector.shape_cast %125 : vector<1x8x32xf32> to vector<8x32xf32>
    %127 = vector.shape_cast %123 : vector<8x32xf32> to vector<1x8x32xf32>
    tpu.vector_store %arg8[%124, %c0_36, %c0_37], %127 {strides = array<i32>} : memref<6x8x32xf32, #tpu.memory_space<vmem>>, vector<1x8x32xf32>,
    %128 = vector.shape_cast %123 : vector<8x32xf32> to vector<8x1x32xf32>
    %129 = vector.broadcast %128 : vector<8x1x32xf32> to vector<8x8x32xf32>
    %130 = arith.mulf %0, %129 : vector<8x8x32xf32>
    %cst_38 = arith.constant dense<0.000000e+00> : vector<8x8xf32>
    %131 = vector.multi_reduction <add>, %130, %cst_38 [2] : vector<8x8x32xf32> to vector<8x8xf32>
    %cst_39 = arith.constant dense<0xFF800000> : vector<8xf32>
    %132 = vector.multi_reduction <maximumf>, %131, %cst_39 [1] : vector<8x8xf32> to vector<8xf32>
    %133 = vector.shape_cast %132 : vector<8xf32> to vector<8x1xf32>
    %134 = vector.broadcast %133 : vector<8x1xf32> to vector<8x8xf32>
    %135 = arith.subf %131, %134 : vector<8x8xf32>
    %136 = math.exp %135 : vector<8x8xf32>
    %cst_40 = arith.constant dense<0.000000e+00> : vector<8xf32>
    %137 = vector.multi_reduction <add>, %136, %cst_40 [1] : vector<8x8xf32> to vector<8xf32>
    %138 = vector.shape_cast %137 : vector<8xf32> to vector<8x1xf32>
    %139 = tpu.reciprocal %138 {approx = true} : vector<8x1xf32> -> vector<8x1xf32>
    %140 = vector.broadcast %139 : vector<8x1xf32> to vector<8x8xf32>
    %141 = arith.mulf %136, %140 : vector<8x8xf32>
    %142 = vector.shape_cast %141 : vector<8x8xf32> to vector<8x8x1xf32>
    %143 = vector.broadcast %142 : vector<8x8x1xf32> to vector<8x8x96xf32>
    %144 = arith.mulf %143, %1 : vector<8x8x96xf32>
    %cst_41 = arith.constant dense<0.000000e+00> : vector<8x96xf32>
    %145 = vector.multi_reduction <add>, %144, %cst_41 [1] : vector<8x8x96xf32> to vector<8x96xf32>
    %c3_i32 = arith.constant 3 : i32
    %146 = arith.index_cast %c3_i32 : i32 to index
    %c0_42 = arith.constant 0 : index
    %c0_43 = arith.constant 0 : index
    %147 = vector.load %arg1[%146, %c0_42, %c0_43] : memref<6x8x96xf32, #tpu.memory_space<vmem>>, vector<1x8x96xf32>
    %148 = vector.shape_cast %147 : vector<1x8x96xf32> to vector<8x96xf32>
    %149 = arith.addf %148, %145 : vector<8x96xf32>
    %cst_44 = arith.constant dense<0.000000e+00> : vector<8x96xf32>
    %150 = tpu.matmul %123, %2, %cst_44 {dimension_numbers = #tpu.dot_dimension_numbers<[1], [0], [0], [1], [0, 0, 1, 1], [], []>} : vector<8x32xf32>, vector<32x96xf32>, vector<8x96xf32> -> vector<8x96xf32>
    %151 = arith.addf %150, %5 : vector<8x96xf32>
    %152 = vector.extract_strided_slice %149 {offsets = [0, 0], sizes = [8, 64], strides = [1, 1]} : vector<8x96xf32> to vector<8x64xf32>
    %153 = vector.extract_strided_slice %151 {offsets = [0, 0], sizes = [8, 64], strides = [1, 1]} : vector<8x96xf32> to vector<8x64xf32>
    %154 = arith.addf %152, %153 : vector<8x64xf32>
    %155 = arith.negf %154 : vector<8x64xf32>
    %156 = math.exp %155 : vector<8x64xf32>
    %cst_45 = arith.constant 1.000000e+00 : f32
    %157 = vector.broadcast %cst_45 : f32 to vector<8x64xf32>
    %158 = arith.addf %157, %156 : vector<8x64xf32>
    %159 = arith.divf %157, %158 : vector<8x64xf32>
    %160 = vector.extract_strided_slice %159 {offsets = [0, 0], sizes = [8, 32], strides = [1, 1]} : vector<8x64xf32> to vector<8x32xf32>
    %161 = vector.extract_strided_slice %159 {offsets = [0, 32], sizes = [8, 32], strides = [1, 1]} : vector<8x64xf32> to vector<8x32xf32>
    %162 = vector.extract_strided_slice %149 {offsets = [0, 64], sizes = [8, 32], strides = [1, 1]} : vector<8x96xf32> to vector<8x32xf32>
    %163 = vector.extract_strided_slice %151 {offsets = [0, 64], sizes = [8, 32], strides = [1, 1]} : vector<8x96xf32> to vector<8x32xf32>
    %164 = arith.mulf %160, %163 : vector<8x32xf32>
    %165 = arith.addf %162, %164 : vector<8x32xf32>
    %166 = math.tanh %165 : vector<8x32xf32>
    %167 = arith.subf %123, %166 : vector<8x32xf32>
    %168 = arith.mulf %161, %167 : vector<8x32xf32>
    %169 = arith.addf %166, %168 : vector<8x32xf32>
    %170 = arith.index_cast %c3_i32 : i32 to index
    %c0_46 = arith.constant 0 : index
    %c0_47 = arith.constant 0 : index
    %171 = vector.load %arg8[%170, %c0_46, %c0_47] : memref<6x8x32xf32, #tpu.memory_space<vmem>>, vector<1x8x32xf32>
    %172 = vector.shape_cast %171 : vector<1x8x32xf32> to vector<8x32xf32>
    %173 = vector.shape_cast %169 : vector<8x32xf32> to vector<1x8x32xf32>
    tpu.vector_store %arg8[%170, %c0_46, %c0_47], %173 {strides = array<i32>} : memref<6x8x32xf32, #tpu.memory_space<vmem>>, vector<1x8x32xf32>,
    %174 = vector.shape_cast %169 : vector<8x32xf32> to vector<8x1x32xf32>
    %175 = vector.broadcast %174 : vector<8x1x32xf32> to vector<8x8x32xf32>
    %176 = arith.mulf %0, %175 : vector<8x8x32xf32>
    %cst_48 = arith.constant dense<0.000000e+00> : vector<8x8xf32>
    %177 = vector.multi_reduction <add>, %176, %cst_48 [2] : vector<8x8x32xf32> to vector<8x8xf32>
    %cst_49 = arith.constant dense<0xFF800000> : vector<8xf32>
    %178 = vector.multi_reduction <maximumf>, %177, %cst_49 [1] : vector<8x8xf32> to vector<8xf32>
    %179 = vector.shape_cast %178 : vector<8xf32> to vector<8x1xf32>
    %180 = vector.broadcast %179 : vector<8x1xf32> to vector<8x8xf32>
    %181 = arith.subf %177, %180 : vector<8x8xf32>
    %182 = math.exp %181 : vector<8x8xf32>
    %cst_50 = arith.constant dense<0.000000e+00> : vector<8xf32>
    %183 = vector.multi_reduction <add>, %182, %cst_50 [1] : vector<8x8xf32> to vector<8xf32>
    %184 = vector.shape_cast %183 : vector<8xf32> to vector<8x1xf32>
    %185 = tpu.reciprocal %184 {approx = true} : vector<8x1xf32> -> vector<8x1xf32>
    %186 = vector.broadcast %185 : vector<8x1xf32> to vector<8x8xf32>
    %187 = arith.mulf %182, %186 : vector<8x8xf32>
    %188 = vector.shape_cast %187 : vector<8x8xf32> to vector<8x8x1xf32>
    %189 = vector.broadcast %188 : vector<8x8x1xf32> to vector<8x8x96xf32>
    %190 = arith.mulf %189, %1 : vector<8x8x96xf32>
    %cst_51 = arith.constant dense<0.000000e+00> : vector<8x96xf32>
    %191 = vector.multi_reduction <add>, %190, %cst_51 [1] : vector<8x8x96xf32> to vector<8x96xf32>
    %c4_i32 = arith.constant 4 : i32
    %192 = arith.index_cast %c4_i32 : i32 to index
    %c0_52 = arith.constant 0 : index
    %c0_53 = arith.constant 0 : index
    %193 = vector.load %arg1[%192, %c0_52, %c0_53] : memref<6x8x96xf32, #tpu.memory_space<vmem>>, vector<1x8x96xf32>
    %194 = vector.shape_cast %193 : vector<1x8x96xf32> to vector<8x96xf32>
    %195 = arith.addf %194, %191 : vector<8x96xf32>
    %cst_54 = arith.constant dense<0.000000e+00> : vector<8x96xf32>
    %196 = tpu.matmul %169, %2, %cst_54 {dimension_numbers = #tpu.dot_dimension_numbers<[1], [0], [0], [1], [0, 0, 1, 1], [], []>} : vector<8x32xf32>, vector<32x96xf32>, vector<8x96xf32> -> vector<8x96xf32>
    %197 = arith.addf %196, %5 : vector<8x96xf32>
    %198 = vector.extract_strided_slice %195 {offsets = [0, 0], sizes = [8, 64], strides = [1, 1]} : vector<8x96xf32> to vector<8x64xf32>
    %199 = vector.extract_strided_slice %197 {offsets = [0, 0], sizes = [8, 64], strides = [1, 1]} : vector<8x96xf32> to vector<8x64xf32>
    %200 = arith.addf %198, %199 : vector<8x64xf32>
    %201 = arith.negf %200 : vector<8x64xf32>
    %202 = math.exp %201 : vector<8x64xf32>
    %cst_55 = arith.constant 1.000000e+00 : f32
    %203 = vector.broadcast %cst_55 : f32 to vector<8x64xf32>
    %204 = arith.addf %203, %202 : vector<8x64xf32>
    %205 = arith.divf %203, %204 : vector<8x64xf32>
    %206 = vector.extract_strided_slice %205 {offsets = [0, 0], sizes = [8, 32], strides = [1, 1]} : vector<8x64xf32> to vector<8x32xf32>
    %207 = vector.extract_strided_slice %205 {offsets = [0, 32], sizes = [8, 32], strides = [1, 1]} : vector<8x64xf32> to vector<8x32xf32>
    %208 = vector.extract_strided_slice %195 {offsets = [0, 64], sizes = [8, 32], strides = [1, 1]} : vector<8x96xf32> to vector<8x32xf32>
    %209 = vector.extract_strided_slice %197 {offsets = [0, 64], sizes = [8, 32], strides = [1, 1]} : vector<8x96xf32> to vector<8x32xf32>
    %210 = arith.mulf %206, %209 : vector<8x32xf32>
    %211 = arith.addf %208, %210 : vector<8x32xf32>
    %212 = math.tanh %211 : vector<8x32xf32>
    %213 = arith.subf %169, %212 : vector<8x32xf32>
    %214 = arith.mulf %207, %213 : vector<8x32xf32>
    %215 = arith.addf %212, %214 : vector<8x32xf32>
    %216 = arith.index_cast %c4_i32 : i32 to index
    %c0_56 = arith.constant 0 : index
    %c0_57 = arith.constant 0 : index
    %217 = vector.load %arg8[%216, %c0_56, %c0_57] : memref<6x8x32xf32, #tpu.memory_space<vmem>>, vector<1x8x32xf32>
    %218 = vector.shape_cast %217 : vector<1x8x32xf32> to vector<8x32xf32>
    %219 = vector.shape_cast %215 : vector<8x32xf32> to vector<1x8x32xf32>
    tpu.vector_store %arg8[%216, %c0_56, %c0_57], %219 {strides = array<i32>} : memref<6x8x32xf32, #tpu.memory_space<vmem>>, vector<1x8x32xf32>,
    %220 = vector.shape_cast %215 : vector<8x32xf32> to vector<8x1x32xf32>
    %221 = vector.broadcast %220 : vector<8x1x32xf32> to vector<8x8x32xf32>
    %222 = arith.mulf %0, %221 : vector<8x8x32xf32>
    %cst_58 = arith.constant dense<0.000000e+00> : vector<8x8xf32>
    %223 = vector.multi_reduction <add>, %222, %cst_58 [2] : vector<8x8x32xf32> to vector<8x8xf32>
    %cst_59 = arith.constant dense<0xFF800000> : vector<8xf32>
    %224 = vector.multi_reduction <maximumf>, %223, %cst_59 [1] : vector<8x8xf32> to vector<8xf32>
    %225 = vector.shape_cast %224 : vector<8xf32> to vector<8x1xf32>
    %226 = vector.broadcast %225 : vector<8x1xf32> to vector<8x8xf32>
    %227 = arith.subf %223, %226 : vector<8x8xf32>
    %228 = math.exp %227 : vector<8x8xf32>
    %cst_60 = arith.constant dense<0.000000e+00> : vector<8xf32>
    %229 = vector.multi_reduction <add>, %228, %cst_60 [1] : vector<8x8xf32> to vector<8xf32>
    %230 = vector.shape_cast %229 : vector<8xf32> to vector<8x1xf32>
    %231 = tpu.reciprocal %230 {approx = true} : vector<8x1xf32> -> vector<8x1xf32>
    %232 = vector.broadcast %231 : vector<8x1xf32> to vector<8x8xf32>
    %233 = arith.mulf %228, %232 : vector<8x8xf32>
    %234 = vector.shape_cast %233 : vector<8x8xf32> to vector<8x8x1xf32>
    %235 = vector.broadcast %234 : vector<8x8x1xf32> to vector<8x8x96xf32>
    %236 = arith.mulf %235, %1 : vector<8x8x96xf32>
    %cst_61 = arith.constant dense<0.000000e+00> : vector<8x96xf32>
    %237 = vector.multi_reduction <add>, %236, %cst_61 [1] : vector<8x8x96xf32> to vector<8x96xf32>
    %c5_i32 = arith.constant 5 : i32
    %238 = arith.index_cast %c5_i32 : i32 to index
    %c0_62 = arith.constant 0 : index
    %c0_63 = arith.constant 0 : index
    %239 = vector.load %arg1[%238, %c0_62, %c0_63] : memref<6x8x96xf32, #tpu.memory_space<vmem>>, vector<1x8x96xf32>
    %240 = vector.shape_cast %239 : vector<1x8x96xf32> to vector<8x96xf32>
    %241 = arith.addf %240, %237 : vector<8x96xf32>
    %cst_64 = arith.constant dense<0.000000e+00> : vector<8x96xf32>
    %242 = tpu.matmul %215, %2, %cst_64 {dimension_numbers = #tpu.dot_dimension_numbers<[1], [0], [0], [1], [0, 0, 1, 1], [], []>} : vector<8x32xf32>, vector<32x96xf32>, vector<8x96xf32> -> vector<8x96xf32>
    %243 = arith.addf %242, %5 : vector<8x96xf32>
    %244 = vector.extract_strided_slice %241 {offsets = [0, 0], sizes = [8, 64], strides = [1, 1]} : vector<8x96xf32> to vector<8x64xf32>
    %245 = vector.extract_strided_slice %243 {offsets = [0, 0], sizes = [8, 64], strides = [1, 1]} : vector<8x96xf32> to vector<8x64xf32>
    %246 = arith.addf %244, %245 : vector<8x64xf32>
    %247 = arith.negf %246 : vector<8x64xf32>
    %248 = math.exp %247 : vector<8x64xf32>
    %cst_65 = arith.constant 1.000000e+00 : f32
    %249 = vector.broadcast %cst_65 : f32 to vector<8x64xf32>
    %250 = arith.addf %249, %248 : vector<8x64xf32>
    %251 = arith.divf %249, %250 : vector<8x64xf32>
    %252 = vector.extract_strided_slice %251 {offsets = [0, 0], sizes = [8, 32], strides = [1, 1]} : vector<8x64xf32> to vector<8x32xf32>
    %253 = vector.extract_strided_slice %251 {offsets = [0, 32], sizes = [8, 32], strides = [1, 1]} : vector<8x64xf32> to vector<8x32xf32>
    %254 = vector.extract_strided_slice %241 {offsets = [0, 64], sizes = [8, 32], strides = [1, 1]} : vector<8x96xf32> to vector<8x32xf32>
    %255 = vector.extract_strided_slice %243 {offsets = [0, 64], sizes = [8, 32], strides = [1, 1]} : vector<8x96xf32> to vector<8x32xf32>
    %256 = arith.mulf %252, %255 : vector<8x32xf32>
    %257 = arith.addf %254, %256 : vector<8x32xf32>
    %258 = math.tanh %257 : vector<8x32xf32>
    %259 = arith.subf %215, %258 : vector<8x32xf32>
    %260 = arith.mulf %253, %259 : vector<8x32xf32>
    %261 = arith.addf %258, %260 : vector<8x32xf32>
    %262 = arith.index_cast %c5_i32 : i32 to index
    %c0_66 = arith.constant 0 : index
    %c0_67 = arith.constant 0 : index
    %263 = vector.load %arg8[%262, %c0_66, %c0_67] : memref<6x8x32xf32, #tpu.memory_space<vmem>>, vector<1x8x32xf32>
    %264 = vector.shape_cast %263 : vector<1x8x32xf32> to vector<8x32xf32>
    %265 = vector.shape_cast %261 : vector<8x32xf32> to vector<1x8x32xf32>
    tpu.vector_store %arg8[%262, %c0_66, %c0_67], %265 {strides = array<i32>} : memref<6x8x32xf32, #tpu.memory_space<vmem>>, vector<1x8x32xf32>,
    %266 = vector.shape_cast %261 : vector<8x32xf32> to vector<8x1x32xf32>
    %267 = vector.broadcast %266 : vector<8x1x32xf32> to vector<8x8x32xf32>
    %268 = arith.mulf %0, %267 : vector<8x8x32xf32>
    %cst_68 = arith.constant dense<0.000000e+00> : vector<8x8xf32>
    %269 = vector.multi_reduction <add>, %268, %cst_68 [2] : vector<8x8x32xf32> to vector<8x8xf32>
    %cst_69 = arith.constant dense<0xFF800000> : vector<8xf32>
    %270 = vector.multi_reduction <maximumf>, %269, %cst_69 [1] : vector<8x8xf32> to vector<8xf32>
    %271 = vector.shape_cast %270 : vector<8xf32> to vector<8x1xf32>
    %272 = vector.broadcast %271 : vector<8x1xf32> to vector<8x8xf32>
    %273 = arith.subf %269, %272 : vector<8x8xf32>
    %274 = math.exp %273 : vector<8x8xf32>
    %cst_70 = arith.constant dense<0.000000e+00> : vector<8xf32>
    %275 = vector.multi_reduction <add>, %274, %cst_70 [1] : vector<8x8xf32> to vector<8xf32>
    %276 = vector.shape_cast %275 : vector<8xf32> to vector<8x1xf32>
    %277 = tpu.reciprocal %276 {approx = true} : vector<8x1xf32> -> vector<8x1xf32>
    %278 = vector.broadcast %277 : vector<8x1xf32> to vector<8x8xf32>
    %279 = arith.mulf %274, %278 : vector<8x8xf32>
    %280 = vector.shape_cast %279 : vector<8x8xf32> to vector<8x8x1xf32>
    %281 = vector.broadcast %280 : vector<8x8x1xf32> to vector<8x8x96xf32>
    %282 = arith.mulf %281, %1 : vector<8x8x96xf32>
    %cst_71 = arith.constant dense<0.000000e+00> : vector<8x96xf32>
    %283 = vector.multi_reduction <add>, %282, %cst_71 [1] : vector<8x8x96xf32> to vector<8x96xf32>
    %c6_i32 = arith.constant 6 : i32
    return
  }
  func.func @transform_0(%arg0: i32) -> (i32, i32, i32) {
    %c0_i32 = arith.constant 0 : i32
    %c0_i32_0 = arith.constant 0 : i32
    %c0_i32_1 = arith.constant 0 : i32
    %c0_i32_2 = arith.constant 0 : i32
    return %c0_i32, %c0_i32_0, %c0_i32_1 : i32, i32, i32
  }
  func.func @transform_1(%arg0: i32) -> (i32, i32) {
    %c0_i32 = arith.constant 0 : i32
    %c0_i32_0 = arith.constant 0 : i32
    %c0_i32_1 = arith.constant 0 : i32
    return %c0_i32, %c0_i32_0 : i32, i32
  }
  func.func @transform_2(%arg0: i32) -> (i32, i32) {
    %c0_i32 = arith.constant 0 : i32
    %c0_i32_0 = arith.constant 0 : i32
    %c0_i32_1 = arith.constant 0 : i32
    return %c0_i32, %c0_i32_0 : i32, i32
  }
  func.func @transform_3(%arg0: i32) -> (i32, i32, i32) {
    %c0_i32 = arith.constant 0 : i32
    %c0_i32_0 = arith.constant 0 : i32
    %c0_i32_1 = arith.constant 0 : i32
    %c0_i32_2 = arith.constant 0 : i32
    return %c0_i32, %c0_i32_0, %c0_i32_1 : i32, i32, i32
  }
  func.func @transform_4(%arg0: i32) -> (i32, i32, i32) {
    %c0_i32 = arith.constant 0 : i32
    %c0_i32_0 = arith.constant 0 : i32
    %c0_i32_1 = arith.constant 0 : i32
    %c0_i32_2 = arith.constant 0 : i32
    return %c0_i32, %c0_i32_0, %c0_i32_1 : i32, i32, i32
  }
  func.func @transform_5(%arg0: i32) -> (i32, i32) {
    %c0_i32 = arith.constant 0 : i32
    %c0_i32_0 = arith.constant 0 : i32
    %c0_i32_1 = arith.constant 0 : i32
    return %c0_i32, %c0_i32_0 : i32, i32
  }
  func.func @transform_6(%arg0: i32) -> (i32, i32) {
    %c0_i32 = arith.constant 0 : i32
    %c0_i32_0 = arith.constant 0 : i32
    %c0_i32_1 = arith.constant 0 : i32
    return %c0_i32, %c0_i32_0 : i32, i32
  }
  func.func @transform_7(%arg0: i32) -> (i32, i32, i32) {
    %c0_i32 = arith.constant 0 : i32
    %c0_i32_0 = arith.constant 0 : i32
    %c0_i32_1 = arith.constant 0 : i32
    %c0_i32_2 = arith.constant 0 : i32
    return %c0_i32, %c0_i32_0, %c0_i32_1 : i32, i32, i32
  }
}

</mosaic_0001>

<llo_original>
// kernel: tpu_custom_call.1
$region0: #{tpu_custom_call.1}
  #allocation0 [shape = 'u32[]', space=smem, size = 0x4, offset = 0x4, fixed_abs, tag = 'smem constant byte address 0x4 - core index']
  #allocation1 [shape = 'u32[144,128]{1,0:T(1,128)}', space=vmem, size = 0x12000, scoped, tag = 'internal scratch']
  %s0 = inlined_call_operand.hbm [shape: f32[6,8,96], index: 0, kind: input, shape index: {}]
  %s1 = inlined_call_operand.hbm [shape: f32[8,32], index: 1, kind: input, shape index: {}]
  %s2 = inlined_call_operand.hbm [shape: f32[8,96], index: 2, kind: input, shape index: {}]
  %s3 = inlined_call_operand.hbm [shape: f32[8,8,32], index: 3, kind: input, shape index: {}]
  %s4 = inlined_call_operand.hbm [shape: f32[8,8,96], index: 4, kind: input, shape index: {}]
  %s5 = inlined_call_operand.hbm [shape: f32[32,96], index: 5, kind: input, shape index: {}]
  %s6 = inlined_call_operand.vmem [shape: f32[1,96], index: 6, kind: input, shape index: {}]
  %s7 = inlined_call_operand.hbm [shape: f32[6,8,32], index: 7, kind: output, shape index: {}]
  %s8 = sld [smem:[#allocation0]]
  $region62: #{tpu_custom_call.1} parent=0
    _
  %s10 = ssub.s32 1, %s8
  %s11 = scalar_select 0, %s10, %s8
  $region1: #{tpu_custom_call.1} parent=0
    #allocation2 [shape = 'u8[24576]{0}', space=vmem, size = 0x6000, scoped, tag = 'input window, operand 0, single buffered']
    #allocation3 [shape = 's32[1]{0}', space=sflag, size = 0x4, scoped, tag = 'scoped memory for tpu_custom_call.1']
    #allocation4 [shape = 's32[1]{0}', space=sflag, size = 0x4, scoped, tag = 'scoped memory for tpu_custom_call.1']
    #allocation5 [shape = 'u8[4096]{0}', space=vmem, size = 0x1000, scoped, tag = 'input window, operand 1, single buffered']
    #allocation6 [shape = 's32[1]{0}', space=sflag, size = 0x4, scoped, tag = 'scoped memory for tpu_custom_call.1']
    #allocation7 [shape = 'u8[4096]{0}', space=vmem, size = 0x1000, scoped, tag = 'input window, operand 2, single buffered']
    #allocation8 [shape = 'u8[32768]{0}', space=vmem, size = 0x8000, scoped, tag = 'input window, operand 3, single buffered']
    #allocation9 [shape = 's32[1]{0}', space=sflag, size = 0x4, scoped, tag = 'scoped memory for tpu_custom_call.1']
    #allocation10 [shape = 'u8[32768]{0}', space=vmem, size = 0x8000, scoped, tag = 'input window, operand 4, single buffered']
    #allocation11 [shape = 'u8[16384]{0}', space=vmem, size = 0x4000, scoped, tag = 'input window, operand 5, single buffered']
    #allocation12 [shape = 's32[1]{0}', space=sflag, size = 0x4, scoped, tag = 'scoped memory for tpu_custom_call.1']
    #allocation13 [shape = 'u8[24576]{0}', space=vmem, size = 0x6000, scoped, tag = 'output window, operand 0, single buffered']
    %12 = vsyncpa [#allocation3], 0
    %13 = vsyncpa [#allocation6], 0
    %14 = vsyncpa [#allocation9], 0
    %15 = vsyncpa [#allocation12], 0
    %16 = vsyncpa [#allocation4], 0
    // Predicated region
    $region2: #{tpu_custom_call.1} parent=1 // pred_check
      _
    $region3: #{tpu_custom_call.1} parent=1 // pred_check_branch
      %18 = sbr.rel (0) target = $region5
    $region4: #{tpu_custom_call.1} parent=1 // pred_region
      %s20 = ssub.s32 768, 768
      %21 = vsyncadd [#allocation3], %s20
      %s22 = sshll.u32 [#allocation2], 4
      %s23 = int_to_ptr.vmem [resolvable:$true] %s22
      %28 = dma.hbm_to_vmem [thread:$0]  %s0, 768, %s23, [#allocation3], 128, 128, 8
    $region5: #{tpu_custom_call.1} parent=1 // pred_fallthru
      _
    // Predicated region
    $region6: #{tpu_custom_call.1} parent=1 // pred_check
      _
    $region7: #{tpu_custom_call.1} parent=1 // pred_check_branch
      %30 = sbr.rel (0) target = $region9
    $region8: #{tpu_custom_call.1} parent=1 // pred_region
      %s32 = ssub.s32 128, 128
      %33 = vsyncadd [#allocation6], %s32
      %s35 = sshll.u32 [#allocation5], 4
      %s36 = int_to_ptr.vmem [resolvable:$true] %s35
      %38 = dma.hbm_to_vmem [thread:$0]  %s1, 128, %s36, [#allocation6]
    $region9: #{tpu_custom_call.1} parent=1 // pred_fallthru
      _
    // Predicated region
    $region10: #{tpu_custom_call.1} parent=1 // pred_check
      _
    $region11: #{tpu_custom_call.1} parent=1 // pred_check_branch
      %40 = sbr.rel (0) target = $region13
    $region12: #{tpu_custom_call.1} parent=1 // pred_region
      %s42 = ssub.s32 128, 128
      %43 = vsyncadd [#allocation6], %s42
      %s45 = sshll.u32 [#allocation7], 4
      %s46 = int_to_ptr.vmem [resolvable:$true] %s45
      %48 = dma.hbm_to_vmem [thread:$0]  %s2, 128, %s46, [#allocation6]
    $region13: #{tpu_custom_call.1} parent=1 // pred_fallthru
      _
    // Predicated region
    $region14: #{tpu_custom_call.1} parent=1 // pred_check
      _
    $region15: #{tpu_custom_call.1} parent=1 // pred_check_branch
      %50 = sbr.rel (0) target = $region17
    $region16: #{tpu_custom_call.1} parent=1 // pred_region
      %s52 = ssub.s32 1024, 1024
      %53 = vsyncadd [#allocation9], %s52
      %s54 = sshll.u32 [#allocation8], 4
      %s55 = int_to_ptr.vmem [resolvable:$true] %s54
      %60 = dma.hbm_to_vmem [thread:$0]  %s3, 1024, %s55, [#allocation9], 128, 128, 8
    $region17: #{tpu_custom_call.1} parent=1 // pred_fallthru
      _
    // Predicated region
    $region18: #{tpu_custom_call.1} parent=1 // pred_check
      _
    $region19: #{tpu_custom_call.1} parent=1 // pred_check_branch
      %62 = sbr.rel (0) target = $region21
    $region20: #{tpu_custom_call.1} parent=1 // pred_region
      %s64 = ssub.s32 1024, 1024
      %65 = vsyncadd [#allocation9], %s64
      %s66 = sshll.u32 [#allocation10], 4
      %s67 = int_to_ptr.vmem [resolvable:$true] %s66
      %72 = dma.hbm_to_vmem [thread:$0]  %s4, 1024, %s67, [#allocation9], 128, 128, 8
    $region21: #{tpu_custom_call.1} parent=1 // pred_fallthru
      _
    // Predicated region
    $region22: #{tpu_custom_call.1} parent=1 // pred_check
      _
    $region23: #{tpu_custom_call.1} parent=1 // pred_check_branch
      %74 = sbr.rel (0) target = $region25
    $region24: #{tpu_custom_call.1} parent=1 // pred_region
      %s76 = ssub.s32 512, 512
      %77 = vsyncadd [#allocation12], %s76
      %s78 = sshll.u32 [#allocation11], 4
      %s79 = int_to_ptr.vmem [resolvable:$true] %s78
      %84 = dma.hbm_to_vmem [thread:$0]  %s5, 512, %s79, [#allocation12], 128, 128, 8
    $region25: #{tpu_custom_call.1} parent=1 // pred_fallthru
      _
    // Predicated region
    $region26: #{tpu_custom_call.1} parent=1 // pred_check
      _
    $region27: #{tpu_custom_call.1} parent=1 // pred_check_branch
      %86 = sbr.rel (0) target = $region29
    $region28: #{tpu_custom_call.1} parent=1 // pred_region
      _
    $region29: #{tpu_custom_call.1} parent=1 // pred_fallthru
      _
    // Predicated region
    $region30: #{tpu_custom_call.1} parent=1 // pred_check
      _
    $region31: #{tpu_custom_call.1} parent=1 // pred_check_branch
      %88 = sbr.rel (0) target = $region33
    $region32: #{tpu_custom_call.1} parent=1 // pred_region
      %89 = dma.done [#allocation3], 768
    $region33: #{tpu_custom_call.1} parent=1 // pred_fallthru
      _
    // Predicated region
    $region34: #{tpu_custom_call.1} parent=1 // pred_check
      _
    $region35: #{tpu_custom_call.1} parent=1 // pred_check_branch
      %91 = sbr.rel (0) target = $region37
    $region36: #{tpu_custom_call.1} parent=1 // pred_region
      %92 = dma.done [#allocation6], 128
    $region37: #{tpu_custom_call.1} parent=1 // pred_fallthru
      _
    // Predicated region
    $region38: #{tpu_custom_call.1} parent=1 // pred_check
      _
    $region39: #{tpu_custom_call.1} parent=1 // pred_check_branch
      %94 = sbr.rel (0) target = $region41
    $region40: #{tpu_custom_call.1} parent=1 // pred_region
      %95 = dma.done [#allocation6], 128
    $region41: #{tpu_custom_call.1} parent=1 // pred_fallthru
      _
    // Predicated region
    $region42: #{tpu_custom_call.1} parent=1 // pred_check
      _
    $region43: #{tpu_custom_call.1} parent=1 // pred_check_branch
      %97 = sbr.rel (0) target = $region45
    $region44: #{tpu_custom_call.1} parent=1 // pred_region
      %98 = dma.done [#allocation9], 1024
    $region45: #{tpu_custom_call.1} parent=1 // pred_fallthru
      _
    // Predicated region
    $region46: #{tpu_custom_call.1} parent=1 // pred_check
      _
    $region47: #{tpu_custom_call.1} parent=1 // pred_check_branch
      %100 = sbr.rel (0) target = $region49
    $region48: #{tpu_custom_call.1} parent=1 // pred_region
      %101 = dma.done [#allocation9], 1024
    $region49: #{tpu_custom_call.1} parent=1 // pred_fallthru
      _
    // Predicated region
    $region50: #{tpu_custom_call.1} parent=1 // pred_check
      _
    $region51: #{tpu_custom_call.1} parent=1 // pred_check_branch
      %103 = sbr.rel (0) target = $region53
    $region52: #{tpu_custom_call.1} parent=1 // pred_region
      %104 = dma.done [#allocation12], 512
    $region53: #{tpu_custom_call.1} parent=1 // pred_fallthru
      _
    %v105 = vld [vmem:[#allocation8] sm:$0xff]
    %v106 = vld [vmem:[#allocation8 + $0x8] sm:$0xff]
    %v107 = vld [vmem:[#allocation8 + $0x10] sm:$0xff]
    %v108 = vld [vmem:[#allocation8 + $0x18] sm:$0xff]
    %v109 = vld [vmem:[#allocation8 + $0x20] sm:$0xff]
    %v110 = vld [vmem:[#allocation8 + $0x28] sm:$0xff]
    %v111 = vld [vmem:[#allocation8 + $0x30] sm:$0xff]
    %v112 = vld [vmem:[#allocation8 + $0x38] sm:$0xff]
    %v113 = vld [vmem:[#allocation10] sm:$0xff]
    %v114 = vld [vmem:[#allocation10 + $0x8] sm:$0xff]
    %v115 = vld [vmem:[#allocation10 + $0x10] sm:$0xff]
    %v116 = vld [vmem:[#allocation10 + $0x18] sm:$0xff]
    %v117 = vld [vmem:[#allocation10 + $0x20] sm:$0xff]
    %v118 = vld [vmem:[#allocation10 + $0x28] sm:$0xff]
    %v119 = vld [vmem:[#allocation10 + $0x30] sm:$0xff]
    %v120 = vld [vmem:[#allocation10 + $0x38] sm:$0xff]
    %v121 = vld [vmem:[#allocation11] sm:$0xff]
    %v122 = vld [vmem:[#allocation11 + $0x8] sm:$0xff]
    %v123 = vld [vmem:[#allocation11 + $0x10] sm:$0xff]
    %v124 = vld [vmem:[#allocation11 + $0x18] sm:$0xff]
    %v125 = vld [vmem:[%s6] sm:$0x1]
    %v127 = vlaneseq
    %v128 = vshrl.u32 %v127, 7
    %v129 = vsub.s32 0, %v128
    %v130 = vrot.slane %v125, %v129
    %v132 = vld [vmem:[#allocation5] sm:$0xff]
    %v133 = vld [vmem:[#allocation7] sm:$0xff]
    %v134 = vld [vmem:[#allocation2] sm:$0xff]
    %v135 = vadd.f32 %v134, %v133
    %vm136 = vcmask 261120
    %v138 = vsel %vm136, %v132, 0
    %140 = vmatprep.subr.mxu0 0.0
    %141 = vmatpush1.msra.mxu0 %v121
    %142 = vmatprep.subr.mxu0 0.0
    %143 = vmatpush1.msra.mxu0 %v122
    %144 = vmatprep.subr.mxu0 0.0
    %145 = vmatpush1.msra.mxu0 %v123
    %146 = vmatprep.subr.mxu0 0.0
    %147 = vmatpush1.msra.mxu0 %v124
    %148 = vmatprep.subr.mxu0 0.0
    %149 = vmatpush1.msra.mxu0 0.0
    %150 = vmatprep.subr.mxu0 0.0
    %151 = vmatpush1.msra.mxu0 0.0
    %152 = vmatprep.subr.mxu0 0.0
    %153 = vmatpush1.msra.mxu0 0.0
    %154 = vmatprep.subr.mxu0 0.0
    %155 = vmatpush1.msra.mxu0 0.0
    %156 = vmatprep.subr.mxu0 0.0
    %157 = vmatpush1.msra.mxu0 0.0
    %158 = vmatprep.subr.mxu0 0.0
    %159 = vmatpush1.msra.mxu0 0.0
    %160 = vmatprep.subr.mxu0 0.0
    %161 = vmatpush1.msra.mxu0 0.0
    %162 = vmatprep.subr.mxu0 0.0
    %163 = vmatpush1.msra.mxu0 0.0
    %164 = vmatprep.subr.mxu0 0.0
    %165 = vmatpush1.msra.mxu0 0.0
    %166 = vmatprep.subr.mxu0 0.0
    %167 = vmatpush1.msra.mxu0 0.0
    %168 = vmatprep.subr.mxu0 0.0
    %169 = vmatpush1.msra.mxu0 0.0
    %170 = vmatprep.subr.mxu0 0.0
    %171 = vmatpush1.msra.mxu0 0.0
    %172 = vmatprep.subr.mxu0 0.0
    %173 = vmatpush1.msra.mxu0 0.0
    %174 = vmatprep.subr.mxu0 0.0
    %175 = vmatpush1.msra.mxu0 0.0
    %176 = vmatprep.subr.mxu0 0.0
    %177 = vmatpush1.msra.mxu0 0.0
    %178 = vmatprep.subr.mxu0 0.0
    %179 = vmatpush1.msra.mxu0 0.0
    %180 = vmatprep.subr.mxu0 0.0
    %181 = vmatpush1.msra.mxu0 0.0
    %182 = vmatprep.subr.mxu0 0.0
    %183 = vmatpush1.msra.mxu0 0.0
    %184 = vmatprep.subr.mxu0 0.0
    %185 = vmatpush1.msra.mxu0 0.0
    %186 = vmatprep.subr.mxu0 0.0
    %187 = vmatpush1.msra.mxu0 0.0
    %188 = vmatprep.subr.mxu0 0.0
    %189 = vmatpush1.msra.mxu0 0.0
    %190 = vmatprep.subr.mxu0 0.0
    %191 = vmatpush1.msra.mxu0 0.0
    %192 = vmatprep.subr.mxu0 0.0
    %193 = vmatpush1.msra.mxu0 0.0
    %194 = vmatprep.subr.mxu0 0.0
    %195 = vmatpush1.msra.mxu0 0.0
    %196 = vmatprep.subr.mxu0 0.0
    %197 = vmatpush1.msra.mxu0 0.0
    %198 = vmatprep.subr.mxu0 0.0
    %199 = vmatpush1.msra.mxu0 0.0
    %200 = vmatprep.subr.mxu0 0.0
    %201 = vmatpush1.msra.mxu0 0.0
    %202 = vmatprep.subr.mxu0 0.0
    %203 = vmatpush1.msra.mxu0 0.0
    %204 = vmatprep.mubr.f32.mxu0 0.0
    %205 = vmatmul.mubr.f32.gmra.mrb[0].mxu0 %v138
    %v206 = vpop.f32.mrb[0].mxu0
    %v207 = vadd.f32 %v130, %v206
    %v208 = vpop.f32.mrb[0].mxu0
    %209 = vdwg.mxu0
    %v210 = vadd.f32 %v135, %v207
    %v211 = vxor.u32 %v210, 2147483648
    %v212 = vmul.f32 %v211, 1.442695
    %v213 = vpow.pop %v212
    %v214 = vadd.f32 %v213, 1.0
    %v215 = vrcp.pop %v214
    %v216 = vmul.f32 1.0, %v215
    %218 = vrot.lane.b32.xlu0 %v207, 64
    %v219 = vpop.permute.xlu0 %218
    %v221 = vmul.f32 %v216, %v219
    %223 = vrot.lane.b32.xlu0 %v221, 64
    %v224 = vpop.permute.xlu0 %223
    %v226 = vadd.f32 %v135, %v224
    %v227 = vtanh.pop %v226
    %229 = vrot.lane.b32.xlu0 %v227, 64
    %v230 = vpop.permute.xlu0 %229
    %v232 = vsub.f32 %v132, %v230
    %234 = vrot.lane.b32.xlu0 %v232, 32
    %v235 = vpop.permute.xlu0 %234
    %v237 = vmul.f32 %v216, %v235
    %239 = vrot.lane.b32.xlu0 %v237, 32
    %v240 = vpop.permute.xlu0 %239
    %v242 = vadd.f32 %v227, %v240
    %244 = vrot.lane.b32.xlu0 %v242, 64
    %v245 = vpop.permute.xlu0 %244
    %247 = vst.msk [vmem:[#allocation13] sm:$0xff] %vm136, %v245
    %v248 = vcombine.high %v242, %v242
    %v250 = vunpack.c.l.s4 1966171168
    %v251 = vunpack.c.0.s8 %v250
    %v252 = vlaneseq
    %v253 = vshrl.u32 %v252, 7
    %v254 = vsub.s32 %v251, %v253
    %v255 = vrot.slane %v242, %v254
    %v257 = vunpack.c.l.s4 1966171168
    %v258 = vunpack.c.0.s8 %v257
    %v259 = vlaneseq
    %v260 = vshrl.u32 %v259, 7
    %v261 = vsub.s32 %v258, %v260
    %v262 = vrot.slane %v248, %v261
    %v263 = vcombine.high %v255, %v255
    %v264 = vcombine.high %v262, %v262
    %v266 = vunpack.c.l.s4 1966171168
    %v267 = vunpack.c.0.s8 %v266
    %v268 = vlaneseq
    %v269 = vshrl.u32 %v268, 7
    %v270 = vsub.s32 %v267, %v269
    %v271 = vrot.slane %v255, %v270
    %v273 = vunpack.c.l.s4 1966171168
    %v274 = vunpack.c.0.s8 %v273
    %v275 = vlaneseq
    %v276 = vshrl.u32 %v275, 7
    %v277 = vsub.s32 %v274, %v276
    %v278 = vrot.slane %v262, %v277
    %v280 = vunpack.c.l.s4 1966171168
    %v281 = vunpack.c.0.s8 %v280
    %v282 = vlaneseq
    %v283 = vshrl.u32 %v282, 7
    %v284 = vsub.s32 %v281, %v283
    %v285 = vrot.slane %v263, %v284
    %v287 = vunpack.c.l.s4 1966171168
    %v288 = vunpack.c.0.s8 %v287
    %v289 = vlaneseq
    %v290 = vshrl.u32 %v289, 7
    %v291 = vsub.s32 %v288, %v290
    %v292 = vrot.slane %v264, %v291
    %v293 = vcombine.high %v271, %v271
    %v294 = vcombine.high %v278, %v278
    %v295 = vcombine.high %v285, %v285
    %v296 = vcombine.high %v292, %v292
    %v297 = vlaneseq
    %v298 = vshrl.u32 %v297, 7
    %v299 = vsub.s32 0, %v298
    %v300 = vrot.slane %v271, %v299
    %v301 = vlaneseq
    %v302 = vshrl.u32 %v301, 7
    %v303 = vsub.s32 0, %v302
    %v304 = vrot.slane %v285, %v303
    %v305 = vlaneseq
    %v306 = vshrl.u32 %v305, 7
    %v307 = vsub.s32 0, %v306
    %v308 = vrot.slane %v293, %v307
    %v309 = vlaneseq
    %v310 = vshrl.u32 %v309, 7
    %v311 = vsub.s32 0, %v310
    %v312 = vrot.slane %v295, %v311
    %v313 = vlaneseq
    %v314 = vshrl.u32 %v313, 7
    %v315 = vsub.s32 0, %v314
    %v316 = vrot.slane %v278, %v315
    %v317 = vlaneseq
    %v318 = vshrl.u32 %v317, 7
    %v319 = vsub.s32 0, %v318
    %v320 = vrot.slane %v292, %v319
    %v321 = vlaneseq
    %v322 = vshrl.u32 %v321, 7
    %v323 = vsub.s32 0, %v322
    %v324 = vrot.slane %v294, %v323
    %v325 = vlaneseq
    %v326 = vshrl.u32 %v325, 7
    %v327 = vsub.s32 0, %v326
    %v328 = vrot.slane %v296, %v327
    %329 = vrot.lane.b32.xlu0 %v300, 64
    %v330 = vpop.permute.xlu0 %329
    %331 = vrot.lane.b32.xlu0 %v304, 64
    %v332 = vpop.permute.xlu0 %331
    %333 = vrot.lane.b32.xlu0 %v308, 64
    %v334 = vpop.permute.xlu0 %333
    %335 = vrot.lane.b32.xlu0 %v312, 64
    %v336 = vpop.permute.xlu0 %335
    %337 = vrot.lane.b32.xlu0 %v316, 64
    %v338 = vpop.permute.xlu0 %337
    %339 = vrot.lane.b32.xlu0 %v320, 64
    %v340 = vpop.permute.xlu0 %339
    %341 = vrot.lane.b32.xlu0 %v324, 64
    %v342 = vpop.permute.xlu0 %341
    %343 = vrot.lane.b32.xlu0 %v328, 64
    %v344 = vpop.permute.xlu0 %343
    %v353 = vmul.f32 %v105, %v330
    %v354 = vmul.f32 %v106, %v332
    %v355 = vmul.f32 %v107, %v334
    %v356 = vmul.f32 %v108, %v336
    %v357 = vmul.f32 %v109, %v338
    %v358 = vmul.f32 %v110, %v340
    %v359 = vmul.f32 %v111, %v342
    %v360 = vmul.f32 %v112, %v344
    %v361 = vsel %vm136, %v353, 0.0
    %362 = vadd.xlane.f32.xlu0 %v361
    %v363 = vpop.xlane.xlu0 %362
    %v364 = vsel %vm136, %v354, 0.0
    %365 = vadd.xlane.f32.xlu0 %v364
    %v366 = vpop.xlane.xlu0 %365
    %v367 = vsel %vm136, %v355, 0.0
    %368 = vadd.xlane.f32.xlu0 %v367
    %v369 = vpop.xlane.xlu0 %368
    %v370 = vsel %vm136, %v356, 0.0
    %371 = vadd.xlane.f32.xlu0 %v370
    %v372 = vpop.xlane.xlu0 %371
    %v373 = vsel %vm136, %v357, 0.0
    %374 = vadd.xlane.f32.xlu0 %v373
    %v375 = vpop.xlane.xlu0 %374
    %v376 = vsel %vm136, %v358, 0.0
    %377 = vadd.xlane.f32.xlu0 %v376
    %v378 = vpop.xlane.xlu0 %377
    %v379 = vsel %vm136, %v359, 0.0
    %380 = vadd.xlane.f32.xlu0 %v379
    %v381 = vpop.xlane.xlu0 %380
    %v382 = vsel %vm136, %v360, 0.0
    %383 = vadd.xlane.f32.xlu0 %v382
    %v384 = vpop.xlane.xlu0 %383
    %v393 = vlaneseq
    %v394 = vand.u32 %v393, 127
    %v395 = vlaneseq
    %v396 = vshrl.u32 %v395, 7
    %v397 = vsub.s32 %v394, %v396
    %v398 = vrot.slane %v363, %v397
    %v399 = vlaneseq
    %v400 = vshrl.u32 %v399, 7
    %v401 = vsub.s32 %v394, %v400
    %v402 = vrot.slane %v366, %v401
    %v403 = vlaneseq
    %v404 = vshrl.u32 %v403, 7
    %v405 = vsub.s32 %v394, %v404
    %v406 = vrot.slane %v369, %v405
    %v407 = vlaneseq
    %v408 = vshrl.u32 %v407, 7
    %v409 = vsub.s32 %v394, %v408
    %v410 = vrot.slane %v372, %v409
    %v411 = vlaneseq
    %v412 = vshrl.u32 %v411, 7
    %v413 = vsub.s32 %v394, %v412
    %v414 = vrot.slane %v375, %v413
    %v415 = vlaneseq
    %v416 = vshrl.u32 %v415, 7
    %v417 = vsub.s32 %v394, %v416
    %v418 = vrot.slane %v378, %v417
    %v419 = vlaneseq
    %v420 = vshrl.u32 %v419, 7
    %v421 = vsub.s32 %v394, %v420
    %v422 = vrot.slane %v381, %v421
    %v423 = vlaneseq
    %v424 = vshrl.u32 %v423, 7
    %v425 = vsub.s32 %v394, %v424
    %v426 = vrot.slane %v384, %v425
    %vm427 = vcmask 1041409
    %v428 = vsel %vm427, %v402, %v398
    %vm429 = vcmask 1042434
    %v430 = vsel %vm429, %v406, %v428
    %vm431 = vcmask 1043459
    %v432 = vsel %vm431, %v410, %v430
    %vm433 = vcmask 1044484
    %v434 = vsel %vm433, %v414, %v432
    %vm435 = vcmask 1045509
    %v436 = vsel %vm435, %v418, %v434
    %vm437 = vcmask 1046534
    %v438 = vsel %vm437, %v422, %v436
    %vm439 = vcmask 1047559
    %v440 = vsel %vm439, %v426, %v438
    %vm442 = vcmask 64512
    %v443 = vsel %vm442, %v440, -inf
    %444 = vmax.xlane.f32.xlu0 %v443
    %v445 = vpop.xlane.xlu0 %444
    %v447 = vlaneseq
    %v448 = vshrl.u32 %v447, 7
    %v449 = vsub.s32 0, %v448
    %v450 = vrot.slane %v445, %v449
    %v451 = vlaneseq
    %v452 = vshrl.u32 %v451, 7
    %v453 = vsub.s32 1, %v452
    %v454 = vrot.slane %v445, %v453
    %v455 = vlaneseq
    %v456 = vshrl.u32 %v455, 7
    %v457 = vsub.s32 2, %v456
    %v458 = vrot.slane %v445, %v457
    %v459 = vlaneseq
    %v460 = vshrl.u32 %v459, 7
    %v461 = vsub.s32 3, %v460
    %v462 = vrot.slane %v445, %v461
    %v463 = vlaneseq
    %v464 = vshrl.u32 %v463, 7
    %v465 = vsub.s32 4, %v464
    %v466 = vrot.slane %v445, %v465
    %v467 = vlaneseq
    %v468 = vshrl.u32 %v467, 7
    %v469 = vsub.s32 5, %v468
    %v470 = vrot.slane %v445, %v469
    %v471 = vlaneseq
    %v472 = vshrl.u32 %v471, 7
    %v473 = vsub.s32 6, %v472
    %v474 = vrot.slane %v445, %v473
    %v475 = vlaneseq
    %v476 = vshrl.u32 %v475, 7
    %v477 = vsub.s32 7, %v476
    %v478 = vrot.slane %v445, %v477
    %v487 = vsub.f32 %v363, %v450
    %v488 = vsub.f32 %v366, %v454
    %v489 = vsub.f32 %v369, %v458
    %v490 = vsub.f32 %v372, %v462
    %v491 = vsub.f32 %v375, %v466
    %v492 = vsub.f32 %v378, %v470
    %v493 = vsub.f32 %v381, %v474
    %v494 = vsub.f32 %v384, %v478
    %v495 = vmul.f32 %v487, 1.442695
    %v496 = vpow.pop %v495
    %v497 = vmul.f32 %v488, 1.442695
    %v498 = vpow.pop %v497
    %v499 = vmul.f32 %v489, 1.442695
    %v500 = vpow.pop %v499
    %v501 = vmul.f32 %v490, 1.442695
    %v502 = vpow.pop %v501
    %v503 = vmul.f32 %v491, 1.442695
    %v504 = vpow.pop %v503
    %v505 = vmul.f32 %v492, 1.442695
    %v506 = vpow.pop %v505
    %v507 = vmul.f32 %v493, 1.442695
    %v508 = vpow.pop %v507
    %v509 = vmul.f32 %v494, 1.442695
    %v510 = vpow.pop %v509
    %519 = vset.pattern.permute.xlu0 0
    %520 = vperm.xlu0 %519, %v496
    %v521 = vpop.permute.xlu0 %520
    %522 = vset.pattern.permute.xlu0 0
    %523 = vperm.xlu0 %522, %v498
    %v524 = vpop.permute.xlu0 %523
    %525 = vset.pattern.permute.xlu0 0
    %526 = vperm.xlu0 %525, %v500
    %v527 = vpop.permute.xlu0 %526
    %528 = vset.pattern.permute.xlu0 0
    %529 = vperm.xlu0 %528, %v502
    %v530 = vpop.permute.xlu0 %529
    %531 = vset.pattern.permute.xlu0 0
    %532 = vperm.xlu0 %531, %v504
    %v533 = vpop.permute.xlu0 %532
    %534 = vset.pattern.permute.xlu0 0
    %535 = vperm.xlu0 %534, %v506
    %v536 = vpop.permute.xlu0 %535
    %537 = vset.pattern.permute.xlu0 0
    %538 = vperm.xlu0 %537, %v508
    %v539 = vpop.permute.xlu0 %538
    %540 = vset.pattern.permute.xlu0 0
    %541 = vperm.xlu0 %540, %v510
    %v542 = vpop.permute.xlu0 %541
    %v543 = vlaneseq
    %v544 = vshrl.u32 %v543, 7
    %v545 = vsub.s32 %v394, %v544
    %v546 = vrot.slane %v521, %v545
    %v547 = vlaneseq
    %v548 = vshrl.u32 %v547, 7
    %v549 = vsub.s32 %v394, %v548
    %v550 = vrot.slane %v524, %v549
    %v551 = vlaneseq
    %v552 = vshrl.u32 %v551, 7
    %v553 = vsub.s32 %v394, %v552
    %v554 = vrot.slane %v527, %v553
    %v555 = vlaneseq
    %v556 = vshrl.u32 %v555, 7
    %v557 = vsub.s32 %v394, %v556
    %v558 = vrot.slane %v530, %v557
    %v559 = vlaneseq
    %v560 = vshrl.u32 %v559, 7
    %v561 = vsub.s32 %v394, %v560
    %v562 = vrot.slane %v533, %v561
    %v563 = vlaneseq
    %v564 = vshrl.u32 %v563, 7
    %v565 = vsub.s32 %v394, %v564
    %v566 = vrot.slane %v536, %v565
    %v567 = vlaneseq
    %v568 = vshrl.u32 %v567, 7
    %v569 = vsub.s32 %v394, %v568
    %v570 = vrot.slane %v539, %v569
    %v571 = vlaneseq
    %v572 = vshrl.u32 %v571, 7
    %v573 = vsub.s32 %v394, %v572
    %v574 = vrot.slane %v542, %v573
    %v575 = vsel %vm427, %v550, %v546
    %v576 = vsel %vm429, %v554, %v575
    %v577 = vsel %vm431, %v558, %v576
    %v578 = vsel %vm433, %v562, %v577
    %v579 = vsel %vm435, %v566, %v578
    %v580 = vsel %vm437, %v570, %v579
    %v581 = vsel %vm439, %v574, %v580
    %v583 = vsel %vm442, %v581, 0.0
    %584 = vadd.xlane.f32.xlu0 %v583
    %v585 = vpop.xlane.xlu0 %584
    %v586 = vrcp.pop %v585
    %v588 = vlaneseq
    %v589 = vshrl.u32 %v588, 7
    %v590 = vsub.s32 0, %v589
    %v591 = vrot.slane %v586, %v590
    %v592 = vlaneseq
    %v593 = vshrl.u32 %v592, 7
    %v594 = vsub.s32 1, %v593
    %v595 = vrot.slane %v586, %v594
    %v596 = vlaneseq
    %v597 = vshrl.u32 %v596, 7
    %v598 = vsub.s32 2, %v597
    %v599 = vrot.slane %v586, %v598
    %v600 = vlaneseq
    %v601 = vshrl.u32 %v600, 7
    %v602 = vsub.s32 3, %v601
    %v603 = vrot.slane %v586, %v602
    %v604 = vlaneseq
    %v605 = vshrl.u32 %v604, 7
    %v606 = vsub.s32 4, %v605
    %v607 = vrot.slane %v586, %v606
    %v608 = vlaneseq
    %v609 = vshrl.u32 %v608, 7
    %v610 = vsub.s32 5, %v609
    %v611 = vrot.slane %v586, %v610
    %v612 = vlaneseq
    %v613 = vshrl.u32 %v612, 7
    %v614 = vsub.s32 6, %v613
    %v615 = vrot.slane %v586, %v614
    %v616 = vlaneseq
    %v617 = vshrl.u32 %v616, 7
    %v618 = vsub.s32 7, %v617
    %v619 = vrot.slane %v586, %v618
    %v628 = vmul.f32 %v496, %v591
    %v629 = vmul.f32 %v498, %v595
    %v630 = vmul.f32 %v500, %v599
    %v631 = vmul.f32 %v502, %v603
    %v632 = vmul.f32 %v504, %v607
    %v633 = vmul.f32 %v506, %v611
    %v634 = vmul.f32 %v508, %v615
    %v635 = vmul.f32 %v510, %v619
    %637 = vset.pattern.permute.xlu0 0
    %638 = vperm.xlu0 %637, %v628
    %v639 = vpop.permute.xlu0 %638
    %642 = vset.pattern.permute.xlu0 0
    %643 = vperm.xlu0 %642, %v629
    %v644 = vpop.permute.xlu0 %643
    %647 = vset.pattern.permute.xlu0 0
    %648 = vperm.xlu0 %647, %v630
    %v649 = vpop.permute.xlu0 %648
    %652 = vset.pattern.permute.xlu0 0
    %653 = vperm.xlu0 %652, %v631
    %v654 = vpop.permute.xlu0 %653
    %657 = vset.pattern.permute.xlu0 0
    %658 = vperm.xlu0 %657, %v632
    %v659 = vpop.permute.xlu0 %658
    %662 = vset.pattern.permute.xlu0 0
    %663 = vperm.xlu0 %662, %v633
    %v664 = vpop.permute.xlu0 %663
    %667 = vset.pattern.permute.xlu0 0
    %668 = vperm.xlu0 %667, %v634
    %v669 = vpop.permute.xlu0 %668
    %672 = vset.pattern.permute.xlu0 0
    %673 = vperm.xlu0 %672, %v635
    %v674 = vpop.permute.xlu0 %673
    %v676 = vmul.f32 %v639, %v113
    %v677 = vmul.f32 %v644, %v114
    %v678 = vmul.f32 %v649, %v115
    %v679 = vmul.f32 %v654, %v116
    %v680 = vmul.f32 %v659, %v117
    %v681 = vmul.f32 %v664, %v118
    %v682 = vmul.f32 %v669, %v119
    %v683 = vmul.f32 %v674, %v120
    %vm684 = vcmask 785408
    %v685 = vsel %vm684, %v676, 0.0
    %v686 = vrot.slane %v685, 4
    %v687 = vadd.f32 %v685, %v686
    %v688 = vrot.slane %v687, 2
    %v689 = vadd.f32 %v687, %v688
    %v690 = vrot.slane %v689, 1
    %v691 = vadd.f32 %v689, %v690
    %v692 = vsel %vm684, %v677, 0.0
    %v693 = vrot.slane %v692, 4
    %v694 = vadd.f32 %v692, %v693
    %v695 = vrot.slane %v694, 2
    %v696 = vadd.f32 %v694, %v695
    %v697 = vrot.slane %v696, 1
    %v698 = vadd.f32 %v696, %v697
    %v699 = vsel %vm684, %v678, 0.0
    %v700 = vrot.slane %v699, 4
    %v701 = vadd.f32 %v699, %v700
    %v702 = vrot.slane %v701, 2
    %v703 = vadd.f32 %v701, %v702
    %v704 = vrot.slane %v703, 1
    %v705 = vadd.f32 %v703, %v704
    %v706 = vsel %vm684, %v679, 0.0
    %v707 = vrot.slane %v706, 4
    %v708 = vadd.f32 %v706, %v707
    %v709 = vrot.slane %v708, 2
    %v710 = vadd.f32 %v708, %v709
    %v711 = vrot.slane %v710, 1
    %v712 = vadd.f32 %v710, %v711
    %v713 = vsel %vm684, %v680, 0.0
    %v714 = vrot.slane %v713, 4
    %v715 = vadd.f32 %v713, %v714
    %v716 = vrot.slane %v715, 2
    %v717 = vadd.f32 %v715, %v716
    %v718 = vrot.slane %v717, 1
    %v719 = vadd.f32 %v717, %v718
    %v720 = vsel %vm684, %v681, 0.0
    %v721 = vrot.slane %v720, 4
    %v722 = vadd.f32 %v720, %v721
    %v723 = vrot.slane %v722, 2
    %v724 = vadd.f32 %v722, %v723
    %v725 = vrot.slane %v724, 1
    %v726 = vadd.f32 %v724, %v725
    %v727 = vsel %vm684, %v682, 0.0
    %v728 = vrot.slane %v727, 4
    %v729 = vadd.f32 %v727, %v728
    %v730 = vrot.slane %v729, 2
    %v731 = vadd.f32 %v729, %v730
    %v732 = vrot.slane %v731, 1
    %v733 = vadd.f32 %v731, %v732
    %v734 = vsel %vm684, %v683, 0.0
    %v735 = vrot.slane %v734, 4
    %v736 = vadd.f32 %v734, %v735
    %v737 = vrot.slane %v736, 2
    %v738 = vadd.f32 %v736, %v737
    %v739 = vrot.slane %v738, 1
    %v740 = vadd.f32 %v738, %v739
    %s741 = scalar_lea.vmem [#allocation2], 8
    %v742 = vld [vmem:[%s741] sm:$0xff]
    %v751 = vsel %vm427, %v698, %v691
    %v752 = vsel %vm429, %v705, %v751
    %v753 = vsel %vm431, %v712, %v752
    %v754 = vsel %vm433, %v719, %v753
    %v755 = vsel %vm435, %v726, %v754
    %v756 = vsel %vm437, %v733, %v755
    %v757 = vsel %vm439, %v740, %v756
    %v759 = vadd.f32 %v742, %v757
    %v760 = vsel %vm136, %v245, 0
    %762 = vmatprep.subr.mxu0 0.0
    %763 = vmatpush1.msra.mxu0 %v121
    %764 = vmatprep.subr.mxu0 0.0
    %765 = vmatpush1.msra.mxu0 %v122
    %766 = vmatprep.subr.mxu0 0.0
    %767 = vmatpush1.msra.mxu0 %v123
    %768 = vmatprep.subr.mxu0 0.0
    %769 = vmatpush1.msra.mxu0 %v124
    %770 = vmatprep.subr.mxu0 0.0
    %771 = vmatpush1.msra.mxu0 0.0
    %772 = vmatprep.subr.mxu0 0.0
    %773 = vmatpush1.msra.mxu0 0.0
    %774 = vmatprep.subr.mxu0 0.0
    %775 = vmatpush1.msra.mxu0 0.0
    %776 = vmatprep.subr.mxu0 0.0
    %777 = vmatpush1.msra.mxu0 0.0
    %778 = vmatprep.subr.mxu0 0.0
    %779 = vmatpush1.msra.mxu0 0.0
    %780 = vmatprep.subr.mxu0 0.0
    %781 = vmatpush1.msra.mxu0 0.0
    %782 = vmatprep.subr.mxu0 0.0
    %783 = vmatpush1.msra.mxu0 0.0
    %784 = vmatprep.subr.mxu0 0.0
    %785 = vmatpush1.msra.mxu0 0.0
    %786 = vmatprep.subr.mxu0 0.0
    %787 = vmatpush1.msra.mxu0 0.0
    %788 = vmatprep.subr.mxu0 0.0
    %789 = vmatpush1.msra.mxu0 0.0
    %790 = vmatprep.subr.mxu0 0.0
    %791 = vmatpush1.msra.mxu0 0.0
    %792 = vmatprep.subr.mxu0 0.0
    %793 = vmatpush1.msra.mxu0 0.0
    %794 = vmatprep.subr.mxu0 0.0
    %795 = vmatpush1.msra.mxu0 0.0
    %796 = vmatprep.subr.mxu0 0.0
    %797 = vmatpush1.msra.mxu0 0.0
    %798 = vmatprep.subr.mxu0 0.0
    %799 = vmatpush1.msra.mxu0 0.0
    %800 = vmatprep.subr.mxu0 0.0
    %801 = vmatpush1.msra.mxu0 0.0
    %802 = vmatprep.subr.mxu0 0.0
    %803 = vmatpush1.msra.mxu0 0.0
    %804 = vmatprep.subr.mxu0 0.0
    %805 = vmatpush1.msra.mxu0 0.0
    %806 = vmatprep.subr.mxu0 0.0
    %807 = vmatpush1.msra.mxu0 0.0
    %808 = vmatprep.subr.mxu0 0.0
    %809 = vmatpush1.msra.mxu0 0.0
    %810 = vmatprep.subr.mxu0 0.0
    %811 = vmatpush1.msra.mxu0 0.0
    %812 = vmatprep.subr.mxu0 0.0
    %813 = vmatpush1.msra.mxu0 0.0
    %814 = vmatprep.subr.mxu0 0.0
    %815 = vmatpush1.msra.mxu0 0.0
    %816 = vmatprep.subr.mxu0 0.0
    %817 = vmatpush1.msra.mxu0 0.0
    %818 = vmatprep.subr.mxu0 0.0
    %819 = vmatpush1.msra.mxu0 0.0
    %820 = vmatprep.subr.mxu0 0.0
    %821 = vmatpush1.msra.mxu0 0.0
    %822 = vmatprep.subr.mxu0 0.0
    %823 = vmatpush1.msra.mxu0 0.0
    %824 = vmatprep.subr.mxu0 0.0
    %825 = vmatpush1.msra.mxu0 0.0
    %826 = vmatprep.mubr.f32.mxu0 0.0
    %827 = vmatmul.mubr.f32.gmra.mrb[0].mxu0 %v760
    %v828 = vpop.f32.mrb[0].mxu0
    %v829 = vadd.f32 %v130, %v828
    %v830 = vpop.f32.mrb[0].mxu0
    %831 = vdwg.mxu0
    %v832 = vadd.f32 %v759, %v829
    %v833 = vxor.u32 %v832, 2147483648
    %v834 = vmul.f32 %v833, 1.442695
    %v835 = vpow.pop %v834
    %v836 = vadd.f32 %v835, 1.0
    %v837 = vrcp.pop %v836
    %v838 = vmul.f32 1.0, %v837
    %840 = vrot.lane.b32.xlu0 %v829, 64
    %v841 = vpop.permute.xlu0 %840
    %v843 = vmul.f32 %v838, %v841
    %845 = vrot.lane.b32.xlu0 %v843, 64
    %v846 = vpop.permute.xlu0 %845
    %v848 = vadd.f32 %v759, %v846
    %v849 = vtanh.pop %v848
    %v850 = vsub.f32 %v242, %v849
    %852 = vrot.lane.b32.xlu0 %v850, 96
    %v853 = vpop.permute.xlu0 %852
    %v855 = vmul.f32 %v838, %v853
    %857 = vrot.lane.b32.xlu0 %v855, 32
    %v858 = vpop.permute.xlu0 %857
    %v860 = vadd.f32 %v849, %v858
    %862 = vrot.lane.b32.xlu0 %v860, 64
    %v863 = vpop.permute.xlu0 %862
    %s865 = scalar_lea.vmem [#allocation13], 8
    %866 = vst.msk [vmem:[%s865] sm:$0xff] %vm136, %v863
    %v867 = vcombine.high %v860, %v860
    %v869 = vunpack.c.l.s4 1966171168
    %v870 = vunpack.c.0.s8 %v869
    %v871 = vlaneseq
    %v872 = vshrl.u32 %v871, 7
    %v873 = vsub.s32 %v870, %v872
    %v874 = vrot.slane %v860, %v873
    %v876 = vunpack.c.l.s4 1966171168
    %v877 = vunpack.c.0.s8 %v876
    %v878 = vlaneseq
    %v879 = vshrl.u32 %v878, 7
    %v880 = vsub.s32 %v877, %v879
    %v881 = vrot.slane %v867, %v880
    %v882 = vcombine.high %v874, %v874
    %v883 = vcombine.high %v881, %v881
    %v885 = vunpack.c.l.s4 1966171168
    %v886 = vunpack.c.0.s8 %v885
    %v887 = vlaneseq
    %v888 = vshrl.u32 %v887, 7
    %v889 = vsub.s32 %v886, %v888
    %v890 = vrot.slane %v874, %v889
    %v892 = vunpack.c.l.s4 1966171168
    %v893 = vunpack.c.0.s8 %v892
    %v894 = vlaneseq
    %v895 = vshrl.u32 %v894, 7
    %v896 = vsub.s32 %v893, %v895
    %v897 = vrot.slane %v881, %v896
    %v899 = vunpack.c.l.s4 1966171168
    %v900 = vunpack.c.0.s8 %v899
    %v901 = vlaneseq
    %v902 = vshrl.u32 %v901, 7
    %v903 = vsub.s32 %v900, %v902
    %v904 = vrot.slane %v882, %v903
    %v906 = vunpack.c.l.s4 1966171168
    %v907 = vunpack.c.0.s8 %v906
    %v908 = vlaneseq
    %v909 = vshrl.u32 %v908, 7
    %v910 = vsub.s32 %v907, %v909
    %v911 = vrot.slane %v883, %v910
    %v912 = vcombine.high %v890, %v890
    %v913 = vcombine.high %v897, %v897
    %v914 = vcombine.high %v904, %v904
    %v915 = vcombine.high %v911, %v911
    %v916 = vlaneseq
    %v917 = vshrl.u32 %v916, 7
    %v918 = vsub.s32 0, %v917
    %v919 = vrot.slane %v890, %v918
    %v920 = vlaneseq
    %v921 = vshrl.u32 %v920, 7
    %v922 = vsub.s32 0, %v921
    %v923 = vrot.slane %v904, %v922
    %v924 = vlaneseq
    %v925 = vshrl.u32 %v924, 7
    %v926 = vsub.s32 0, %v925
    %v927 = vrot.slane %v912, %v926
    %v928 = vlaneseq
    %v929 = vshrl.u32 %v928, 7
    %v930 = vsub.s32 0, %v929
    %v931 = vrot.slane %v914, %v930
    %v932 = vlaneseq
    %v933 = vshrl.u32 %v932, 7
    %v934 = vsub.s32 0, %v933
    %v935 = vrot.slane %v897, %v934
    %v936 = vlaneseq
    %v937 = vshrl.u32 %v936, 7
    %v938 = vsub.s32 0, %v937
    %v939 = vrot.slane %v911, %v938
    %v940 = vlaneseq
    %v941 = vshrl.u32 %v940, 7
    %v942 = vsub.s32 0, %v941
    %v943 = vrot.slane %v913, %v942
    %v944 = vlaneseq
    %v945 = vshrl.u32 %v944, 7
    %v946 = vsub.s32 0, %v945
    %v947 = vrot.slane %v915, %v946
    %948 = vrot.lane.b32.xlu0 %v919, 64
    %v949 = vpop.permute.xlu0 %948
    %950 = vrot.lane.b32.xlu0 %v923, 64
    %v951 = vpop.permute.xlu0 %950
    %952 = vrot.lane.b32.xlu0 %v927, 64
    %v953 = vpop.permute.xlu0 %952
    %954 = vrot.lane.b32.xlu0 %v931, 64
    %v955 = vpop.permute.xlu0 %954
    %956 = vrot.lane.b32.xlu0 %v935, 64
    %v957 = vpop.permute.xlu0 %956
    %958 = vrot.lane.b32.xlu0 %v939, 64
    %v959 = vpop.permute.xlu0 %958
    %960 = vrot.lane.b32.xlu0 %v943, 64
    %v961 = vpop.permute.xlu0 %960
    %962 = vrot.lane.b32.xlu0 %v947, 64
    %v963 = vpop.permute.xlu0 %962
    %v972 = vmul.f32 %v105, %v949
    %v973 = vmul.f32 %v106, %v951
    %v974 = vmul.f32 %v107, %v953
    %v975 = vmul.f32 %v108, %v955
    %v976 = vmul.f32 %v109, %v957
    %v977 = vmul.f32 %v110, %v959
    %v978 = vmul.f32 %v111, %v961
    %v979 = vmul.f32 %v112, %v963
    %v980 = vsel %vm136, %v972, 0.0
    %981 = vadd.xlane.f32.xlu0 %v980
    %v982 = vpop.xlane.xlu0 %981
    %v983 = vsel %vm136, %v973, 0.0
    %984 = vadd.xlane.f32.xlu0 %v983
    %v985 = vpop.xlane.xlu0 %984
    %v986 = vsel %vm136, %v974, 0.0
    %987 = vadd.xlane.f32.xlu0 %v986
    %v988 = vpop.xlane.xlu0 %987
    %v989 = vsel %vm136, %v975, 0.0
    %990 = vadd.xlane.f32.xlu0 %v989
    %v991 = vpop.xlane.xlu0 %990
    %v992 = vsel %vm136, %v976, 0.0
    %993 = vadd.xlane.f32.xlu0 %v992
    %v994 = vpop.xlane.xlu0 %993
    %v995 = vsel %vm136, %v977, 0.0
    %996 = vadd.xlane.f32.xlu0 %v995
    %v997 = vpop.xlane.xlu0 %996
    %v998 = vsel %vm136, %v978, 0.0
    %999 = vadd.xlane.f32.xlu0 %v998
    %v1000 = vpop.xlane.xlu0 %999
    %v1001 = vsel %vm136, %v979, 0.0
    %1002 = vadd.xlane.f32.xlu0 %v1001
    %v1003 = vpop.xlane.xlu0 %1002
    %v1012 = vlaneseq
    %v1013 = vshrl.u32 %v1012, 7
    %v1014 = vsub.s32 %v394, %v1013
    %v1015 = vrot.slane %v982, %v1014
    %v1016 = vlaneseq
    %v1017 = vshrl.u32 %v1016, 7
    %v1018 = vsub.s32 %v394, %v1017
    %v1019 = vrot.slane %v985, %v1018
    %v1020 = vlaneseq
    %v1021 = vshrl.u32 %v1020, 7
    %v1022 = vsub.s32 %v394, %v1021
    %v1023 = vrot.slane %v988, %v1022
    %v1024 = vlaneseq
    %v1025 = vshrl.u32 %v1024, 7
    %v1026 = vsub.s32 %v394, %v1025
    %v1027 = vrot.slane %v991, %v1026
    %v1028 = vlaneseq
    %v1029 = vshrl.u32 %v1028, 7
    %v1030 = vsub.s32 %v394, %v1029
    %v1031 = vrot.slane %v994, %v1030
    %v1032 = vlaneseq
    %v1033 = vshrl.u32 %v1032, 7
    %v1034 = vsub.s32 %v394, %v1033
    %v1035 = vrot.slane %v997, %v1034
    %v1036 = vlaneseq
    %v1037 = vshrl.u32 %v1036, 7
    %v1038 = vsub.s32 %v394, %v1037
    %v1039 = vrot.slane %v1000, %v1038
    %v1040 = vlaneseq
    %v1041 = vshrl.u32 %v1040, 7
    %v1042 = vsub.s32 %v394, %v1041
    %v1043 = vrot.slane %v1003, %v1042
    %v1044 = vsel %vm427, %v1019, %v1015
    %v1045 = vsel %vm429, %v1023, %v1044
    %v1046 = vsel %vm431, %v1027, %v1045
    %v1047 = vsel %vm433, %v1031, %v1046
    %v1048 = vsel %vm435, %v1035, %v1047
    %v1049 = vsel %vm437, %v1039, %v1048
    %v1050 = vsel %vm439, %v1043, %v1049
    %v1052 = vsel %vm442, %v1050, -inf
    %1053 = vmax.xlane.f32.xlu0 %v1052
    %v1054 = vpop.xlane.xlu0 %1053
    %v1056 = vlaneseq
    %v1057 = vshrl.u32 %v1056, 7
    %v1058 = vsub.s32 0, %v1057
    %v1059 = vrot.slane %v1054, %v1058
    %v1060 = vlaneseq
    %v1061 = vshrl.u32 %v1060, 7
    %v1062 = vsub.s32 1, %v1061
    %v1063 = vrot.slane %v1054, %v1062
    %v1064 = vlaneseq
    %v1065 = vshrl.u32 %v1064, 7
    %v1066 = vsub.s32 2, %v1065
    %v1067 = vrot.slane %v1054, %v1066
    %v1068 = vlaneseq
    %v1069 = vshrl.u32 %v1068, 7
    %v1070 = vsub.s32 3, %v1069
    %v1071 = vrot.slane %v1054, %v1070
    %v1072 = vlaneseq
    %v1073 = vshrl.u32 %v1072, 7
    %v1074 = vsub.s32 4, %v1073
    %v1075 = vrot.slane %v1054, %v1074
    %v1076 = vlaneseq
    %v1077 = vshrl.u32 %v1076, 7
    %v1078 = vsub.s32 5, %v1077
    %v1079 = vrot.slane %v1054, %v1078
    %v1080 = vlaneseq
    %v1081 = vshrl.u32 %v1080, 7
    %v1082 = vsub.s32 6, %v1081
    %v1083 = vrot.slane %v1054, %v1082
    %v1084 = vlaneseq
    %v1085 = vshrl.u32 %v1084, 7
    %v1086 = vsub.s32 7, %v1085
    %v1087 = vrot.slane %v1054, %v1086
    %v1096 = vsub.f32 %v982, %v1059
    %v1097 = vsub.f32 %v985, %v1063
    %v1098 = vsub.f32 %v988, %v1067
    %v1099 = vsub.f32 %v991, %v1071
    %v1100 = vsub.f32 %v994, %v1075
    %v1101 = vsub.f32 %v997, %v1079
    %v1102 = vsub.f32 %v1000, %v1083
    %v1103 = vsub.f32 %v1003, %v1087
    %v1104 = vmul.f32 %v1096, 1.442695
    %v1105 = vpow.pop %v1104
    %v1106 = vmul.f32 %v1097, 1.442695
    %v1107 = vpow.pop %v1106
    %v1108 = vmul.f32 %v1098, 1.442695
    %v1109 = vpow.pop %v1108
    %v1110 = vmul.f32 %v1099, 1.442695
    %v1111 = vpow.pop %v1110
    %v1112 = vmul.f32 %v1100, 1.442695
    %v1113 = vpow.pop %v1112
    %v1114 = vmul.f32 %v1101, 1.442695
    %v1115 = vpow.pop %v1114
    %v1116 = vmul.f32 %v1102, 1.442695
    %v1117 = vpow.pop %v1116
    %v1118 = vmul.f32 %v1103, 1.442695
    %v1119 = vpow.pop %v1118
    %1128 = vset.pattern.permute.xlu0 0
    %1129 = vperm.xlu0 %1128, %v1105
    %v1130 = vpop.permute.xlu0 %1129
    %1131 = vset.pattern.permute.xlu0 0
    %1132 = vperm.xlu0 %1131, %v1107
    %v1133 = vpop.permute.xlu0 %1132
    %1134 = vset.pattern.permute.xlu0 0
    %1135 = vperm.xlu0 %1134, %v1109
    %v1136 = vpop.permute.xlu0 %1135
    %1137 = vset.pattern.permute.xlu0 0
    %1138 = vperm.xlu0 %1137, %v1111
    %v1139 = vpop.permute.xlu0 %1138
    %1140 = vset.pattern.permute.xlu0 0
    %1141 = vperm.xlu0 %1140, %v1113
    %v1142 = vpop.permute.xlu0 %1141
    %1143 = vset.pattern.permute.xlu0 0
    %1144 = vperm.xlu0 %1143, %v1115
    %v1145 = vpop.permute.xlu0 %1144
    %1146 = vset.pattern.permute.xlu0 0
    %1147 = vperm.xlu0 %1146, %v1117
    %v1148 = vpop.permute.xlu0 %1147
    %1149 = vset.pattern.permute.xlu0 0
    %1150 = vperm.xlu0 %1149, %v1119
    %v1151 = vpop.permute.xlu0 %1150
    %v1152 = vlaneseq
    %v1153 = vshrl.u32 %v1152, 7
    %v1154 = vsub.s32 %v394, %v1153
    %v1155 = vrot.slane %v1130, %v1154
    %v1156 = vlaneseq
    %v1157 = vshrl.u32 %v1156, 7
    %v1158 = vsub.s32 %v394, %v1157
    %v1159 = vrot.slane %v1133, %v1158
    %v1160 = vlaneseq
    %v1161 = vshrl.u32 %v1160, 7
    %v1162 = vsub.s32 %v394, %v1161
    %v1163 = vrot.slane %v1136, %v1162
    %v1164 = vlaneseq
    %v1165 = vshrl.u32 %v1164, 7
    %v1166 = vsub.s32 %v394, %v1165
    %v1167 = vrot.slane %v1139, %v1166
    %v1168 = vlaneseq
    %v1169 = vshrl.u32 %v1168, 7
    %v1170 = vsub.s32 %v394, %v1169
    %v1171 = vrot.slane %v1142, %v1170
    %v1172 = vlaneseq
    %v1173 = vshrl.u32 %v1172, 7
    %v1174 = vsub.s32 %v394, %v1173
    %v1175 = vrot.slane %v1145, %v1174
    %v1176 = vlaneseq
    %v1177 = vshrl.u32 %v1176, 7
    %v1178 = vsub.s32 %v394, %v1177
    %v1179 = vrot.slane %v1148, %v1178
    %v1180 = vlaneseq
    %v1181 = vshrl.u32 %v1180, 7
    %v1182 = vsub.s32 %v394, %v1181
    %v1183 = vrot.slane %v1151, %v1182
    %v1184 = vsel %vm427, %v1159, %v1155
    %v1185 = vsel %vm429, %v1163, %v1184
    %v1186 = vsel %vm431, %v1167, %v1185
    %v1187 = vsel %vm433, %v1171, %v1186
    %v1188 = vsel %vm435, %v1175, %v1187
    %v1189 = vsel %vm437, %v1179, %v1188
    %v1190 = vsel %vm439, %v1183, %v1189
    %v1192 = vsel %vm442, %v1190, 0.0
    %1193 = vadd.xlane.f32.xlu0 %v1192
    %v1194 = vpop.xlane.xlu0 %1193
    %v1195 = vrcp.pop %v1194
    %v1197 = vlaneseq
    %v1198 = vshrl.u32 %v1197, 7
    %v1199 = vsub.s32 0, %v1198
    %v1200 = vrot.slane %v1195, %v1199
    %v1201 = vlaneseq
    %v1202 = vshrl.u32 %v1201, 7
    %v1203 = vsub.s32 1, %v1202
    %v1204 = vrot.slane %v1195, %v1203
    %v1205 = vlaneseq
    %v1206 = vshrl.u32 %v1205, 7
    %v1207 = vsub.s32 2, %v1206
    %v1208 = vrot.slane %v1195, %v1207
    %v1209 = vlaneseq
    %v1210 = vshrl.u32 %v1209, 7
    %v1211 = vsub.s32 3, %v1210
    %v1212 = vrot.slane %v1195, %v1211
    %v1213 = vlaneseq
    %v1214 = vshrl.u32 %v1213, 7
    %v1215 = vsub.s32 4, %v1214
    %v1216 = vrot.slane %v1195, %v1215
    %v1217 = vlaneseq
    %v1218 = vshrl.u32 %v1217, 7
    %v1219 = vsub.s32 5, %v1218
    %v1220 = vrot.slane %v1195, %v1219
    %v1221 = vlaneseq
    %v1222 = vshrl.u32 %v1221, 7
    %v1223 = vsub.s32 6, %v1222
    %v1224 = vrot.slane %v1195, %v1223
    %v1225 = vlaneseq
    %v1226 = vshrl.u32 %v1225, 7
    %v1227 = vsub.s32 7, %v1226
    %v1228 = vrot.slane %v1195, %v1227
    %v1237 = vmul.f32 %v1105, %v1200
    %v1238 = vmul.f32 %v1107, %v1204
    %v1239 = vmul.f32 %v1109, %v1208
    %v1240 = vmul.f32 %v1111, %v1212
    %v1241 = vmul.f32 %v1113, %v1216
    %v1242 = vmul.f32 %v1115, %v1220
    %v1243 = vmul.f32 %v1117, %v1224
    %v1244 = vmul.f32 %v1119, %v1228
    %1246 = vset.pattern.permute.xlu0 0
    %1247 = vperm.xlu0 %1246, %v1237
    %v1248 = vpop.permute.xlu0 %1247
    %1251 = vset.pattern.permute.xlu0 0
    %1252 = vperm.xlu0 %1251, %v1238
    %v1253 = vpop.permute.xlu0 %1252
    %1256 = vset.pattern.permute.xlu0 0
    %1257 = vperm.xlu0 %1256, %v1239
    %v1258 = vpop.permute.xlu0 %1257
    %1261 = vset.pattern.permute.xlu0 0
    %1262 = vperm.xlu0 %1261, %v1240
    %v1263 = vpop.permute.xlu0 %1262
    %1266 = vset.pattern.permute.xlu0 0
    %1267 = vperm.xlu0 %1266, %v1241
    %v1268 = vpop.permute.xlu0 %1267
    %1271 = vset.pattern.permute.xlu0 0
    %1272 = vperm.xlu0 %1271, %v1242
    %v1273 = vpop.permute.xlu0 %1272
    %1276 = vset.pattern.permute.xlu0 0
    %1277 = vperm.xlu0 %1276, %v1243
    %v1278 = vpop.permute.xlu0 %1277
    %1281 = vset.pattern.permute.xlu0 0
    %1282 = vperm.xlu0 %1281, %v1244
    %v1283 = vpop.permute.xlu0 %1282
    %v1285 = vmul.f32 %v1248, %v113
    %v1286 = vmul.f32 %v1253, %v114
    %v1287 = vmul.f32 %v1258, %v115
    %v1288 = vmul.f32 %v1263, %v116
    %v1289 = vmul.f32 %v1268, %v117
    %v1290 = vmul.f32 %v1273, %v118
    %v1291 = vmul.f32 %v1278, %v119
    %v1292 = vmul.f32 %v1283, %v120
    %v1293 = vsel %vm684, %v1285, 0.0
    %v1294 = vrot.slane %v1293, 4
    %v1295 = vadd.f32 %v1293, %v1294
    %v1296 = vrot.slane %v1295, 2
    %v1297 = vadd.f32 %v1295, %v1296
    %v1298 = vrot.slane %v1297, 1
    %v1299 = vadd.f32 %v1297, %v1298
    %v1300 = vsel %vm684, %v1286, 0.0
    %v1301 = vrot.slane %v1300, 4
    %v1302 = vadd.f32 %v1300, %v1301
    %v1303 = vrot.slane %v1302, 2
    %v1304 = vadd.f32 %v1302, %v1303
    %v1305 = vrot.slane %v1304, 1
    %v1306 = vadd.f32 %v1304, %v1305
    %v1307 = vsel %vm684, %v1287, 0.0
    %v1308 = vrot.slane %v1307, 4
    %v1309 = vadd.f32 %v1307, %v1308
    %v1310 = vrot.slane %v1309, 2
    %v1311 = vadd.f32 %v1309, %v1310
    %v1312 = vrot.slane %v1311, 1
    %v1313 = vadd.f32 %v1311, %v1312
    %v1314 = vsel %vm684, %v1288, 0.0
    %v1315 = vrot.slane %v1314, 4
    %v1316 = vadd.f32 %v1314, %v1315
    %v1317 = vrot.slane %v1316, 2
    %v1318 = vadd.f32 %v1316, %v1317
    %v1319 = vrot.slane %v1318, 1
    %v1320 = vadd.f32 %v1318, %v1319
    %v1321 = vsel %vm684, %v1289, 0.0
    %v1322 = vrot.slane %v1321, 4
    %v1323 = vadd.f32 %v1321, %v1322
    %v1324 = vrot.slane %v1323, 2
    %v1325 = vadd.f32 %v1323, %v1324
    %v1326 = vrot.slane %v1325, 1
    %v1327 = vadd.f32 %v1325, %v1326
    %v1328 = vsel %vm684, %v1290, 0.0
    %v1329 = vrot.slane %v1328, 4
    %v1330 = vadd.f32 %v1328, %v1329
    %v1331 = vrot.slane %v1330, 2
    %v1332 = vadd.f32 %v1330, %v1331
    %v1333 = vrot.slane %v1332, 1
    %v1334 = vadd.f32 %v1332, %v1333
    %v1335 = vsel %vm684, %v1291, 0.0
    %v1336 = vrot.slane %v1335, 4
    %v1337 = vadd.f32 %v1335, %v1336
    %v1338 = vrot.slane %v1337, 2
    %v1339 = vadd.f32 %v1337, %v1338
    %v1340 = vrot.slane %v1339, 1
    %v1341 = vadd.f32 %v1339, %v1340
    %v1342 = vsel %vm684, %v1292, 0.0
    %v1343 = vrot.slane %v1342, 4
    %v1344 = vadd.f32 %v1342, %v1343
    %v1345 = vrot.slane %v1344, 2
    %v1346 = vadd.f32 %v1344, %v1345
    %v1347 = vrot.slane %v1346, 1
    %v1348 = vadd.f32 %v1346, %v1347
    %s1349 = scalar_lea.vmem [#allocation2], 16
    %v1350 = vld [vmem:[%s1349] sm:$0xff]
    %v1359 = vsel %vm427, %v1306, %v1299
    %v1360 = vsel %vm429, %v1313, %v1359
    %v1361 = vsel %vm431, %v1320, %v1360
    %v1362 = vsel %vm433, %v1327, %v1361
    %v1363 = vsel %vm435, %v1334, %v1362
    %v1364 = vsel %vm437, %v1341, %v1363
    %v1365 = vsel %vm439, %v1348, %v1364
    %v1367 = vadd.f32 %v1350, %v1365
    %v1368 = vsel %vm136, %v863, 0
    %1370 = vmatprep.subr.mxu0 0.0
    %1371 = vmatpush1.msra.mxu0 %v121
    %1372 = vmatprep.subr.mxu0 0.0
    %1373 = vmatpush1.msra.mxu0 %v122
    %1374 = vmatprep.subr.mxu0 0.0
    %1375 = vmatpush1.msra.mxu0 %v123
    %1376 = vmatprep.subr.mxu0 0.0
    %1377 = vmatpush1.msra.mxu0 %v124
    %1378 = vmatprep.subr.mxu0 0.0
    %1379 = vmatpush1.msra.mxu0 0.0
    %1380 = vmatprep.subr.mxu0 0.0
    %1381 = vmatpush1.msra.mxu0 0.0
    %1382 = vmatprep.subr.mxu0 0.0
    %1383 = vmatpush1.msra.mxu0 0.0
    %1384 = vmatprep.subr.mxu0 0.0
    %1385 = vmatpush1.msra.mxu0 0.0
    %1386 = vmatprep.subr.mxu0 0.0
    %1387 = vmatpush1.msra.mxu0 0.0
    %1388 = vmatprep.subr.mxu0 0.0
    %1389 = vmatpush1.msra.mxu0 0.0
    %1390 = vmatprep.subr.mxu0 0.0
    %1391 = vmatpush1.msra.mxu0 0.0
    %1392 = vmatprep.subr.mxu0 0.0
    %1393 = vmatpush1.msra.mxu0 0.0
    %1394 = vmatprep.subr.mxu0 0.0
    %1395 = vmatpush1.msra.mxu0 0.0
    %1396 = vmatprep.subr.mxu0 0.0
    %1397 = vmatpush1.msra.mxu0 0.0
    %1398 = vmatprep.subr.mxu0 0.0
    %1399 = vmatpush1.msra.mxu0 0.0
    %1400 = vmatprep.subr.mxu0 0.0
    %1401 = vmatpush1.msra.mxu0 0.0
    %1402 = vmatprep.subr.mxu0 0.0
    %1403 = vmatpush1.msra.mxu0 0.0
    %1404 = vmatprep.subr.mxu0 0.0
    %1405 = vmatpush1.msra.mxu0 0.0
    %1406 = vmatprep.subr.mxu0 0.0
    %1407 = vmatpush1.msra.mxu0 0.0
    %1408 = vmatprep.subr.mxu0 0.0
    %1409 = vmatpush1.msra.mxu0 0.0
    %1410 = vmatprep.subr.mxu0 0.0
    %1411 = vmatpush1.msra.mxu0 0.0
    %1412 = vmatprep.subr.mxu0 0.0
    %1413 = vmatpush1.msra.mxu0 0.0
    %1414 = vmatprep.subr.mxu0 0.0
    %1415 = vmatpush1.msra.mxu0 0.0
    %1416 = vmatprep.subr.mxu0 0.0
    %1417 = vmatpush1.msra.mxu0 0.0
    %1418 = vmatprep.subr.mxu0 0.0
    %1419 = vmatpush1.msra.mxu0 0.0
    %1420 = vmatprep.subr.mxu0 0.0
    %1421 = vmatpush1.msra.mxu0 0.0
    %1422 = vmatprep.subr.mxu0 0.0
    %1423 = vmatpush1.msra.mxu0 0.0
    %1424 = vmatprep.subr.mxu0 0.0
    %1425 = vmatpush1.msra.mxu0 0.0
    %1426 = vmatprep.subr.mxu0 0.0
    %1427 = vmatpush1.msra.mxu0 0.0
    %1428 = vmatprep.subr.mxu0 0.0
    %1429 = vmatpush1.msra.mxu0 0.0
    %1430 = vmatprep.subr.mxu0 0.0
    %1431 = vmatpush1.msra.mxu0 0.0
    %1432 = vmatprep.subr.mxu0 0.0
    %1433 = vmatpush1.msra.mxu0 0.0
    %1434 = vmatprep.mubr.f32.mxu0 0.0
    %1435 = vmatmul.mubr.f32.gmra.mrb[0].mxu0 %v1368
    %v1436 = vpop.f32.mrb[0].mxu0
    %v1437 = vadd.f32 %v130, %v1436
    %v1438 = vpop.f32.mrb[0].mxu0
    %1439 = vdwg.mxu0
    %v1440 = vadd.f32 %v1367, %v1437
    %v1441 = vxor.u32 %v1440, 2147483648
    %v1442 = vmul.f32 %v1441, 1.442695
    %v1443 = vpow.pop %v1442
    %v1444 = vadd.f32 %v1443, 1.0
    %v1445 = vrcp.pop %v1444
    %v1446 = vmul.f32 1.0, %v1445
    %1448 = vrot.lane.b32.xlu0 %v1437, 64
    %v1449 = vpop.permute.xlu0 %1448
    %v1451 = vmul.f32 %v1446, %v1449
    %1453 = vrot.lane.b32.xlu0 %v1451, 64
    %v1454 = vpop.permute.xlu0 %1453
    %v1456 = vadd.f32 %v1367, %v1454
    %v1457 = vtanh.pop %v1456
    %v1458 = vsub.f32 %v860, %v1457
    %1460 = vrot.lane.b32.xlu0 %v1458, 96
    %v1461 = vpop.permute.xlu0 %1460
    %v1463 = vmul.f32 %v1446, %v1461
    %1465 = vrot.lane.b32.xlu0 %v1463, 32
    %v1466 = vpop.permute.xlu0 %1465
    %v1468 = vadd.f32 %v1457, %v1466
    %1470 = vrot.lane.b32.xlu0 %v1468, 64
    %v1471 = vpop.permute.xlu0 %1470
    %s1473 = scalar_lea.vmem [#allocation13], 16
    %1474 = vst.msk [vmem:[%s1473] sm:$0xff] %vm136, %v1471
    %v1475 = vcombine.high %v1468, %v1468
    %v1477 = vunpack.c.l.s4 1966171168
    %v1478 = vunpack.c.0.s8 %v1477
    %v1479 = vlaneseq
    %v1480 = vshrl.u32 %v1479, 7
    %v1481 = vsub.s32 %v1478, %v1480
    %v1482 = vrot.slane %v1468, %v1481
    %v1484 = vunpack.c.l.s4 1966171168
    %v1485 = vunpack.c.0.s8 %v1484
    %v1486 = vlaneseq
    %v1487 = vshrl.u32 %v1486, 7
    %v1488 = vsub.s32 %v1485, %v1487
    %v1489 = vrot.slane %v1475, %v1488
    %v1490 = vcombine.high %v1482, %v1482
    %v1491 = vcombine.high %v1489, %v1489
    %v1493 = vunpack.c.l.s4 1966171168
    %v1494 = vunpack.c.0.s8 %v1493
    %v1495 = vlaneseq
    %v1496 = vshrl.u32 %v1495, 7
    %v1497 = vsub.s32 %v1494, %v1496
    %v1498 = vrot.slane %v1482, %v1497
    %v1500 = vunpack.c.l.s4 1966171168
    %v1501 = vunpack.c.0.s8 %v1500
    %v1502 = vlaneseq
    %v1503 = vshrl.u32 %v1502, 7
    %v1504 = vsub.s32 %v1501, %v1503
    %v1505 = vrot.slane %v1489, %v1504
    %v1507 = vunpack.c.l.s4 1966171168
    %v1508 = vunpack.c.0.s8 %v1507
    %v1509 = vlaneseq
    %v1510 = vshrl.u32 %v1509, 7
    %v1511 = vsub.s32 %v1508, %v1510
    %v1512 = vrot.slane %v1490, %v1511
    %v1514 = vunpack.c.l.s4 1966171168
    %v1515 = vunpack.c.0.s8 %v1514
    %v1516 = vlaneseq
    %v1517 = vshrl.u32 %v1516, 7
    %v1518 = vsub.s32 %v1515, %v1517
    %v1519 = vrot.slane %v1491, %v1518
    %v1520 = vcombine.high %v1498, %v1498
    %v1521 = vcombine.high %v1505, %v1505
    %v1522 = vcombine.high %v1512, %v1512
    %v1523 = vcombine.high %v1519, %v1519
    %v1524 = vlaneseq
    %v1525 = vshrl.u32 %v1524, 7
    %v1526 = vsub.s32 0, %v1525
    %v1527 = vrot.slane %v1498, %v1526
    %v1528 = vlaneseq
    %v1529 = vshrl.u32 %v1528, 7
    %v1530 = vsub.s32 0, %v1529
    %v1531 = vrot.slane %v1512, %v1530
    %v1532 = vlaneseq
    %v1533 = vshrl.u32 %v1532, 7
    %v1534 = vsub.s32 0, %v1533
    %v1535 = vrot.slane %v1520, %v1534
    %v1536 = vlaneseq
    %v1537 = vshrl.u32 %v1536, 7
    %v1538 = vsub.s32 0, %v1537
    %v1539 = vrot.slane %v1522, %v1538
    %v1540 = vlaneseq
    %v1541 = vshrl.u32 %v1540, 7
    %v1542 = vsub.s32 0, %v1541
    %v1543 = vrot.slane %v1505, %v1542
    %v1544 = vlaneseq
    %v1545 = vshrl.u32 %v1544, 7
    %v1546 = vsub.s32 0, %v1545
    %v1547 = vrot.slane %v1519, %v1546
    %v1548 = vlaneseq
    %v1549 = vshrl.u32 %v1548, 7
    %v1550 = vsub.s32 0, %v1549
    %v1551 = vrot.slane %v1521, %v1550
    %v1552 = vlaneseq
    %v1553 = vshrl.u32 %v1552, 7
    %v1554 = vsub.s32 0, %v1553
    %v1555 = vrot.slane %v1523, %v1554
    %1556 = vrot.lane.b32.xlu0 %v1527, 64
    %v1557 = vpop.permute.xlu0 %1556
    %1558 = vrot.lane.b32.xlu0 %v1531, 64
    %v1559 = vpop.permute.xlu0 %1558
    %1560 = vrot.lane.b32.xlu0 %v1535, 64
    %v1561 = vpop.permute.xlu0 %1560
    %1562 = vrot.lane.b32.xlu0 %v1539, 64
    %v1563 = vpop.permute.xlu0 %1562
    %1564 = vrot.lane.b32.xlu0 %v1543, 64
    %v1565 = vpop.permute.xlu0 %1564
    %1566 = vrot.lane.b32.xlu0 %v1547, 64
    %v1567 = vpop.permute.xlu0 %1566
    %1568 = vrot.lane.b32.xlu0 %v1551, 64
    %v1569 = vpop.permute.xlu0 %1568
    %1570 = vrot.lane.b32.xlu0 %v1555, 64
    %v1571 = vpop.permute.xlu0 %1570
    %v1580 = vmul.f32 %v105, %v1557
    %v1581 = vmul.f32 %v106, %v1559
    %v1582 = vmul.f32 %v107, %v1561
    %v1583 = vmul.f32 %v108, %v1563
    %v1584 = vmul.f32 %v109, %v1565
    %v1585 = vmul.f32 %v110, %v1567
    %v1586 = vmul.f32 %v111, %v1569
    %v1587 = vmul.f32 %v112, %v1571
    %v1588 = vsel %vm136, %v1580, 0.0
    %1589 = vadd.xlane.f32.xlu0 %v1588
    %v1590 = vpop.xlane.xlu0 %1589
    %v1591 = vsel %vm136, %v1581, 0.0
    %1592 = vadd.xlane.f32.xlu0 %v1591
    %v1593 = vpop.xlane.xlu0 %1592
    %v1594 = vsel %vm136, %v1582, 0.0
    %1595 = vadd.xlane.f32.xlu0 %v1594
    %v1596 = vpop.xlane.xlu0 %1595
    %v1597 = vsel %vm136, %v1583, 0.0
    %1598 = vadd.xlane.f32.xlu0 %v1597
    %v1599 = vpop.xlane.xlu0 %1598
    %v1600 = vsel %vm136, %v1584, 0.0
    %1601 = vadd.xlane.f32.xlu0 %v1600
    %v1602 = vpop.xlane.xlu0 %1601
    %v1603 = vsel %vm136, %v1585, 0.0
    %1604 = vadd.xlane.f32.xlu0 %v1603
    %v1605 = vpop.xlane.xlu0 %1604
    %v1606 = vsel %vm136, %v1586, 0.0
    %1607 = vadd.xlane.f32.xlu0 %v1606
    %v1608 = vpop.xlane.xlu0 %1607
    %v1609 = vsel %vm136, %v1587, 0.0
    %1610 = vadd.xlane.f32.xlu0 %v1609
    %v1611 = vpop.xlane.xlu0 %1610
    %v1620 = vlaneseq
    %v1621 = vshrl.u32 %v1620, 7
    %v1622 = vsub.s32 %v394, %v1621
    %v1623 = vrot.slane %v1590, %v1622
    %v1624 = vlaneseq
    %v1625 = vshrl.u32 %v1624, 7
    %v1626 = vsub.s32 %v394, %v1625
    %v1627 = vrot.slane %v1593, %v1626
    %v1628 = vlaneseq
    %v1629 = vshrl.u32 %v1628, 7
    %v1630 = vsub.s32 %v394, %v1629
    %v1631 = vrot.slane %v1596, %v1630
    %v1632 = vlaneseq
    %v1633 = vshrl.u32 %v1632, 7
    %v1634 = vsub.s32 %v394, %v1633
    %v1635 = vrot.slane %v1599, %v1634
    %v1636 = vlaneseq
    %v1637 = vshrl.u32 %v1636, 7
    %v1638 = vsub.s32 %v394, %v1637
    %v1639 = vrot.slane %v1602, %v1638
    %v1640 = vlaneseq
    %v1641 = vshrl.u32 %v1640, 7
    %v1642 = vsub.s32 %v394, %v1641
    %v1643 = vrot.slane %v1605, %v1642
    %v1644 = vlaneseq
    %v1645 = vshrl.u32 %v1644, 7
    %v1646 = vsub.s32 %v394, %v1645
    %v1647 = vrot.slane %v1608, %v1646
    %v1648 = vlaneseq
    %v1649 = vshrl.u32 %v1648, 7
    %v1650 = vsub.s32 %v394, %v1649
    %v1651 = vrot.slane %v1611, %v1650
    %v1652 = vsel %vm427, %v1627, %v1623
    %v1653 = vsel %vm429, %v1631, %v1652
    %v1654 = vsel %vm431, %v1635, %v1653
    %v1655 = vsel %vm433, %v1639, %v1654
    %v1656 = vsel %vm435, %v1643, %v1655
    %v1657 = vsel %vm437, %v1647, %v1656
    %v1658 = vsel %vm439, %v1651, %v1657
    %v1660 = vsel %vm442, %v1658, -inf
    %1661 = vmax.xlane.f32.xlu0 %v1660
    %v1662 = vpop.xlane.xlu0 %1661
    %v1664 = vlaneseq
    %v1665 = vshrl.u32 %v1664, 7
    %v1666 = vsub.s32 0, %v1665
    %v1667 = vrot.slane %v1662, %v1666
    %v1668 = vlaneseq
    %v1669 = vshrl.u32 %v1668, 7
    %v1670 = vsub.s32 1, %v1669
    %v1671 = vrot.slane %v1662, %v1670
    %v1672 = vlaneseq
    %v1673 = vshrl.u32 %v1672, 7
    %v1674 = vsub.s32 2, %v1673
    %v1675 = vrot.slane %v1662, %v1674
    %v1676 = vlaneseq
    %v1677 = vshrl.u32 %v1676, 7
    %v1678 = vsub.s32 3, %v1677
    %v1679 = vrot.slane %v1662, %v1678
    %v1680 = vlaneseq
    %v1681 = vshrl.u32 %v1680, 7
    %v1682 = vsub.s32 4, %v1681
    %v1683 = vrot.slane %v1662, %v1682
    %v1684 = vlaneseq
    %v1685 = vshrl.u32 %v1684, 7
    %v1686 = vsub.s32 5, %v1685
    %v1687 = vrot.slane %v1662, %v1686
    %v1688 = vlaneseq
    %v1689 = vshrl.u32 %v1688, 7
    %v1690 = vsub.s32 6, %v1689
    %v1691 = vrot.slane %v1662, %v1690
    %v1692 = vlaneseq
    %v1693 = vshrl.u32 %v1692, 7
    %v1694 = vsub.s32 7, %v1693
    %v1695 = vrot.slane %v1662, %v1694
    %v1704 = vsub.f32 %v1590, %v1667
    %v1705 = vsub.f32 %v1593, %v1671
    %v1706 = vsub.f32 %v1596, %v1675
    %v1707 = vsub.f32 %v1599, %v1679
    %v1708 = vsub.f32 %v1602, %v1683
    %v1709 = vsub.f32 %v1605, %v1687
    %v1710 = vsub.f32 %v1608, %v1691
    %v1711 = vsub.f32 %v1611, %v1695
    %v1712 = vmul.f32 %v1704, 1.442695
    %v1713 = vpow.pop %v1712
    %v1714 = vmul.f32 %v1705, 1.442695
    %v1715 = vpow.pop %v1714
    %v1716 = vmul.f32 %v1706, 1.442695
    %v1717 = vpow.pop %v1716
    %v1718 = vmul.f32 %v1707, 1.442695
    %v1719 = vpow.pop %v1718
    %v1720 = vmul.f32 %v1708, 1.442695
    %v1721 = vpow.pop %v1720
    %v1722 = vmul.f32 %v1709, 1.442695
    %v1723 = vpow.pop %v1722
    %v1724 = vmul.f32 %v1710, 1.442695
    %v1725 = vpow.pop %v1724
    %v1726 = vmul.f32 %v1711, 1.442695
    %v1727 = vpow.pop %v1726
    %1736 = vset.pattern.permute.xlu0 0
    %1737 = vperm.xlu0 %1736, %v1713
    %v1738 = vpop.permute.xlu0 %1737
    %1739 = vset.pattern.permute.xlu0 0
    %1740 = vperm.xlu0 %1739, %v1715
    %v1741 = vpop.permute.xlu0 %1740
    %1742 = vset.pattern.permute.xlu0 0
    %1743 = vperm.xlu0 %1742, %v1717
    %v1744 = vpop.permute.xlu0 %1743
    %1745 = vset.pattern.permute.xlu0 0
    %1746 = vperm.xlu0 %1745, %v1719
    %v1747 = vpop.permute.xlu0 %1746
    %1748 = vset.pattern.permute.xlu0 0
    %1749 = vperm.xlu0 %1748, %v1721
    %v1750 = vpop.permute.xlu0 %1749
    %1751 = vset.pattern.permute.xlu0 0
    %1752 = vperm.xlu0 %1751, %v1723
    %v1753 = vpop.permute.xlu0 %1752
    %1754 = vset.pattern.permute.xlu0 0
    %1755 = vperm.xlu0 %1754, %v1725
    %v1756 = vpop.permute.xlu0 %1755
    %1757 = vset.pattern.permute.xlu0 0
    %1758 = vperm.xlu0 %1757, %v1727
    %v1759 = vpop.permute.xlu0 %1758
    %v1760 = vlaneseq
    %v1761 = vshrl.u32 %v1760, 7
    %v1762 = vsub.s32 %v394, %v1761
    %v1763 = vrot.slane %v1738, %v1762
    %v1764 = vlaneseq
    %v1765 = vshrl.u32 %v1764, 7
    %v1766 = vsub.s32 %v394, %v1765
    %v1767 = vrot.slane %v1741, %v1766
    %v1768 = vlaneseq
    %v1769 = vshrl.u32 %v1768, 7
    %v1770 = vsub.s32 %v394, %v1769
    %v1771 = vrot.slane %v1744, %v1770
    %v1772 = vlaneseq
    %v1773 = vshrl.u32 %v1772, 7
    %v1774 = vsub.s32 %v394, %v1773
    %v1775 = vrot.slane %v1747, %v1774
    %v1776 = vlaneseq
    %v1777 = vshrl.u32 %v1776, 7
    %v1778 = vsub.s32 %v394, %v1777
    %v1779 = vrot.slane %v1750, %v1778
    %v1780 = vlaneseq
    %v1781 = vshrl.u32 %v1780, 7
    %v1782 = vsub.s32 %v394, %v1781
    %v1783 = vrot.slane %v1753, %v1782
    %v1784 = vlaneseq
    %v1785 = vshrl.u32 %v1784, 7
    %v1786 = vsub.s32 %v394, %v1785
    %v1787 = vrot.slane %v1756, %v1786
    %v1788 = vlaneseq
    %v1789 = vshrl.u32 %v1788, 7
    %v1790 = vsub.s32 %v394, %v1789
    %v1791 = vrot.slane %v1759, %v1790
    %v1792 = vsel %vm427, %v1767, %v1763
    %v1793 = vsel %vm429, %v1771, %v1792
    %v1794 = vsel %vm431, %v1775, %v1793
    %v1795 = vsel %vm433, %v1779, %v1794
    %v1796 = vsel %vm435, %v1783, %v1795
    %v1797 = vsel %vm437, %v1787, %v1796
    %v1798 = vsel %vm439, %v1791, %v1797
    %v1800 = vsel %vm442, %v1798, 0.0
    %1801 = vadd.xlane.f32.xlu0 %v1800
    %v1802 = vpop.xlane.xlu0 %1801
    %v1803 = vrcp.pop %v1802
    %v1805 = vlaneseq
    %v1806 = vshrl.u32 %v1805, 7
    %v1807 = vsub.s32 0, %v1806
    %v1808 = vrot.slane %v1803, %v1807
    %v1809 = vlaneseq
    %v1810 = vshrl.u32 %v1809, 7
    %v1811 = vsub.s32 1, %v1810
    %v1812 = vrot.slane %v1803, %v1811
    %v1813 = vlaneseq
    %v1814 = vshrl.u32 %v1813, 7
    %v1815 = vsub.s32 2, %v1814
    %v1816 = vrot.slane %v1803, %v1815
    %v1817 = vlaneseq
    %v1818 = vshrl.u32 %v1817, 7
    %v1819 = vsub.s32 3, %v1818
    %v1820 = vrot.slane %v1803, %v1819
    %v1821 = vlaneseq
    %v1822 = vshrl.u32 %v1821, 7
    %v1823 = vsub.s32 4, %v1822
    %v1824 = vrot.slane %v1803, %v1823
    %v1825 = vlaneseq
    %v1826 = vshrl.u32 %v1825, 7
    %v1827 = vsub.s32 5, %v1826
    %v1828 = vrot.slane %v1803, %v1827
    %v1829 = vlaneseq
    %v1830 = vshrl.u32 %v1829, 7
    %v1831 = vsub.s32 6, %v1830
    %v1832 = vrot.slane %v1803, %v1831
    %v1833 = vlaneseq
    %v1834 = vshrl.u32 %v1833, 7
    %v1835 = vsub.s32 7, %v1834
    %v1836 = vrot.slane %v1803, %v1835
    %v1845 = vmul.f32 %v1713, %v1808
    %v1846 = vmul.f32 %v1715, %v1812
    %v1847 = vmul.f32 %v1717, %v1816
    %v1848 = vmul.f32 %v1719, %v1820
    %v1849 = vmul.f32 %v1721, %v1824
    %v1850 = vmul.f32 %v1723, %v1828
    %v1851 = vmul.f32 %v1725, %v1832
    %v1852 = vmul.f32 %v1727, %v1836
    %1854 = vset.pattern.permute.xlu0 0
    %1855 = vperm.xlu0 %1854, %v1845
    %v1856 = vpop.permute.xlu0 %1855
    %1859 = vset.pattern.permute.xlu0 0
    %1860 = vperm.xlu0 %1859, %v1846
    %v1861 = vpop.permute.xlu0 %1860
    %1864 = vset.pattern.permute.xlu0 0
    %1865 = vperm.xlu0 %1864, %v1847
    %v1866 = vpop.permute.xlu0 %1865
    %1869 = vset.pattern.permute.xlu0 0
    %1870 = vperm.xlu0 %1869, %v1848
    %v1871 = vpop.permute.xlu0 %1870
    %1874 = vset.pattern.permute.xlu0 0
    %1875 = vperm.xlu0 %1874, %v1849
    %v1876 = vpop.permute.xlu0 %1875
    %1879 = vset.pattern.permute.xlu0 0
    %1880 = vperm.xlu0 %1879, %v1850
    %v1881 = vpop.permute.xlu0 %1880
    %1884 = vset.pattern.permute.xlu0 0
    %1885 = vperm.xlu0 %1884, %v1851
    %v1886 = vpop.permute.xlu0 %1885
    %1889 = vset.pattern.permute.xlu0 0
    %1890 = vperm.xlu0 %1889, %v1852
    %v1891 = vpop.permute.xlu0 %1890
    %v1893 = vmul.f32 %v1856, %v113
    %v1894 = vmul.f32 %v1861, %v114
    %v1895 = vmul.f32 %v1866, %v115
    %v1896 = vmul.f32 %v1871, %v116
    %v1897 = vmul.f32 %v1876, %v117
    %v1898 = vmul.f32 %v1881, %v118
    %v1899 = vmul.f32 %v1886, %v119
    %v1900 = vmul.f32 %v1891, %v120
    %v1901 = vsel %vm684, %v1893, 0.0
    %v1902 = vrot.slane %v1901, 4
    %v1903 = vadd.f32 %v1901, %v1902
    %v1904 = vrot.slane %v1903, 2
    %v1905 = vadd.f32 %v1903, %v1904
    %v1906 = vrot.slane %v1905, 1
    %v1907 = vadd.f32 %v1905, %v1906
    %v1908 = vsel %vm684, %v1894, 0.0
    %v1909 = vrot.slane %v1908, 4
    %v1910 = vadd.f32 %v1908, %v1909
    %v1911 = vrot.slane %v1910, 2
    %v1912 = vadd.f32 %v1910, %v1911
    %v1913 = vrot.slane %v1912, 1
    %v1914 = vadd.f32 %v1912, %v1913
    %v1915 = vsel %vm684, %v1895, 0.0
    %v1916 = vrot.slane %v1915, 4
    %v1917 = vadd.f32 %v1915, %v1916
    %v1918 = vrot.slane %v1917, 2
    %v1919 = vadd.f32 %v1917, %v1918
    %v1920 = vrot.slane %v1919, 1
    %v1921 = vadd.f32 %v1919, %v1920
    %v1922 = vsel %vm684, %v1896, 0.0
    %v1923 = vrot.slane %v1922, 4
    %v1924 = vadd.f32 %v1922, %v1923
    %v1925 = vrot.slane %v1924, 2
    %v1926 = vadd.f32 %v1924, %v1925
    %v1927 = vrot.slane %v1926, 1
    %v1928 = vadd.f32 %v1926, %v1927
    %v1929 = vsel %vm684, %v1897, 0.0
    %v1930 = vrot.slane %v1929, 4
    %v1931 = vadd.f32 %v1929, %v1930
    %v1932 = vrot.slane %v1931, 2
    %v1933 = vadd.f32 %v1931, %v1932
    %v1934 = vrot.slane %v1933, 1
    %v1935 = vadd.f32 %v1933, %v1934
    %v1936 = vsel %vm684, %v1898, 0.0
    %v1937 = vrot.slane %v1936, 4
    %v1938 = vadd.f32 %v1936, %v1937
    %v1939 = vrot.slane %v1938, 2
    %v1940 = vadd.f32 %v1938, %v1939
    %v1941 = vrot.slane %v1940, 1
    %v1942 = vadd.f32 %v1940, %v1941
    %v1943 = vsel %vm684, %v1899, 0.0
    %v1944 = vrot.slane %v1943, 4
    %v1945 = vadd.f32 %v1943, %v1944
    %v1946 = vrot.slane %v1945, 2
    %v1947 = vadd.f32 %v1945, %v1946
    %v1948 = vrot.slane %v1947, 1
    %v1949 = vadd.f32 %v1947, %v1948
    %v1950 = vsel %vm684, %v1900, 0.0
    %v1951 = vrot.slane %v1950, 4
    %v1952 = vadd.f32 %v1950, %v1951
    %v1953 = vrot.slane %v1952, 2
    %v1954 = vadd.f32 %v1952, %v1953
    %v1955 = vrot.slane %v1954, 1
    %v1956 = vadd.f32 %v1954, %v1955
    %s1957 = scalar_lea.vmem [#allocation2], 24
    %v1958 = vld [vmem:[%s1957] sm:$0xff]
    %v1967 = vsel %vm427, %v1914, %v1907
    %v1968 = vsel %vm429, %v1921, %v1967
    %v1969 = vsel %vm431, %v1928, %v1968
    %v1970 = vsel %vm433, %v1935, %v1969
    %v1971 = vsel %vm435, %v1942, %v1970
    %v1972 = vsel %vm437, %v1949, %v1971
    %v1973 = vsel %vm439, %v1956, %v1972
    %v1975 = vadd.f32 %v1958, %v1973
    %v1976 = vsel %vm136, %v1471, 0
    %1978 = vmatprep.subr.mxu0 0.0
    %1979 = vmatpush1.msra.mxu0 %v121
    %1980 = vmatprep.subr.mxu0 0.0
    %1981 = vmatpush1.msra.mxu0 %v122
    %1982 = vmatprep.subr.mxu0 0.0
    %1983 = vmatpush1.msra.mxu0 %v123
    %1984 = vmatprep.subr.mxu0 0.0
    %1985 = vmatpush1.msra.mxu0 %v124
    %1986 = vmatprep.subr.mxu0 0.0
    %1987 = vmatpush1.msra.mxu0 0.0
    %1988 = vmatprep.subr.mxu0 0.0
    %1989 = vmatpush1.msra.mxu0 0.0
    %1990 = vmatprep.subr.mxu0 0.0
    %1991 = vmatpush1.msra.mxu0 0.0
    %1992 = vmatprep.subr.mxu0 0.0
    %1993 = vmatpush1.msra.mxu0 0.0
    %1994 = vmatprep.subr.mxu0 0.0
    %1995 = vmatpush1.msra.mxu0 0.0
    %1996 = vmatprep.subr.mxu0 0.0
    %1997 = vmatpush1.msra.mxu0 0.0
    %1998 = vmatprep.subr.mxu0 0.0
    %1999 = vmatpush1.msra.mxu0 0.0
    %2000 = vmatprep.subr.mxu0 0.0
    %2001 = vmatpush1.msra.mxu0 0.0
    %2002 = vmatprep.subr.mxu0 0.0
    %2003 = vmatpush1.msra.mxu0 0.0
    %2004 = vmatprep.subr.mxu0 0.0
    %2005 = vmatpush1.msra.mxu0 0.0
    %2006 = vmatprep.subr.mxu0 0.0
    %2007 = vmatpush1.msra.mxu0 0.0
    %2008 = vmatprep.subr.mxu0 0.0
    %2009 = vmatpush1.msra.mxu0 0.0
    %2010 = vmatprep.subr.mxu0 0.0
    %2011 = vmatpush1.msra.mxu0 0.0
    %2012 = vmatprep.subr.mxu0 0.0
    %2013 = vmatpush1.msra.mxu0 0.0
    %2014 = vmatprep.subr.mxu0 0.0
    %2015 = vmatpush1.msra.mxu0 0.0
    %2016 = vmatprep.subr.mxu0 0.0
    %2017 = vmatpush1.msra.mxu0 0.0
    %2018 = vmatprep.subr.mxu0 0.0
    %2019 = vmatpush1.msra.mxu0 0.0
    %2020 = vmatprep.subr.mxu0 0.0
    %2021 = vmatpush1.msra.mxu0 0.0
    %2022 = vmatprep.subr.mxu0 0.0
    %2023 = vmatpush1.msra.mxu0 0.0
    %2024 = vmatprep.subr.mxu0 0.0
    %2025 = vmatpush1.msra.mxu0 0.0
    %2026 = vmatprep.subr.mxu0 0.0
    %2027 = vmatpush1.msra.mxu0 0.0
    %2028 = vmatprep.subr.mxu0 0.0
    %2029 = vmatpush1.msra.mxu0 0.0
    %2030 = vmatprep.subr.mxu0 0.0
    %2031 = vmatpush1.msra.mxu0 0.0
    %2032 = vmatprep.subr.mxu0 0.0
    %2033 = vmatpush1.msra.mxu0 0.0
    %2034 = vmatprep.subr.mxu0 0.0
    %2035 = vmatpush1.msra.mxu0 0.0
    %2036 = vmatprep.subr.mxu0 0.0
    %2037 = vmatpush1.msra.mxu0 0.0
    %2038 = vmatprep.subr.mxu0 0.0
    %2039 = vmatpush1.msra.mxu0 0.0
    %2040 = vmatprep.subr.mxu0 0.0
    %2041 = vmatpush1.msra.mxu0 0.0
    %2042 = vmatprep.mubr.f32.mxu0 0.0
    %2043 = vmatmul.mubr.f32.gmra.mrb[0].mxu0 %v1976
    %v2044 = vpop.f32.mrb[0].mxu0
    %v2045 = vadd.f32 %v130, %v2044
    %v2046 = vpop.f32.mrb[0].mxu0
    %2047 = vdwg.mxu0
    %v2048 = vadd.f32 %v1975, %v2045
    %v2049 = vxor.u32 %v2048, 2147483648
    %v2050 = vmul.f32 %v2049, 1.442695
    %v2051 = vpow.pop %v2050
    %v2052 = vadd.f32 %v2051, 1.0
    %v2053 = vrcp.pop %v2052
    %v2054 = vmul.f32 1.0, %v2053
    %2056 = vrot.lane.b32.xlu0 %v2045, 64
    %v2057 = vpop.permute.xlu0 %2056
    %v2059 = vmul.f32 %v2054, %v2057
    %2061 = vrot.lane.b32.xlu0 %v2059, 64
    %v2062 = vpop.permute.xlu0 %2061
    %v2064 = vadd.f32 %v1975, %v2062
    %v2065 = vtanh.pop %v2064
    %v2066 = vsub.f32 %v1468, %v2065
    %2068 = vrot.lane.b32.xlu0 %v2066, 96
    %v2069 = vpop.permute.xlu0 %2068
    %v2071 = vmul.f32 %v2054, %v2069
    %2073 = vrot.lane.b32.xlu0 %v2071, 32
    %v2074 = vpop.permute.xlu0 %2073
    %v2076 = vadd.f32 %v2065, %v2074
    %2078 = vrot.lane.b32.xlu0 %v2076, 64
    %v2079 = vpop.permute.xlu0 %2078
    %s2081 = scalar_lea.vmem [#allocation13], 24
    %2082 = vst.msk [vmem:[%s2081] sm:$0xff] %vm136, %v2079
    %v2083 = vcombine.high %v2076, %v2076
    %v2085 = vunpack.c.l.s4 1966171168
    %v2086 = vunpack.c.0.s8 %v2085
    %v2087 = vlaneseq
    %v2088 = vshrl.u32 %v2087, 7
    %v2089 = vsub.s32 %v2086, %v2088
    %v2090 = vrot.slane %v2076, %v2089
    %v2092 = vunpack.c.l.s4 1966171168
    %v2093 = vunpack.c.0.s8 %v2092
    %v2094 = vlaneseq
    %v2095 = vshrl.u32 %v2094, 7
    %v2096 = vsub.s32 %v2093, %v2095
    %v2097 = vrot.slane %v2083, %v2096
    %v2098 = vcombine.high %v2090, %v2090
    %v2099 = vcombine.high %v2097, %v2097
    %v2101 = vunpack.c.l.s4 1966171168
    %v2102 = vunpack.c.0.s8 %v2101
    %v2103 = vlaneseq
    %v2104 = vshrl.u32 %v2103, 7
    %v2105 = vsub.s32 %v2102, %v2104
    %v2106 = vrot.slane %v2090, %v2105
    %v2108 = vunpack.c.l.s4 1966171168
    %v2109 = vunpack.c.0.s8 %v2108
    %v2110 = vlaneseq
    %v2111 = vshrl.u32 %v2110, 7
    %v2112 = vsub.s32 %v2109, %v2111
    %v2113 = vrot.slane %v2097, %v2112
    %v2115 = vunpack.c.l.s4 1966171168
    %v2116 = vunpack.c.0.s8 %v2115
    %v2117 = vlaneseq
    %v2118 = vshrl.u32 %v2117, 7
    %v2119 = vsub.s32 %v2116, %v2118
    %v2120 = vrot.slane %v2098, %v2119
    %v2122 = vunpack.c.l.s4 1966171168
    %v2123 = vunpack.c.0.s8 %v2122
    %v2124 = vlaneseq
    %v2125 = vshrl.u32 %v2124, 7
    %v2126 = vsub.s32 %v2123, %v2125
    %v2127 = vrot.slane %v2099, %v2126
    %v2128 = vcombine.high %v2106, %v2106
    %v2129 = vcombine.high %v2113, %v2113
    %v2130 = vcombine.high %v2120, %v2120
    %v2131 = vcombine.high %v2127, %v2127
    %v2132 = vlaneseq
    %v2133 = vshrl.u32 %v2132, 7
    %v2134 = vsub.s32 0, %v2133
    %v2135 = vrot.slane %v2106, %v2134
    %v2136 = vlaneseq
    %v2137 = vshrl.u32 %v2136, 7
    %v2138 = vsub.s32 0, %v2137
    %v2139 = vrot.slane %v2120, %v2138
    %v2140 = vlaneseq
    %v2141 = vshrl.u32 %v2140, 7
    %v2142 = vsub.s32 0, %v2141
    %v2143 = vrot.slane %v2128, %v2142
    %v2144 = vlaneseq
    %v2145 = vshrl.u32 %v2144, 7
    %v2146 = vsub.s32 0, %v2145
    %v2147 = vrot.slane %v2130, %v2146
    %v2148 = vlaneseq
    %v2149 = vshrl.u32 %v2148, 7
    %v2150 = vsub.s32 0, %v2149
    %v2151 = vrot.slane %v2113, %v2150
    %v2152 = vlaneseq
    %v2153 = vshrl.u32 %v2152, 7
    %v2154 = vsub.s32 0, %v2153
    %v2155 = vrot.slane %v2127, %v2154
    %v2156 = vlaneseq
    %v2157 = vshrl.u32 %v2156, 7
    %v2158 = vsub.s32 0, %v2157
    %v2159 = vrot.slane %v2129, %v2158
    %v2160 = vlaneseq
    %v2161 = vshrl.u32 %v2160, 7
    %v2162 = vsub.s32 0, %v2161
    %v2163 = vrot.slane %v2131, %v2162
    %2164 = vrot.lane.b32.xlu0 %v2135, 64
    %v2165 = vpop.permute.xlu0 %2164
    %2166 = vrot.lane.b32.xlu0 %v2139, 64
    %v2167 = vpop.permute.xlu0 %2166
    %2168 = vrot.lane.b32.xlu0 %v2143, 64
    %v2169 = vpop.permute.xlu0 %2168
    %2170 = vrot.lane.b32.xlu0 %v2147, 64
    %v2171 = vpop.permute.xlu0 %2170
    %2172 = vrot.lane.b32.xlu0 %v2151, 64
    %v2173 = vpop.permute.xlu0 %2172
    %2174 = vrot.lane.b32.xlu0 %v2155, 64
    %v2175 = vpop.permute.xlu0 %2174
    %2176 = vrot.lane.b32.xlu0 %v2159, 64
    %v2177 = vpop.permute.xlu0 %2176
    %2178 = vrot.lane.b32.xlu0 %v2163, 64
    %v2179 = vpop.permute.xlu0 %2178
    %v2188 = vmul.f32 %v105, %v2165
    %v2189 = vmul.f32 %v106, %v2167
    %v2190 = vmul.f32 %v107, %v2169
    %v2191 = vmul.f32 %v108, %v2171
    %v2192 = vmul.f32 %v109, %v2173
    %v2193 = vmul.f32 %v110, %v2175
    %v2194 = vmul.f32 %v111, %v2177
    %v2195 = vmul.f32 %v112, %v2179
    %v2196 = vsel %vm136, %v2188, 0.0
    %2197 = vadd.xlane.f32.xlu0 %v2196
    %v2198 = vpop.xlane.xlu0 %2197
    %v2199 = vsel %vm136, %v2189, 0.0
    %2200 = vadd.xlane.f32.xlu0 %v2199
    %v2201 = vpop.xlane.xlu0 %2200
    %v2202 = vsel %vm136, %v2190, 0.0
    %2203 = vadd.xlane.f32.xlu0 %v2202
    %v2204 = vpop.xlane.xlu0 %2203
    %v2205 = vsel %vm136, %v2191, 0.0
    %2206 = vadd.xlane.f32.xlu0 %v2205
    %v2207 = vpop.xlane.xlu0 %2206
    %v2208 = vsel %vm136, %v2192, 0.0
    %2209 = vadd.xlane.f32.xlu0 %v2208
    %v2210 = vpop.xlane.xlu0 %2209
    %v2211 = vsel %vm136, %v2193, 0.0
    %2212 = vadd.xlane.f32.xlu0 %v2211
    %v2213 = vpop.xlane.xlu0 %2212
    %v2214 = vsel %vm136, %v2194, 0.0
    %2215 = vadd.xlane.f32.xlu0 %v2214
    %v2216 = vpop.xlane.xlu0 %2215
    %v2217 = vsel %vm136, %v2195, 0.0
    %2218 = vadd.xlane.f32.xlu0 %v2217
    %v2219 = vpop.xlane.xlu0 %2218
    %v2228 = vlaneseq
    %v2229 = vshrl.u32 %v2228, 7
    %v2230 = vsub.s32 %v394, %v2229
    %v2231 = vrot.slane %v2198, %v2230
    %v2232 = vlaneseq
    %v2233 = vshrl.u32 %v2232, 7
    %v2234 = vsub.s32 %v394, %v2233
    %v2235 = vrot.slane %v2201, %v2234
    %v2236 = vlaneseq
    %v2237 = vshrl.u32 %v2236, 7
    %v2238 = vsub.s32 %v394, %v2237
    %v2239 = vrot.slane %v2204, %v2238
    %v2240 = vlaneseq
    %v2241 = vshrl.u32 %v2240, 7
    %v2242 = vsub.s32 %v394, %v2241
    %v2243 = vrot.slane %v2207, %v2242
    %v2244 = vlaneseq
    %v2245 = vshrl.u32 %v2244, 7
    %v2246 = vsub.s32 %v394, %v2245
    %v2247 = vrot.slane %v2210, %v2246
    %v2248 = vlaneseq
    %v2249 = vshrl.u32 %v2248, 7
    %v2250 = vsub.s32 %v394, %v2249
    %v2251 = vrot.slane %v2213, %v2250
    %v2252 = vlaneseq
    %v2253 = vshrl.u32 %v2252, 7
    %v2254 = vsub.s32 %v394, %v2253
    %v2255 = vrot.slane %v2216, %v2254
    %v2256 = vlaneseq
    %v2257 = vshrl.u32 %v2256, 7
    %v2258 = vsub.s32 %v394, %v2257
    %v2259 = vrot.slane %v2219, %v2258
    %v2260 = vsel %vm427, %v2235, %v2231
    %v2261 = vsel %vm429, %v2239, %v2260
    %v2262 = vsel %vm431, %v2243, %v2261
    %v2263 = vsel %vm433, %v2247, %v2262
    %v2264 = vsel %vm435, %v2251, %v2263
    %v2265 = vsel %vm437, %v2255, %v2264
    %v2266 = vsel %vm439, %v2259, %v2265
    %v2268 = vsel %vm442, %v2266, -inf
    %2269 = vmax.xlane.f32.xlu0 %v2268
    %v2270 = vpop.xlane.xlu0 %2269
    %v2272 = vlaneseq
    %v2273 = vshrl.u32 %v2272, 7
    %v2274 = vsub.s32 0, %v2273
    %v2275 = vrot.slane %v2270, %v2274
    %v2276 = vlaneseq
    %v2277 = vshrl.u32 %v2276, 7
    %v2278 = vsub.s32 1, %v2277
    %v2279 = vrot.slane %v2270, %v2278
    %v2280 = vlaneseq
    %v2281 = vshrl.u32 %v2280, 7
    %v2282 = vsub.s32 2, %v2281
    %v2283 = vrot.slane %v2270, %v2282
    %v2284 = vlaneseq
    %v2285 = vshrl.u32 %v2284, 7
    %v2286 = vsub.s32 3, %v2285
    %v2287 = vrot.slane %v2270, %v2286
    %v2288 = vlaneseq
    %v2289 = vshrl.u32 %v2288, 7
    %v2290 = vsub.s32 4, %v2289
    %v2291 = vrot.slane %v2270, %v2290
    %v2292 = vlaneseq
    %v2293 = vshrl.u32 %v2292, 7
    %v2294 = vsub.s32 5, %v2293
    %v2295 = vrot.slane %v2270, %v2294
    %v2296 = vlaneseq
    %v2297 = vshrl.u32 %v2296, 7
    %v2298 = vsub.s32 6, %v2297
    %v2299 = vrot.slane %v2270, %v2298
    %v2300 = vlaneseq
    %v2301 = vshrl.u32 %v2300, 7
    %v2302 = vsub.s32 7, %v2301
    %v2303 = vrot.slane %v2270, %v2302
    %v2312 = vsub.f32 %v2198, %v2275
    %v2313 = vsub.f32 %v2201, %v2279
    %v2314 = vsub.f32 %v2204, %v2283
    %v2315 = vsub.f32 %v2207, %v2287
    %v2316 = vsub.f32 %v2210, %v2291
    %v2317 = vsub.f32 %v2213, %v2295
    %v2318 = vsub.f32 %v2216, %v2299
    %v2319 = vsub.f32 %v2219, %v2303
    %v2320 = vmul.f32 %v2312, 1.442695
    %v2321 = vpow.pop %v2320
    %v2322 = vmul.f32 %v2313, 1.442695
    %v2323 = vpow.pop %v2322
    %v2324 = vmul.f32 %v2314, 1.442695
    %v2325 = vpow.pop %v2324
    %v2326 = vmul.f32 %v2315, 1.442695
    %v2327 = vpow.pop %v2326
    %v2328 = vmul.f32 %v2316, 1.442695
    %v2329 = vpow.pop %v2328
    %v2330 = vmul.f32 %v2317, 1.442695
    %v2331 = vpow.pop %v2330
    %v2332 = vmul.f32 %v2318, 1.442695
    %v2333 = vpow.pop %v2332
    %v2334 = vmul.f32 %v2319, 1.442695
    %v2335 = vpow.pop %v2334
    %2344 = vset.pattern.permute.xlu0 0
    %2345 = vperm.xlu0 %2344, %v2321
    %v2346 = vpop.permute.xlu0 %2345
    %2347 = vset.pattern.permute.xlu0 0
    %2348 = vperm.xlu0 %2347, %v2323
    %v2349 = vpop.permute.xlu0 %2348
    %2350 = vset.pattern.permute.xlu0 0
    %2351 = vperm.xlu0 %2350, %v2325
    %v2352 = vpop.permute.xlu0 %2351
    %2353 = vset.pattern.permute.xlu0 0
    %2354 = vperm.xlu0 %2353, %v2327
    %v2355 = vpop.permute.xlu0 %2354
    %2356 = vset.pattern.permute.xlu0 0
    %2357 = vperm.xlu0 %2356, %v2329
    %v2358 = vpop.permute.xlu0 %2357
    %2359 = vset.pattern.permute.xlu0 0
    %2360 = vperm.xlu0 %2359, %v2331
    %v2361 = vpop.permute.xlu0 %2360
    %2362 = vset.pattern.permute.xlu0 0
    %2363 = vperm.xlu0 %2362, %v2333
    %v2364 = vpop.permute.xlu0 %2363
    %2365 = vset.pattern.permute.xlu0 0
    %2366 = vperm.xlu0 %2365, %v2335
    %v2367 = vpop.permute.xlu0 %2366
    %v2368 = vlaneseq
    %v2369 = vshrl.u32 %v2368, 7
    %v2370 = vsub.s32 %v394, %v2369
    %v2371 = vrot.slane %v2346, %v2370
    %v2372 = vlaneseq
    %v2373 = vshrl.u32 %v2372, 7
    %v2374 = vsub.s32 %v394, %v2373
    %v2375 = vrot.slane %v2349, %v2374
    %v2376 = vlaneseq
    %v2377 = vshrl.u32 %v2376, 7
    %v2378 = vsub.s32 %v394, %v2377
    %v2379 = vrot.slane %v2352, %v2378
    %v2380 = vlaneseq
    %v2381 = vshrl.u32 %v2380, 7
    %v2382 = vsub.s32 %v394, %v2381
    %v2383 = vrot.slane %v2355, %v2382
    %v2384 = vlaneseq
    %v2385 = vshrl.u32 %v2384, 7
    %v2386 = vsub.s32 %v394, %v2385
    %v2387 = vrot.slane %v2358, %v2386
    %v2388 = vlaneseq
    %v2389 = vshrl.u32 %v2388, 7
    %v2390 = vsub.s32 %v394, %v2389
    %v2391 = vrot.slane %v2361, %v2390
    %v2392 = vlaneseq
    %v2393 = vshrl.u32 %v2392, 7
    %v2394 = vsub.s32 %v394, %v2393
    %v2395 = vrot.slane %v2364, %v2394
    %v2396 = vlaneseq
    %v2397 = vshrl.u32 %v2396, 7
    %v2398 = vsub.s32 %v394, %v2397
    %v2399 = vrot.slane %v2367, %v2398
    %v2400 = vsel %vm427, %v2375, %v2371
    %v2401 = vsel %vm429, %v2379, %v2400
    %v2402 = vsel %vm431, %v2383, %v2401
    %v2403 = vsel %vm433, %v2387, %v2402
    %v2404 = vsel %vm435, %v2391, %v2403
    %v2405 = vsel %vm437, %v2395, %v2404
    %v2406 = vsel %vm439, %v2399, %v2405
    %v2408 = vsel %vm442, %v2406, 0.0
    %2409 = vadd.xlane.f32.xlu0 %v2408
    %v2410 = vpop.xlane.xlu0 %2409
    %v2411 = vrcp.pop %v2410
    %v2413 = vlaneseq
    %v2414 = vshrl.u32 %v2413, 7
    %v2415 = vsub.s32 0, %v2414
    %v2416 = vrot.slane %v2411, %v2415
    %v2417 = vlaneseq
    %v2418 = vshrl.u32 %v2417, 7
    %v2419 = vsub.s32 1, %v2418
    %v2420 = vrot.slane %v2411, %v2419
    %v2421 = vlaneseq
    %v2422 = vshrl.u32 %v2421, 7
    %v2423 = vsub.s32 2, %v2422
    %v2424 = vrot.slane %v2411, %v2423
    %v2425 = vlaneseq
    %v2426 = vshrl.u32 %v2425, 7
    %v2427 = vsub.s32 3, %v2426
    %v2428 = vrot.slane %v2411, %v2427
    %v2429 = vlaneseq
    %v2430 = vshrl.u32 %v2429, 7
    %v2431 = vsub.s32 4, %v2430
    %v2432 = vrot.slane %v2411, %v2431
    %v2433 = vlaneseq
    %v2434 = vshrl.u32 %v2433, 7
    %v2435 = vsub.s32 5, %v2434
    %v2436 = vrot.slane %v2411, %v2435
    %v2437 = vlaneseq
    %v2438 = vshrl.u32 %v2437, 7
    %v2439 = vsub.s32 6, %v2438
    %v2440 = vrot.slane %v2411, %v2439
    %v2441 = vlaneseq
    %v2442 = vshrl.u32 %v2441, 7
    %v2443 = vsub.s32 7, %v2442
    %v2444 = vrot.slane %v2411, %v2443
    %v2453 = vmul.f32 %v2321, %v2416
    %v2454 = vmul.f32 %v2323, %v2420
    %v2455 = vmul.f32 %v2325, %v2424
    %v2456 = vmul.f32 %v2327, %v2428
    %v2457 = vmul.f32 %v2329, %v2432
    %v2458 = vmul.f32 %v2331, %v2436
    %v2459 = vmul.f32 %v2333, %v2440
    %v2460 = vmul.f32 %v2335, %v2444
    %2462 = vset.pattern.permute.xlu0 0
    %2463 = vperm.xlu0 %2462, %v2453
    %v2464 = vpop.permute.xlu0 %2463
    %2467 = vset.pattern.permute.xlu0 0
    %2468 = vperm.xlu0 %2467, %v2454
    %v2469 = vpop.permute.xlu0 %2468
    %2472 = vset.pattern.permute.xlu0 0
    %2473 = vperm.xlu0 %2472, %v2455
    %v2474 = vpop.permute.xlu0 %2473
    %2477 = vset.pattern.permute.xlu0 0
    %2478 = vperm.xlu0 %2477, %v2456
    %v2479 = vpop.permute.xlu0 %2478
    %2482 = vset.pattern.permute.xlu0 0
    %2483 = vperm.xlu0 %2482, %v2457
    %v2484 = vpop.permute.xlu0 %2483
    %2487 = vset.pattern.permute.xlu0 0
    %2488 = vperm.xlu0 %2487, %v2458
    %v2489 = vpop.permute.xlu0 %2488
    %2492 = vset.pattern.permute.xlu0 0
    %2493 = vperm.xlu0 %2492, %v2459
    %v2494 = vpop.permute.xlu0 %2493
    %2497 = vset.pattern.permute.xlu0 0
    %2498 = vperm.xlu0 %2497, %v2460
    %v2499 = vpop.permute.xlu0 %2498
    %v2501 = vmul.f32 %v2464, %v113
    %v2502 = vmul.f32 %v2469, %v114
    %v2503 = vmul.f32 %v2474, %v115
    %v2504 = vmul.f32 %v2479, %v116
    %v2505 = vmul.f32 %v2484, %v117
    %v2506 = vmul.f32 %v2489, %v118
    %v2507 = vmul.f32 %v2494, %v119
    %v2508 = vmul.f32 %v2499, %v120
    %v2509 = vsel %vm684, %v2501, 0.0
    %v2510 = vrot.slane %v2509, 4
    %v2511 = vadd.f32 %v2509, %v2510
    %v2512 = vrot.slane %v2511, 2
    %v2513 = vadd.f32 %v2511, %v2512
    %v2514 = vrot.slane %v2513, 1
    %v2515 = vadd.f32 %v2513, %v2514
    %v2516 = vsel %vm684, %v2502, 0.0
    %v2517 = vrot.slane %v2516, 4
    %v2518 = vadd.f32 %v2516, %v2517
    %v2519 = vrot.slane %v2518, 2
    %v2520 = vadd.f32 %v2518, %v2519
    %v2521 = vrot.slane %v2520, 1
    %v2522 = vadd.f32 %v2520, %v2521
    %v2523 = vsel %vm684, %v2503, 0.0
    %v2524 = vrot.slane %v2523, 4
    %v2525 = vadd.f32 %v2523, %v2524
    %v2526 = vrot.slane %v2525, 2
    %v2527 = vadd.f32 %v2525, %v2526
    %v2528 = vrot.slane %v2527, 1
    %v2529 = vadd.f32 %v2527, %v2528
    %v2530 = vsel %vm684, %v2504, 0.0
    %v2531 = vrot.slane %v2530, 4
    %v2532 = vadd.f32 %v2530, %v2531
    %v2533 = vrot.slane %v2532, 2
    %v2534 = vadd.f32 %v2532, %v2533
    %v2535 = vrot.slane %v2534, 1
    %v2536 = vadd.f32 %v2534, %v2535
    %v2537 = vsel %vm684, %v2505, 0.0
    %v2538 = vrot.slane %v2537, 4
    %v2539 = vadd.f32 %v2537, %v2538
    %v2540 = vrot.slane %v2539, 2
    %v2541 = vadd.f32 %v2539, %v2540
    %v2542 = vrot.slane %v2541, 1
    %v2543 = vadd.f32 %v2541, %v2542
    %v2544 = vsel %vm684, %v2506, 0.0
    %v2545 = vrot.slane %v2544, 4
    %v2546 = vadd.f32 %v2544, %v2545
    %v2547 = vrot.slane %v2546, 2
    %v2548 = vadd.f32 %v2546, %v2547
    %v2549 = vrot.slane %v2548, 1
    %v2550 = vadd.f32 %v2548, %v2549
    %v2551 = vsel %vm684, %v2507, 0.0
    %v2552 = vrot.slane %v2551, 4
    %v2553 = vadd.f32 %v2551, %v2552
    %v2554 = vrot.slane %v2553, 2
    %v2555 = vadd.f32 %v2553, %v2554
    %v2556 = vrot.slane %v2555, 1
    %v2557 = vadd.f32 %v2555, %v2556
    %v2558 = vsel %vm684, %v2508, 0.0
    %v2559 = vrot.slane %v2558, 4
    %v2560 = vadd.f32 %v2558, %v2559
    %v2561 = vrot.slane %v2560, 2
    %v2562 = vadd.f32 %v2560, %v2561
    %v2563 = vrot.slane %v2562, 1
    %v2564 = vadd.f32 %v2562, %v2563
    %s2565 = scalar_lea.vmem [#allocation2], 32
    %v2566 = vld [vmem:[%s2565] sm:$0xff]
    %v2575 = vsel %vm427, %v2522, %v2515
    %v2576 = vsel %vm429, %v2529, %v2575
    %v2577 = vsel %vm431, %v2536, %v2576
    %v2578 = vsel %vm433, %v2543, %v2577
    %v2579 = vsel %vm435, %v2550, %v2578
    %v2580 = vsel %vm437, %v2557, %v2579
    %v2581 = vsel %vm439, %v2564, %v2580
    %v2583 = vadd.f32 %v2566, %v2581
    %v2584 = vsel %vm136, %v2079, 0
    %2586 = vmatprep.subr.mxu0 0.0
    %2587 = vmatpush1.msra.mxu0 %v121
    %2588 = vmatprep.subr.mxu0 0.0
    %2589 = vmatpush1.msra.mxu0 %v122
    %2590 = vmatprep.subr.mxu0 0.0
    %2591 = vmatpush1.msra.mxu0 %v123
    %2592 = vmatprep.subr.mxu0 0.0
    %2593 = vmatpush1.msra.mxu0 %v124
    %2594 = vmatprep.subr.mxu0 0.0
    %2595 = vmatpush1.msra.mxu0 0.0
    %2596 = vmatprep.subr.mxu0 0.0
    %2597 = vmatpush1.msra.mxu0 0.0
    %2598 = vmatprep.subr.mxu0 0.0
    %2599 = vmatpush1.msra.mxu0 0.0
    %2600 = vmatprep.subr.mxu0 0.0
    %2601 = vmatpush1.msra.mxu0 0.0
    %2602 = vmatprep.subr.mxu0 0.0
    %2603 = vmatpush1.msra.mxu0 0.0
    %2604 = vmatprep.subr.mxu0 0.0
    %2605 = vmatpush1.msra.mxu0 0.0
    %2606 = vmatprep.subr.mxu0 0.0
    %2607 = vmatpush1.msra.mxu0 0.0
    %2608 = vmatprep.subr.mxu0 0.0
    %2609 = vmatpush1.msra.mxu0 0.0
    %2610 = vmatprep.subr.mxu0 0.0
    %2611 = vmatpush1.msra.mxu0 0.0
    %2612 = vmatprep.subr.mxu0 0.0
    %2613 = vmatpush1.msra.mxu0 0.0
    %2614 = vmatprep.subr.mxu0 0.0
    %2615 = vmatpush1.msra.mxu0 0.0
    %2616 = vmatprep.subr.mxu0 0.0
    %2617 = vmatpush1.msra.mxu0 0.0
    %2618 = vmatprep.subr.mxu0 0.0
    %2619 = vmatpush1.msra.mxu0 0.0
    %2620 = vmatprep.subr.mxu0 0.0
    %2621 = vmatpush1.msra.mxu0 0.0
    %2622 = vmatprep.subr.mxu0 0.0
    %2623 = vmatpush1.msra.mxu0 0.0
    %2624 = vmatprep.subr.mxu0 0.0
    %2625 = vmatpush1.msra.mxu0 0.0
    %2626 = vmatprep.subr.mxu0 0.0
    %2627 = vmatpush1.msra.mxu0 0.0
    %2628 = vmatprep.subr.mxu0 0.0
    %2629 = vmatpush1.msra.mxu0 0.0
    %2630 = vmatprep.subr.mxu0 0.0
    %2631 = vmatpush1.msra.mxu0 0.0
    %2632 = vmatprep.subr.mxu0 0.0
    %2633 = vmatpush1.msra.mxu0 0.0
    %2634 = vmatprep.subr.mxu0 0.0
    %2635 = vmatpush1.msra.mxu0 0.0
    %2636 = vmatprep.subr.mxu0 0.0
    %2637 = vmatpush1.msra.mxu0 0.0
    %2638 = vmatprep.subr.mxu0 0.0
    %2639 = vmatpush1.msra.mxu0 0.0
    %2640 = vmatprep.subr.mxu0 0.0
    %2641 = vmatpush1.msra.mxu0 0.0
    %2642 = vmatprep.subr.mxu0 0.0
    %2643 = vmatpush1.msra.mxu0 0.0
    %2644 = vmatprep.subr.mxu0 0.0
    %2645 = vmatpush1.msra.mxu0 0.0
    %2646 = vmatprep.subr.mxu0 0.0
    %2647 = vmatpush1.msra.mxu0 0.0
    %2648 = vmatprep.subr.mxu0 0.0
    %2649 = vmatpush1.msra.mxu0 0.0
    %2650 = vmatprep.mubr.f32.mxu0 0.0
    %2651 = vmatmul.mubr.f32.gmra.mrb[0].mxu0 %v2584
    %v2652 = vpop.f32.mrb[0].mxu0
    %v2653 = vadd.f32 %v130, %v2652
    %v2654 = vpop.f32.mrb[0].mxu0
    %2655 = vdwg.mxu0
    %v2656 = vadd.f32 %v2583, %v2653
    %v2657 = vxor.u32 %v2656, 2147483648
    %v2658 = vmul.f32 %v2657, 1.442695
    %v2659 = vpow.pop %v2658
    %v2660 = vadd.f32 %v2659, 1.0
    %v2661 = vrcp.pop %v2660
    %v2662 = vmul.f32 1.0, %v2661
    %2664 = vrot.lane.b32.xlu0 %v2653, 64
    %v2665 = vpop.permute.xlu0 %2664
    %v2667 = vmul.f32 %v2662, %v2665
    %2669 = vrot.lane.b32.xlu0 %v2667, 64
    %v2670 = vpop.permute.xlu0 %2669
    %v2672 = vadd.f32 %v2583, %v2670
    %v2673 = vtanh.pop %v2672
    %v2674 = vsub.f32 %v2076, %v2673
    %2676 = vrot.lane.b32.xlu0 %v2674, 96
    %v2677 = vpop.permute.xlu0 %2676
    %v2679 = vmul.f32 %v2662, %v2677
    %2681 = vrot.lane.b32.xlu0 %v2679, 32
    %v2682 = vpop.permute.xlu0 %2681
    %v2684 = vadd.f32 %v2673, %v2682
    %2686 = vrot.lane.b32.xlu0 %v2684, 64
    %v2687 = vpop.permute.xlu0 %2686
    %s2689 = scalar_lea.vmem [#allocation13], 32
    %2690 = vst.msk [vmem:[%s2689] sm:$0xff] %vm136, %v2687
    %v2691 = vcombine.high %v2684, %v2684
    %v2693 = vunpack.c.l.s4 1966171168
    %v2694 = vunpack.c.0.s8 %v2693
    %v2695 = vlaneseq
    %v2696 = vshrl.u32 %v2695, 7
    %v2697 = vsub.s32 %v2694, %v2696
    %v2698 = vrot.slane %v2684, %v2697
    %v2700 = vunpack.c.l.s4 1966171168
    %v2701 = vunpack.c.0.s8 %v2700
    %v2702 = vlaneseq
    %v2703 = vshrl.u32 %v2702, 7
    %v2704 = vsub.s32 %v2701, %v2703
    %v2705 = vrot.slane %v2691, %v2704
    %v2706 = vcombine.high %v2698, %v2698
    %v2707 = vcombine.high %v2705, %v2705
    %v2709 = vunpack.c.l.s4 1966171168
    %v2710 = vunpack.c.0.s8 %v2709
    %v2711 = vlaneseq
    %v2712 = vshrl.u32 %v2711, 7
    %v2713 = vsub.s32 %v2710, %v2712
    %v2714 = vrot.slane %v2698, %v2713
    %v2716 = vunpack.c.l.s4 1966171168
    %v2717 = vunpack.c.0.s8 %v2716
    %v2718 = vlaneseq
    %v2719 = vshrl.u32 %v2718, 7
    %v2720 = vsub.s32 %v2717, %v2719
    %v2721 = vrot.slane %v2705, %v2720
    %v2723 = vunpack.c.l.s4 1966171168
    %v2724 = vunpack.c.0.s8 %v2723
    %v2725 = vlaneseq
    %v2726 = vshrl.u32 %v2725, 7
    %v2727 = vsub.s32 %v2724, %v2726
    %v2728 = vrot.slane %v2706, %v2727
    %v2730 = vunpack.c.l.s4 1966171168
    %v2731 = vunpack.c.0.s8 %v2730
    %v2732 = vlaneseq
    %v2733 = vshrl.u32 %v2732, 7
    %v2734 = vsub.s32 %v2731, %v2733
    %v2735 = vrot.slane %v2707, %v2734
    %v2736 = vcombine.high %v2714, %v2714
    %v2737 = vcombine.high %v2721, %v2721
    %v2738 = vcombine.high %v2728, %v2728
    %v2739 = vcombine.high %v2735, %v2735
    %v2740 = vlaneseq
    %v2741 = vshrl.u32 %v2740, 7
    %v2742 = vsub.s32 0, %v2741
    %v2743 = vrot.slane %v2714, %v2742
    %v2744 = vlaneseq
    %v2745 = vshrl.u32 %v2744, 7
    %v2746 = vsub.s32 0, %v2745
    %v2747 = vrot.slane %v2728, %v2746
    %v2748 = vlaneseq
    %v2749 = vshrl.u32 %v2748, 7
    %v2750 = vsub.s32 0, %v2749
    %v2751 = vrot.slane %v2736, %v2750
    %v2752 = vlaneseq
    %v2753 = vshrl.u32 %v2752, 7
    %v2754 = vsub.s32 0, %v2753
    %v2755 = vrot.slane %v2738, %v2754
    %v2756 = vlaneseq
    %v2757 = vshrl.u32 %v2756, 7
    %v2758 = vsub.s32 0, %v2757
    %v2759 = vrot.slane %v2721, %v2758
    %v2760 = vlaneseq
    %v2761 = vshrl.u32 %v2760, 7
    %v2762 = vsub.s32 0, %v2761
    %v2763 = vrot.slane %v2735, %v2762
    %v2764 = vlaneseq
    %v2765 = vshrl.u32 %v2764, 7
    %v2766 = vsub.s32 0, %v2765
    %v2767 = vrot.slane %v2737, %v2766
    %v2768 = vlaneseq
    %v2769 = vshrl.u32 %v2768, 7
    %v2770 = vsub.s32 0, %v2769
    %v2771 = vrot.slane %v2739, %v2770
    %2772 = vrot.lane.b32.xlu0 %v2743, 64
    %v2773 = vpop.permute.xlu0 %2772
    %2774 = vrot.lane.b32.xlu0 %v2747, 64
    %v2775 = vpop.permute.xlu0 %2774
    %2776 = vrot.lane.b32.xlu0 %v2751, 64
    %v2777 = vpop.permute.xlu0 %2776
    %2778 = vrot.lane.b32.xlu0 %v2755, 64
    %v2779 = vpop.permute.xlu0 %2778
    %2780 = vrot.lane.b32.xlu0 %v2759, 64
    %v2781 = vpop.permute.xlu0 %2780
    %2782 = vrot.lane.b32.xlu0 %v2763, 64
    %v2783 = vpop.permute.xlu0 %2782
    %2784 = vrot.lane.b32.xlu0 %v2767, 64
    %v2785 = vpop.permute.xlu0 %2784
    %2786 = vrot.lane.b32.xlu0 %v2771, 64
    %v2787 = vpop.permute.xlu0 %2786
    %v2796 = vmul.f32 %v105, %v2773
    %v2797 = vmul.f32 %v106, %v2775
    %v2798 = vmul.f32 %v107, %v2777
    %v2799 = vmul.f32 %v108, %v2779
    %v2800 = vmul.f32 %v109, %v2781
    %v2801 = vmul.f32 %v110, %v2783
    %v2802 = vmul.f32 %v111, %v2785
    %v2803 = vmul.f32 %v112, %v2787
    %v2804 = vsel %vm136, %v2796, 0.0
    %2805 = vadd.xlane.f32.xlu0 %v2804
    %v2806 = vpop.xlane.xlu0 %2805
    %v2807 = vsel %vm136, %v2797, 0.0
    %2808 = vadd.xlane.f32.xlu0 %v2807
    %v2809 = vpop.xlane.xlu0 %2808
    %v2810 = vsel %vm136, %v2798, 0.0
    %2811 = vadd.xlane.f32.xlu0 %v2810
    %v2812 = vpop.xlane.xlu0 %2811
    %v2813 = vsel %vm136, %v2799, 0.0
    %2814 = vadd.xlane.f32.xlu0 %v2813
    %v2815 = vpop.xlane.xlu0 %2814
    %v2816 = vsel %vm136, %v2800, 0.0
    %2817 = vadd.xlane.f32.xlu0 %v2816
    %v2818 = vpop.xlane.xlu0 %2817
    %v2819 = vsel %vm136, %v2801, 0.0
    %2820 = vadd.xlane.f32.xlu0 %v2819
    %v2821 = vpop.xlane.xlu0 %2820
    %v2822 = vsel %vm136, %v2802, 0.0
    %2823 = vadd.xlane.f32.xlu0 %v2822
    %v2824 = vpop.xlane.xlu0 %2823
    %v2825 = vsel %vm136, %v2803, 0.0
    %2826 = vadd.xlane.f32.xlu0 %v2825
    %v2827 = vpop.xlane.xlu0 %2826
    %v2836 = vlaneseq
    %v2837 = vshrl.u32 %v2836, 7
    %v2838 = vsub.s32 %v394, %v2837
    %v2839 = vrot.slane %v2806, %v2838
    %v2840 = vlaneseq
    %v2841 = vshrl.u32 %v2840, 7
    %v2842 = vsub.s32 %v394, %v2841
    %v2843 = vrot.slane %v2809, %v2842
    %v2844 = vlaneseq
    %v2845 = vshrl.u32 %v2844, 7
    %v2846 = vsub.s32 %v394, %v2845
    %v2847 = vrot.slane %v2812, %v2846
    %v2848 = vlaneseq
    %v2849 = vshrl.u32 %v2848, 7
    %v2850 = vsub.s32 %v394, %v2849
    %v2851 = vrot.slane %v2815, %v2850
    %v2852 = vlaneseq
    %v2853 = vshrl.u32 %v2852, 7
    %v2854 = vsub.s32 %v394, %v2853
    %v2855 = vrot.slane %v2818, %v2854
    %v2856 = vlaneseq
    %v2857 = vshrl.u32 %v2856, 7
    %v2858 = vsub.s32 %v394, %v2857
    %v2859 = vrot.slane %v2821, %v2858
    %v2860 = vlaneseq
    %v2861 = vshrl.u32 %v2860, 7
    %v2862 = vsub.s32 %v394, %v2861
    %v2863 = vrot.slane %v2824, %v2862
    %v2864 = vlaneseq
    %v2865 = vshrl.u32 %v2864, 7
    %v2866 = vsub.s32 %v394, %v2865
    %v2867 = vrot.slane %v2827, %v2866
    %v2868 = vsel %vm427, %v2843, %v2839
    %v2869 = vsel %vm429, %v2847, %v2868
    %v2870 = vsel %vm431, %v2851, %v2869
    %v2871 = vsel %vm433, %v2855, %v2870
    %v2872 = vsel %vm435, %v2859, %v2871
    %v2873 = vsel %vm437, %v2863, %v2872
    %v2874 = vsel %vm439, %v2867, %v2873
    %v2876 = vsel %vm442, %v2874, -inf
    %2877 = vmax.xlane.f32.xlu0 %v2876
    %v2878 = vpop.xlane.xlu0 %2877
    %v2880 = vlaneseq
    %v2881 = vshrl.u32 %v2880, 7
    %v2882 = vsub.s32 0, %v2881
    %v2883 = vrot.slane %v2878, %v2882
    %v2884 = vlaneseq
    %v2885 = vshrl.u32 %v2884, 7
    %v2886 = vsub.s32 1, %v2885
    %v2887 = vrot.slane %v2878, %v2886
    %v2888 = vlaneseq
    %v2889 = vshrl.u32 %v2888, 7
    %v2890 = vsub.s32 2, %v2889
    %v2891 = vrot.slane %v2878, %v2890
    %v2892 = vlaneseq
    %v2893 = vshrl.u32 %v2892, 7
    %v2894 = vsub.s32 3, %v2893
    %v2895 = vrot.slane %v2878, %v2894
    %v2896 = vlaneseq
    %v2897 = vshrl.u32 %v2896, 7
    %v2898 = vsub.s32 4, %v2897
    %v2899 = vrot.slane %v2878, %v2898
    %v2900 = vlaneseq
    %v2901 = vshrl.u32 %v2900, 7
    %v2902 = vsub.s32 5, %v2901
    %v2903 = vrot.slane %v2878, %v2902
    %v2904 = vlaneseq
    %v2905 = vshrl.u32 %v2904, 7
    %v2906 = vsub.s32 6, %v2905
    %v2907 = vrot.slane %v2878, %v2906
    %v2908 = vlaneseq
    %v2909 = vshrl.u32 %v2908, 7
    %v2910 = vsub.s32 7, %v2909
    %v2911 = vrot.slane %v2878, %v2910
    %v2920 = vsub.f32 %v2806, %v2883
    %v2921 = vsub.f32 %v2809, %v2887
    %v2922 = vsub.f32 %v2812, %v2891
    %v2923 = vsub.f32 %v2815, %v2895
    %v2924 = vsub.f32 %v2818, %v2899
    %v2925 = vsub.f32 %v2821, %v2903
    %v2926 = vsub.f32 %v2824, %v2907
    %v2927 = vsub.f32 %v2827, %v2911
    %v2928 = vmul.f32 %v2920, 1.442695
    %v2929 = vpow.pop %v2928
    %v2930 = vmul.f32 %v2921, 1.442695
    %v2931 = vpow.pop %v2930
    %v2932 = vmul.f32 %v2922, 1.442695
    %v2933 = vpow.pop %v2932
    %v2934 = vmul.f32 %v2923, 1.442695
    %v2935 = vpow.pop %v2934
    %v2936 = vmul.f32 %v2924, 1.442695
    %v2937 = vpow.pop %v2936
    %v2938 = vmul.f32 %v2925, 1.442695
    %v2939 = vpow.pop %v2938
    %v2940 = vmul.f32 %v2926, 1.442695
    %v2941 = vpow.pop %v2940
    %v2942 = vmul.f32 %v2927, 1.442695
    %v2943 = vpow.pop %v2942
    %2952 = vset.pattern.permute.xlu0 0
    %2953 = vperm.xlu0 %2952, %v2929
    %v2954 = vpop.permute.xlu0 %2953
    %2955 = vset.pattern.permute.xlu0 0
    %2956 = vperm.xlu0 %2955, %v2931
    %v2957 = vpop.permute.xlu0 %2956
    %2958 = vset.pattern.permute.xlu0 0
    %2959 = vperm.xlu0 %2958, %v2933
    %v2960 = vpop.permute.xlu0 %2959
    %2961 = vset.pattern.permute.xlu0 0
    %2962 = vperm.xlu0 %2961, %v2935
    %v2963 = vpop.permute.xlu0 %2962
    %2964 = vset.pattern.permute.xlu0 0
    %2965 = vperm.xlu0 %2964, %v2937
    %v2966 = vpop.permute.xlu0 %2965
    %2967 = vset.pattern.permute.xlu0 0
    %2968 = vperm.xlu0 %2967, %v2939
    %v2969 = vpop.permute.xlu0 %2968
    %2970 = vset.pattern.permute.xlu0 0
    %2971 = vperm.xlu0 %2970, %v2941
    %v2972 = vpop.permute.xlu0 %2971
    %2973 = vset.pattern.permute.xlu0 0
    %2974 = vperm.xlu0 %2973, %v2943
    %v2975 = vpop.permute.xlu0 %2974
    %v2976 = vlaneseq
    %v2977 = vshrl.u32 %v2976, 7
    %v2978 = vsub.s32 %v394, %v2977
    %v2979 = vrot.slane %v2954, %v2978
    %v2980 = vlaneseq
    %v2981 = vshrl.u32 %v2980, 7
    %v2982 = vsub.s32 %v394, %v2981
    %v2983 = vrot.slane %v2957, %v2982
    %v2984 = vlaneseq
    %v2985 = vshrl.u32 %v2984, 7
    %v2986 = vsub.s32 %v394, %v2985
    %v2987 = vrot.slane %v2960, %v2986
    %v2988 = vlaneseq
    %v2989 = vshrl.u32 %v2988, 7
    %v2990 = vsub.s32 %v394, %v2989
    %v2991 = vrot.slane %v2963, %v2990
    %v2992 = vlaneseq
    %v2993 = vshrl.u32 %v2992, 7
    %v2994 = vsub.s32 %v394, %v2993
    %v2995 = vrot.slane %v2966, %v2994
    %v2996 = vlaneseq
    %v2997 = vshrl.u32 %v2996, 7
    %v2998 = vsub.s32 %v394, %v2997
    %v2999 = vrot.slane %v2969, %v2998
    %v3000 = vlaneseq
    %v3001 = vshrl.u32 %v3000, 7
    %v3002 = vsub.s32 %v394, %v3001
    %v3003 = vrot.slane %v2972, %v3002
    %v3004 = vlaneseq
    %v3005 = vshrl.u32 %v3004, 7
    %v3006 = vsub.s32 %v394, %v3005
    %v3007 = vrot.slane %v2975, %v3006
    %v3008 = vsel %vm427, %v2983, %v2979
    %v3009 = vsel %vm429, %v2987, %v3008
    %v3010 = vsel %vm431, %v2991, %v3009
    %v3011 = vsel %vm433, %v2995, %v3010
    %v3012 = vsel %vm435, %v2999, %v3011
    %v3013 = vsel %vm437, %v3003, %v3012
    %v3014 = vsel %vm439, %v3007, %v3013
    %v3016 = vsel %vm442, %v3014, 0.0
    %3017 = vadd.xlane.f32.xlu0 %v3016
    %v3018 = vpop.xlane.xlu0 %3017
    %v3019 = vrcp.pop %v3018
    %v3021 = vlaneseq
    %v3022 = vshrl.u32 %v3021, 7
    %v3023 = vsub.s32 0, %v3022
    %v3024 = vrot.slane %v3019, %v3023
    %v3025 = vlaneseq
    %v3026 = vshrl.u32 %v3025, 7
    %v3027 = vsub.s32 1, %v3026
    %v3028 = vrot.slane %v3019, %v3027
    %v3029 = vlaneseq
    %v3030 = vshrl.u32 %v3029, 7
    %v3031 = vsub.s32 2, %v3030
    %v3032 = vrot.slane %v3019, %v3031
    %v3033 = vlaneseq
    %v3034 = vshrl.u32 %v3033, 7
    %v3035 = vsub.s32 3, %v3034
    %v3036 = vrot.slane %v3019, %v3035
    %v3037 = vlaneseq
    %v3038 = vshrl.u32 %v3037, 7
    %v3039 = vsub.s32 4, %v3038
    %v3040 = vrot.slane %v3019, %v3039
    %v3041 = vlaneseq
    %v3042 = vshrl.u32 %v3041, 7
    %v3043 = vsub.s32 5, %v3042
    %v3044 = vrot.slane %v3019, %v3043
    %v3045 = vlaneseq
    %v3046 = vshrl.u32 %v3045, 7
    %v3047 = vsub.s32 6, %v3046
    %v3048 = vrot.slane %v3019, %v3047
    %v3049 = vlaneseq
    %v3050 = vshrl.u32 %v3049, 7
    %v3051 = vsub.s32 7, %v3050
    %v3052 = vrot.slane %v3019, %v3051
    %v3061 = vmul.f32 %v2929, %v3024
    %v3062 = vmul.f32 %v2931, %v3028
    %v3063 = vmul.f32 %v2933, %v3032
    %v3064 = vmul.f32 %v2935, %v3036
    %v3065 = vmul.f32 %v2937, %v3040
    %v3066 = vmul.f32 %v2939, %v3044
    %v3067 = vmul.f32 %v2941, %v3048
    %v3068 = vmul.f32 %v2943, %v3052
    %3070 = vset.pattern.permute.xlu0 0
    %3071 = vperm.xlu0 %3070, %v3061
    %v3072 = vpop.permute.xlu0 %3071
    %3075 = vset.pattern.permute.xlu0 0
    %3076 = vperm.xlu0 %3075, %v3062
    %v3077 = vpop.permute.xlu0 %3076
    %3080 = vset.pattern.permute.xlu0 0
    %3081 = vperm.xlu0 %3080, %v3063
    %v3082 = vpop.permute.xlu0 %3081
    %3085 = vset.pattern.permute.xlu0 0
    %3086 = vperm.xlu0 %3085, %v3064
    %v3087 = vpop.permute.xlu0 %3086
    %3090 = vset.pattern.permute.xlu0 0
    %3091 = vperm.xlu0 %3090, %v3065
    %v3092 = vpop.permute.xlu0 %3091
    %3095 = vset.pattern.permute.xlu0 0
    %3096 = vperm.xlu0 %3095, %v3066
    %v3097 = vpop.permute.xlu0 %3096
    %3100 = vset.pattern.permute.xlu0 0
    %3101 = vperm.xlu0 %3100, %v3067
    %v3102 = vpop.permute.xlu0 %3101
    %3105 = vset.pattern.permute.xlu0 0
    %3106 = vperm.xlu0 %3105, %v3068
    %v3107 = vpop.permute.xlu0 %3106
    %v3109 = vmul.f32 %v3072, %v113
    %v3110 = vmul.f32 %v3077, %v114
    %v3111 = vmul.f32 %v3082, %v115
    %v3112 = vmul.f32 %v3087, %v116
    %v3113 = vmul.f32 %v3092, %v117
    %v3114 = vmul.f32 %v3097, %v118
    %v3115 = vmul.f32 %v3102, %v119
    %v3116 = vmul.f32 %v3107, %v120
    %v3117 = vsel %vm684, %v3109, 0.0
    %v3118 = vrot.slane %v3117, 4
    %v3119 = vadd.f32 %v3117, %v3118
    %v3120 = vrot.slane %v3119, 2
    %v3121 = vadd.f32 %v3119, %v3120
    %v3122 = vrot.slane %v3121, 1
    %v3123 = vadd.f32 %v3121, %v3122
    %v3124 = vsel %vm684, %v3110, 0.0
    %v3125 = vrot.slane %v3124, 4
    %v3126 = vadd.f32 %v3124, %v3125
    %v3127 = vrot.slane %v3126, 2
    %v3128 = vadd.f32 %v3126, %v3127
    %v3129 = vrot.slane %v3128, 1
    %v3130 = vadd.f32 %v3128, %v3129
    %v3131 = vsel %vm684, %v3111, 0.0
    %v3132 = vrot.slane %v3131, 4
    %v3133 = vadd.f32 %v3131, %v3132
    %v3134 = vrot.slane %v3133, 2
    %v3135 = vadd.f32 %v3133, %v3134
    %v3136 = vrot.slane %v3135, 1
    %v3137 = vadd.f32 %v3135, %v3136
    %v3138 = vsel %vm684, %v3112, 0.0
    %v3139 = vrot.slane %v3138, 4
    %v3140 = vadd.f32 %v3138, %v3139
    %v3141 = vrot.slane %v3140, 2
    %v3142 = vadd.f32 %v3140, %v3141
    %v3143 = vrot.slane %v3142, 1
    %v3144 = vadd.f32 %v3142, %v3143
    %v3145 = vsel %vm684, %v3113, 0.0
    %v3146 = vrot.slane %v3145, 4
    %v3147 = vadd.f32 %v3145, %v3146
    %v3148 = vrot.slane %v3147, 2
    %v3149 = vadd.f32 %v3147, %v3148
    %v3150 = vrot.slane %v3149, 1
    %v3151 = vadd.f32 %v3149, %v3150
    %v3152 = vsel %vm684, %v3114, 0.0
    %v3153 = vrot.slane %v3152, 4
    %v3154 = vadd.f32 %v3152, %v3153
    %v3155 = vrot.slane %v3154, 2
    %v3156 = vadd.f32 %v3154, %v3155
    %v3157 = vrot.slane %v3156, 1
    %v3158 = vadd.f32 %v3156, %v3157
    %v3159 = vsel %vm684, %v3115, 0.0
    %v3160 = vrot.slane %v3159, 4
    %v3161 = vadd.f32 %v3159, %v3160
    %v3162 = vrot.slane %v3161, 2
    %v3163 = vadd.f32 %v3161, %v3162
    %v3164 = vrot.slane %v3163, 1
    %v3165 = vadd.f32 %v3163, %v3164
    %v3166 = vsel %vm684, %v3116, 0.0
    %v3167 = vrot.slane %v3166, 4
    %v3168 = vadd.f32 %v3166, %v3167
    %v3169 = vrot.slane %v3168, 2
    %v3170 = vadd.f32 %v3168, %v3169
    %v3171 = vrot.slane %v3170, 1
    %v3172 = vadd.f32 %v3170, %v3171
    %s3173 = scalar_lea.vmem [#allocation2], 40
    %v3174 = vld [vmem:[%s3173] sm:$0xff]
    %v3183 = vsel %vm427, %v3130, %v3123
    %v3184 = vsel %vm429, %v3137, %v3183
    %v3185 = vsel %vm431, %v3144, %v3184
    %v3186 = vsel %vm433, %v3151, %v3185
    %v3187 = vsel %vm435, %v3158, %v3186
    %v3188 = vsel %vm437, %v3165, %v3187
    %v3189 = vsel %vm439, %v3172, %v3188
    %v3191 = vadd.f32 %v3174, %v3189
    %v3192 = vsel %vm136, %v2687, 0
    %3194 = vmatprep.subr.mxu0 0.0
    %3195 = vmatpush1.msra.mxu0 %v121
    %3196 = vmatprep.subr.mxu0 0.0
    %3197 = vmatpush1.msra.mxu0 %v122
    %3198 = vmatprep.subr.mxu0 0.0
    %3199 = vmatpush1.msra.mxu0 %v123
    %3200 = vmatprep.subr.mxu0 0.0
    %3201 = vmatpush1.msra.mxu0 %v124
    %3202 = vmatprep.subr.mxu0 0.0
    %3203 = vmatpush1.msra.mxu0 0.0
    %3204 = vmatprep.subr.mxu0 0.0
    %3205 = vmatpush1.msra.mxu0 0.0
    %3206 = vmatprep.subr.mxu0 0.0
    %3207 = vmatpush1.msra.mxu0 0.0
    %3208 = vmatprep.subr.mxu0 0.0
    %3209 = vmatpush1.msra.mxu0 0.0
    %3210 = vmatprep.subr.mxu0 0.0
    %3211 = vmatpush1.msra.mxu0 0.0
    %3212 = vmatprep.subr.mxu0 0.0
    %3213 = vmatpush1.msra.mxu0 0.0
    %3214 = vmatprep.subr.mxu0 0.0
    %3215 = vmatpush1.msra.mxu0 0.0
    %3216 = vmatprep.subr.mxu0 0.0
    %3217 = vmatpush1.msra.mxu0 0.0
    %3218 = vmatprep.subr.mxu0 0.0
    %3219 = vmatpush1.msra.mxu0 0.0
    %3220 = vmatprep.subr.mxu0 0.0
    %3221 = vmatpush1.msra.mxu0 0.0
    %3222 = vmatprep.subr.mxu0 0.0
    %3223 = vmatpush1.msra.mxu0 0.0
    %3224 = vmatprep.subr.mxu0 0.0
    %3225 = vmatpush1.msra.mxu0 0.0
    %3226 = vmatprep.subr.mxu0 0.0
    %3227 = vmatpush1.msra.mxu0 0.0
    %3228 = vmatprep.subr.mxu0 0.0
    %3229 = vmatpush1.msra.mxu0 0.0
    %3230 = vmatprep.subr.mxu0 0.0
    %3231 = vmatpush1.msra.mxu0 0.0
    %3232 = vmatprep.subr.mxu0 0.0
    %3233 = vmatpush1.msra.mxu0 0.0
    %3234 = vmatprep.subr.mxu0 0.0
    %3235 = vmatpush1.msra.mxu0 0.0
    %3236 = vmatprep.subr.mxu0 0.0
    %3237 = vmatpush1.msra.mxu0 0.0
    %3238 = vmatprep.subr.mxu0 0.0
    %3239 = vmatpush1.msra.mxu0 0.0
    %3240 = vmatprep.subr.mxu0 0.0
    %3241 = vmatpush1.msra.mxu0 0.0
    %3242 = vmatprep.subr.mxu0 0.0
    %3243 = vmatpush1.msra.mxu0 0.0
    %3244 = vmatprep.subr.mxu0 0.0
    %3245 = vmatpush1.msra.mxu0 0.0
    %3246 = vmatprep.subr.mxu0 0.0
    %3247 = vmatpush1.msra.mxu0 0.0
    %3248 = vmatprep.subr.mxu0 0.0
    %3249 = vmatpush1.msra.mxu0 0.0
    %3250 = vmatprep.subr.mxu0 0.0
    %3251 = vmatpush1.msra.mxu0 0.0
    %3252 = vmatprep.subr.mxu0 0.0
    %3253 = vmatpush1.msra.mxu0 0.0
    %3254 = vmatprep.subr.mxu0 0.0
    %3255 = vmatpush1.msra.mxu0 0.0
    %3256 = vmatprep.subr.mxu0 0.0
    %3257 = vmatpush1.msra.mxu0 0.0
    %3258 = vmatprep.mubr.f32.mxu0 0.0
    %3259 = vmatmul.mubr.f32.gmra.mrb[0].mxu0 %v3192
    %v3260 = vpop.f32.mrb[0].mxu0
    %v3261 = vadd.f32 %v130, %v3260
    %v3262 = vpop.f32.mrb[0].mxu0
    %3263 = vdwg.mxu0
    %v3264 = vadd.f32 %v3191, %v3261
    %v3265 = vxor.u32 %v3264, 2147483648
    %v3266 = vmul.f32 %v3265, 1.442695
    %v3267 = vpow.pop %v3266
    %v3268 = vadd.f32 %v3267, 1.0
    %v3269 = vrcp.pop %v3268
    %v3270 = vmul.f32 1.0, %v3269
    %3272 = vrot.lane.b32.xlu0 %v3261, 64
    %v3273 = vpop.permute.xlu0 %3272
    %v3275 = vmul.f32 %v3270, %v3273
    %3277 = vrot.lane.b32.xlu0 %v3275, 64
    %v3278 = vpop.permute.xlu0 %3277
    %v3280 = vadd.f32 %v3191, %v3278
    %v3281 = vtanh.pop %v3280
    %v3282 = vsub.f32 %v2684, %v3281
    %3284 = vrot.lane.b32.xlu0 %v3282, 96
    %v3285 = vpop.permute.xlu0 %3284
    %v3287 = vmul.f32 %v3270, %v3285
    %3289 = vrot.lane.b32.xlu0 %v3287, 32
    %v3290 = vpop.permute.xlu0 %3289
    %v3292 = vadd.f32 %v3281, %v3290
    %3294 = vrot.lane.b32.xlu0 %v3292, 64
    %v3295 = vpop.permute.xlu0 %3294
    %s3297 = scalar_lea.vmem [#allocation13], 40
    %3298 = vst.msk [vmem:[%s3297] sm:$0xff] %vm136, %v3295
    // Predicated region
    $region54: #{tpu_custom_call.1} parent=1 // pred_check
      _
    $region55: #{tpu_custom_call.1} parent=1 // pred_check_branch
      %3300 = sbr.rel (0) target = $region57
    $region56: #{tpu_custom_call.1} parent=1 // pred_region
      %s3302 = ssub.s32 768, 768
      %3303 = vsyncadd [#allocation4], %s3302
      %s3304 = sshll.u32 [#allocation13], 4
      %s3305 = int_to_ptr.vmem [resolvable:$true] %s3304
      %3310 = dma.vmem_to_hbm [thread:$0]  %s3305, 768, %s7, [#allocation4], 128, 128, 8
    $region57: #{tpu_custom_call.1} parent=1 // pred_fallthru
      _
    // Predicated region
    $region58: #{tpu_custom_call.1} parent=1 // pred_check
      _
    $region59: #{tpu_custom_call.1} parent=1 // pred_check_branch
      %3312 = sbr.rel (0) target = $region61
    $region60: #{tpu_custom_call.1} parent=1 // pred_region
      %3313 = dma.done [#allocation4], 768
    $region61: #{tpu_custom_call.1} parent=1 // pred_fallthru
      _
    %3314 = vsyncpa [#allocation3], 1
    %3315 = vsyncpa [#allocation6], 1
    %3316 = vsyncpa [#allocation9], 1
    %3317 = vsyncpa [#allocation12], 1
    %3318 = vsyncpa [#allocation4], 1

</llo_original>
